<compile_context>
chip_gen: v5e
topology: v5e:2x2
jax: 0.10.0
libtpu: 0.0.40
codegen_flags: <defaults>
</compile_context>

<pallas_src>
import functools

import jax
import jax.numpy as jnp
from jax.experimental import pallas as pl
from jax.experimental.pallas import tpu as pltpu

EPS = 1e-5  # PyTorch nn.LayerNorm default eps


# ----------------------------- in-kernel math -------------------------------

def _layernorm(x, g, b):
    mu = jnp.mean(x, axis=-1, keepdims=True)
    xc = x - mu
    var = jnp.mean(xc * xc, axis=-1, keepdims=True)
    return xc * jax.lax.rsqrt(var + EPS) * g + b


def _gelu_tanh(x):
    # tanh-form GELU: jnp.tanh runs on the EUP slot instead of ~10 VALU ops
    # per element of the (rows, 4*D) activation.
    # TODO(synk): nn.GELU() default is the exact erf form; swap an erf
    #   polynomial back in if bit-level parity with PyTorch is required.
    c = 0.7978845608028654  # sqrt(2/pi)
    return 0.5 * x * (1.0 + jnp.tanh(c * (x + 0.044715 * x * x * x)))


def _bf16(x):
    return x.astype(jnp.bfloat16)


# --------------------------- patch-embedding kernel ---------------------------

def _patch_embed_kernel(patches_ref, ln1_g, ln1_b, pe_w, pe_b, ln2_g, ln2_b,
                        pos_ref, o_ref):
    bblk, n, pd = patches_ref.shape
    d = pe_w.shape[-1]
    rows = bblk * n
    p = patches_ref[...].reshape(rows, pd)                     # free leading-dim merge
    p = _layernorm(p, ln1_g[...], ln1_b[...])
    h = jnp.dot(_bf16(p), pe_w[...],
                preferred_element_type=jnp.float32) + pe_b[...]
    h = _layernorm(h, ln2_g[...], ln2_b[...])
    o_ref[...] = (h.reshape(bblk, n, d) + pos_ref[...]).astype(o_ref.dtype)


# ------------------------------ fused encoder kernel --------------------------

def _encoder_kernel(x0_ref,
                    attn_ln_g, attn_ln_b, wqkv_ref, wo_ref, bo_ref,
                    ff_ln_g, ff_ln_b, w1_ref, b1_ref, w2_ref, b2_ref,
                    fin_g, fin_b,
                    o_ref, x_scr, *, heads, dim_head):
    l = pl.program_id(1)
    bblk, n, d = x0_ref.shape
    rows = bblk * n
    inner = heads * dim_head

    # ---------- initialize residual stream from patch-embed output (l == 0) ---
    @pl.when(l == 0)
    def _():
        x_scr[...] = x0_ref[...].reshape(rows, d)

    x = x_scr[...]                                             # (rows, D) f32

    # ---------- pre-norm multi-head attention ---------------------------------
    xn = _layernorm(x, attn_ln_g[0], attn_ln_b[0])
    # one big packed QKV matmul: (rows, D) @ (D, 3*H*dh); 1/sqrt(dh) is folded
    # into the Q weight columns.
    qkv = jnp.dot(_bf16(xn), wqkv_ref[0],
                  preferred_element_type=jnp.float32)          # (rows, 3*inner)

    def one_head(h):
        q_off = h * dim_head
        k_off = inner + h * dim_head
        v_off = 2 * inner + h * dim_head
        # lane slices (dim_head = 128 -> 128-aligned), leading-dim split is free
        qh = _bf16(qkv[:, q_off:q_off + dim_head]).reshape(bblk, n, dim_head)
        kh = _bf16(qkv[:, k_off:k_off + dim_head]).reshape(bblk, n, dim_head)
        vh = _bf16(qkv[:, v_off:v_off + dim_head]).reshape(bblk, n, dim_head)
        s = jnp.einsum('bnd,bmd->bnm', qh, kh,
                       preferred_element_type=jnp.float32)     # (B_BLK, N, N)
        s = s - jnp.max(s, axis=-1, keepdims=True)
        p = jnp.exp(s)
        p = p * pl.reciprocal(jnp.sum(p, axis=-1, keepdims=True), approx=True)
        ctx = jnp.einsum('bnm,bmd->bnd', _bf16(p), vh,
                         preferred_element_type=jnp.float32)   # (B_BLK, N, dh)
        # per-head output projection, head axis kept explicit -> no transpose
        return jnp.dot(_bf16(ctx.reshape(rows, dim_head)), wo_ref[0, h],
                       preferred_element_type=jnp.float32)     # (rows, D)

    attn_out = one_head(0)
    for h in range(1, heads):
        attn_out = attn_out + one_head(h)
    x = x + attn_out + bo_ref[0]

    # ---------- pre-norm feed-forward (dim -> 4*dim -> dim) -------------------
    xn = _layernorm(x, ff_ln_g[0], ff_ln_b[0])
    hdn = jnp.dot(_bf16(xn), w1_ref[0],
                  preferred_element_type=jnp.float32) + b1_ref[0]
    hdn = _gelu_tanh(hdn)
    y = jnp.dot(_bf16(hdn), w2_ref[0],
                preferred_element_type=jnp.float32) + b2_ref[0]
    x = x + y
    x_scr[...] = x

    # ---------- final LayerNorm + output store on the last layer --------------
    # NOTE: relies on the depth grid axis being sequential ("arbitrary") and
    # depth >= 1 (asserted in the wrapper).
    @pl.when(l == pl.num_programs(1) - 1)
    def _():
        o_ref[...] = _layernorm(x, fin_g[...], fin_b[...]) \
            .reshape(bblk, n, d).astype(o_ref.dtype)


# ------------------------------ pallas_call glue ------------------------------

def vit_forward(params, img, *, patch_size, heads, dim_head, batch_block):
    patches = extract_patches(img, patch_size)                 # (B, N, patch_dim)
    B, N, Pd = patches.shape
    D = params['pos'].shape[-1]
    depth = params['wqkv'].shape[0]
    assert B % batch_block == 0
    b_outer = B // batch_block
    assert depth >= 1  # final-LN store happens on the last depth step

    # ---- patch embedding: LN -> Linear -> LN -> +pos (separate small kernel) --
    def pe_full(shape):
        nd = len(shape)
        return pl.BlockSpec(tuple(shape), lambda b: (0,) * nd)

    x0 = pl.pallas_call(
        _patch_embed_kernel,
        out_shape=jax.ShapeDtypeStruct((B, N, D), jnp.float32),
        grid=(b_outer,),
        in_specs=[
            pl.BlockSpec((batch_block, N, Pd), lambda b: (b, 0, 0)),
            pe_full(params['pe_ln1_g'].shape), pe_full(params['pe_ln1_b'].shape),
            pe_full(params['pe_w'].shape), pe_full(params['pe_b'].shape),
            pe_full(params['pe_ln2_g'].shape), pe_full(params['pe_ln2_b'].shape),
            pe_full(params['pos'].shape),
        ],
        out_specs=pl.BlockSpec((batch_block, N, D), lambda b: (b, 0, 0)),
        compiler_params=pltpu.CompilerParams(
            dimension_semantics=("parallel",)),
    )(patches, params['pe_ln1_g'], params['pe_ln1_b'], params['pe_w'],
      params['pe_b'], params['pe_ln2_g'], params['pe_ln2_b'], params['pos'])

    # ---- fused encoder: grid = (batch blocks, depth) ---------------------------
    def full(shape):
        nd = len(shape)
        return pl.BlockSpec(tuple(shape), lambda b, l: (0,) * nd)

    def stacked(shape):
        blk = (1,) + tuple(shape[1:])
        zeros = (0,) * (len(shape) - 1)
        return pl.BlockSpec(blk, lambda b, l: (l,) + zeros)

    kern = functools.partial(_encoder_kernel, heads=heads, dim_head=dim_head)

    return pl.pallas_call(
        kern,
        out_shape=jax.ShapeDtypeStruct((B, N, D), jnp.float32),
        grid=(b_outer, depth),
        in_specs=[
            pl.BlockSpec((batch_block, N, D), lambda b, l: (b, 0, 0)),
            stacked(params['attn_ln_g'].shape), stacked(params['attn_ln_b'].shape),
            stacked(params['wqkv'].shape), stacked(params['wo'].shape),
            stacked(params['bo'].shape),
            stacked(params['ff_ln_g'].shape), stacked(params['ff_ln_b'].shape),
            stacked(params['w1'].shape), stacked(params['b1'].shape),
            stacked(params['w2'].shape), stacked(params['b2'].shape),
            full(params['final_ln_g'].shape), full(params['final_ln_b'].shape),
        ],
        out_specs=pl.BlockSpec((batch_block, N, D), lambda b, l: (b, 0, 0)),
        scratch_shapes=[pltpu.VMEM((batch_block * N, D), jnp.float32)],  # residual
        compiler_params=pltpu.CompilerParams(
            # batch blocks parallel (2 blocks -> both v7x TCs busy);
            # depth carries the residual stream in scratch -> arbitrary.
            dimension_semantics=("parallel", "arbitrary"),
            # whole-block weights kept resident at this demo size; 48 MiB is a
            # safe explicit cap on v5e/v6e (raises the 16/32 MiB defaults) and
            # still below v7x's 64 MiB physical VMEM.
            vmem_limit_bytes=48 * 1024 * 1024),
    )(x0,
      params['attn_ln_g'], params['attn_ln_b'], params['wqkv'], params['wo'],
      params['bo'], params['ff_ln_g'], params['ff_ln_b'],
      params['w1'], params['b1'], params['w2'], params['b2'],
      params['final_ln_g'], params['final_ln_b'])


# ------------------------------ model wrapper --------------------------------

def extract_patches(img, patch_size):
    # einops: 'b c (h p1) (w p2) -> b (h w) (p1 p2 c)'
    B, C, H, W = img.shape
    p = patch_size
    h, w = H // p, W // p
    x = img.reshape(B, C, h, p, w, p)
    x = x.transpose(0, 2, 4, 3, 5, 1)              # b h w p1 p2 c
    return x.reshape(B, h * w, p * p * C)


def init_params(key, *, channels, patch_size, dim, depth, heads, dim_head,
                ff_mult, num_patches):
    patch_dim = channels * patch_size * patch_size
    inner = heads * dim_head
    ff_inner = dim * ff_mult
    keys = iter(jax.random.split(key, 16))

    def nrm(shape, scale=0.02):
        return (scale * jax.random.normal(next(keys), shape)).astype(jnp.float32)

    # Packed QKV weight, equivalent to Linear(dim, 3*heads*dim_head).  The
    # 1/sqrt(dim_head) attention scale is folded into the Q columns.
    scale = dim_head ** -0.5
    wq = nrm((depth, dim, inner)) * scale
    wk = nrm((depth, dim, inner))
    wv = nrm((depth, dim, inner))
    wqkv = jnp.concatenate([wq, wk, wv], axis=-1)   # (depth, dim, 3*inner)

    params = {
        'pos': nrm((num_patches, dim), 1.0),
        'pe_ln1_g': jnp.ones((1, patch_dim), jnp.float32),
        'pe_ln1_b': jnp.zeros((1, patch_dim), jnp.float32),
        'pe_w': nrm((patch_dim, dim)).astype(jnp.bfloat16),
        'pe_b': jnp.zeros((1, dim), jnp.float32),
        'pe_ln2_g': jnp.ones((1, dim), jnp.float32),
        'pe_ln2_b': jnp.zeros((1, dim), jnp.float32),
        'final_ln_g': jnp.ones((1, dim), jnp.float32),
        'final_ln_b': jnp.zeros((1, dim), jnp.float32),
        # per-layer parameters stacked on a leading depth axis
        'attn_ln_g': jnp.ones((depth, 1, dim), jnp.float32),
        'attn_ln_b': jnp.zeros((depth, 1, dim), jnp.float32),
        'wqkv': wqkv.astype(jnp.bfloat16),
        # (depth, H, dh, D): head axis explicit -> no head-merge transpose in-kernel
        'wo': nrm((depth, heads, dim_head, dim)).astype(jnp.bfloat16),
        'bo': jnp.zeros((depth, 1, dim), jnp.float32),
        'ff_ln_g': jnp.ones((depth, 1, dim), jnp.float32),
        'ff_ln_b': jnp.zeros((depth, 1, dim), jnp.float32),
        'w1': nrm((depth, dim, ff_inner)).astype(jnp.bfloat16),
        'b1': jnp.zeros((depth, 1, ff_inner), jnp.float32),
        'w2': nrm((depth, ff_inner, dim)).astype(jnp.bfloat16),
        'b2': jnp.zeros((depth, 1, dim), jnp.float32),
    }
    return params


# ------------------------------------ main ------------------------------------

if __name__ == "__main__":
    # small, (8,128)-aligned shapes consistent with the module
    # (encoder_dim=512 matches the module default; depth/image scaled down).
    B, C = 8, 3
    IMAGE_SIZE, PATCH_SIZE = 64, 8
    DIM, DEPTH, HEADS = 512, 2, 4
    DIM_HEAD = 128                   # full lane width per head; 128-aligned slices
    FF_MULT = 4
    NUM_PATCHES = (IMAGE_SIZE // PATCH_SIZE) ** 2   # 64
    BATCH_BLOCK = 4                  # rows per matmul = 4*64 = 256; B/B_BLK = 2 (even)

    key = jax.random.PRNGKey(0)
    pkey, xkey = jax.random.split(key)

    params = init_params(pkey, channels=C, patch_size=PATCH_SIZE, dim=DIM,
                         depth=DEPTH, heads=HEADS, dim_head=DIM_HEAD,
                         ff_mult=FF_MULT, num_patches=NUM_PATCHES)

    x = jax.random.normal(xkey, (B, C, IMAGE_SIZE, IMAGE_SIZE), dtype=jnp.float32)

    out = vit_forward(params, x, patch_size=PATCH_SIZE, heads=HEADS,
                      dim_head=DIM_HEAD, batch_block=BATCH_BLOCK)
    out = jax.block_until_ready(out)

    assert out.shape == (B, NUM_PATCHES, DIM), out.shape
    assert out.dtype == jnp.float32
    assert bool(jnp.all(jnp.isfinite(out)))
    print("KERNEL_OK")
</pallas_src>

<mosaic_0001>
module attributes {stable_mosaic.version = 11 : i64} {
  func.func @_patch_embed_kernel(%arg0: i32, %arg1: memref<4x64x192xf32, #tpu.memory_space<vmem>>, %arg2: memref<1x192xf32, #tpu.memory_space<vmem>>, %arg3: memref<1x192xf32, #tpu.memory_space<vmem>>, %arg4: memref<192x512xbf16, #tpu.memory_space<vmem>>, %arg5: memref<1x512xf32, #tpu.memory_space<vmem>>, %arg6: memref<1x512xf32, #tpu.memory_space<vmem>>, %arg7: memref<1x512xf32, #tpu.memory_space<vmem>>, %arg8: memref<64x512xf32, #tpu.memory_space<vmem>>, %arg9: memref<4x64x512xf32, #tpu.memory_space<vmem>>) attributes {dimension_semantics = [#tpu.dimension_semantics<parallel>], iteration_bounds = array<i64: 2>, scalar_prefetch = 0 : i64, scratch_operands = 0 : i64, tpu.core_type = #tpu.core_type<tc>, window_params = [{transform_indices = @transform_0, window_bounds = array<i64: 4, 64, 192>}, {pipeline_mode = #tpu.pipeline_mode<synchronous>, transform_indices = @transform_1, window_bounds = array<i64: 1, 192>}, {pipeline_mode = #tpu.pipeline_mode<synchronous>, transform_indices = @transform_2, window_bounds = array<i64: 1, 192>}, {pipeline_mode = #tpu.pipeline_mode<synchronous>, transform_indices = @transform_3, window_bounds = array<i64: 192, 512>}, {pipeline_mode = #tpu.pipeline_mode<synchronous>, transform_indices = @transform_4, window_bounds = array<i64: 1, 512>}, {pipeline_mode = #tpu.pipeline_mode<synchronous>, transform_indices = @transform_5, window_bounds = array<i64: 1, 512>}, {pipeline_mode = #tpu.pipeline_mode<synchronous>, transform_indices = @transform_6, window_bounds = array<i64: 1, 512>}, {pipeline_mode = #tpu.pipeline_mode<synchronous>, transform_indices = @transform_7, window_bounds = array<i64: 64, 512>}, {transform_indices = @transform_8, window_bounds = array<i64: 4, 64, 512>}]} {
    %c0 = arith.constant 0 : index
    %c0_0 = arith.constant 0 : index
    %c0_1 = arith.constant 0 : index
    %0 = vector.load %arg1[%c0, %c0_0, %c0_1] : memref<4x64x192xf32, #tpu.memory_space<vmem>>, vector<4x64x192xf32>
    %1 = vector.shape_cast %0 : vector<4x64x192xf32> to vector<256x192xf32>
    %c0_2 = arith.constant 0 : index
    %c0_3 = arith.constant 0 : index
    %2 = vector.load %arg2[%c0_2, %c0_3] : memref<1x192xf32, #tpu.memory_space<vmem>>, vector<1x192xf32>
    %c0_4 = arith.constant 0 : index
    %c0_5 = arith.constant 0 : index
    %3 = vector.load %arg3[%c0_4, %c0_5] : memref<1x192xf32, #tpu.memory_space<vmem>>, vector<1x192xf32>
    %cst = arith.constant dense<0.000000e+00> : vector<256xf32>
    %4 = vector.multi_reduction <add>, %1, %cst [1] : vector<256x192xf32> to vector<256xf32>
    %5 = vector.shape_cast %4 : vector<256xf32> to vector<256x1xf32>
    %cst_6 = arith.constant 1.920000e+02 : f32
    %6 = vector.broadcast %cst_6 : f32 to vector<256x1xf32>
    %7 = arith.divf %5, %6 : vector<256x1xf32>
    %8 = vector.broadcast %7 : vector<256x1xf32> to vector<256x192xf32>
    %9 = arith.subf %1, %8 : vector<256x192xf32>
    %10 = arith.mulf %9, %9 : vector<256x192xf32>
    %cst_7 = arith.constant dense<0.000000e+00> : vector<256xf32>
    %11 = vector.multi_reduction <add>, %10, %cst_7 [1] : vector<256x192xf32> to vector<256xf32>
    %12 = vector.shape_cast %11 : vector<256xf32> to vector<256x1xf32>
    %cst_8 = arith.constant 1.920000e+02 : f32
    %13 = vector.broadcast %cst_8 : f32 to vector<256x1xf32>
    %14 = arith.divf %12, %13 : vector<256x1xf32>
    %cst_9 = arith.constant 9.99999974E-6 : f32
    %15 = vector.broadcast %cst_9 : f32 to vector<256x1xf32>
    %16 = arith.addf %14, %15 : vector<256x1xf32>
    %17 = math.rsqrt %16 : vector<256x1xf32>
    %18 = vector.broadcast %17 : vector<256x1xf32> to vector<256x192xf32>
    %19 = arith.mulf %9, %18 : vector<256x192xf32>
    %20 = vector.broadcast %2 : vector<1x192xf32> to vector<256x192xf32>
    %21 = arith.mulf %19, %20 : vector<256x192xf32>
    %22 = vector.broadcast %3 : vector<1x192xf32> to vector<256x192xf32>
    %23 = arith.addf %21, %22 : vector<256x192xf32>
    %24 = arith.truncf %23 : vector<256x192xf32> to vector<256x192xbf16>
    %c0_10 = arith.constant 0 : index
    %c0_11 = arith.constant 0 : index
    %25 = vector.load %arg4[%c0_10, %c0_11] : memref<192x512xbf16, #tpu.memory_space<vmem>>, vector<192x512xbf16>
    %cst_12 = arith.constant dense<0.000000e+00> : vector<256x512xf32>
    %26 = tpu.matmul %24, %25, %cst_12 {dimension_numbers = #tpu.dot_dimension_numbers<[1], [0], [0], [1], [0, 0, 1, 1], [], []>} : vector<256x192xbf16>, vector<192x512xbf16>, vector<256x512xf32> -> vector<256x512xf32>
    %c0_13 = arith.constant 0 : index
    %c0_14 = arith.constant 0 : index
    %27 = vector.load %arg5[%c0_13, %c0_14] : memref<1x512xf32, #tpu.memory_space<vmem>>, vector<1x512xf32>
    %28 = vector.broadcast %27 : vector<1x512xf32> to vector<256x512xf32>
    %29 = arith.addf %26, %28 : vector<256x512xf32>
    %c0_15 = arith.constant 0 : index
    %c0_16 = arith.constant 0 : index
    %30 = vector.load %arg6[%c0_15, %c0_16] : memref<1x512xf32, #tpu.memory_space<vmem>>, vector<1x512xf32>
    %c0_17 = arith.constant 0 : index
    %c0_18 = arith.constant 0 : index
    %31 = vector.load %arg7[%c0_17, %c0_18] : memref<1x512xf32, #tpu.memory_space<vmem>>, vector<1x512xf32>
    %cst_19 = arith.constant dense<0.000000e+00> : vector<256xf32>
    %32 = vector.multi_reduction <add>, %29, %cst_19 [1] : vector<256x512xf32> to vector<256xf32>
    %33 = vector.shape_cast %32 : vector<256xf32> to vector<256x1xf32>
    %cst_20 = arith.constant 5.120000e+02 : f32
    %34 = vector.broadcast %cst_20 : f32 to vector<256x1xf32>
    %35 = arith.divf %33, %34 : vector<256x1xf32>
    %36 = vector.broadcast %35 : vector<256x1xf32> to vector<256x512xf32>
    %37 = arith.subf %29, %36 : vector<256x512xf32>
    %38 = arith.mulf %37, %37 : vector<256x512xf32>
    %cst_21 = arith.constant dense<0.000000e+00> : vector<256xf32>
    %39 = vector.multi_reduction <add>, %38, %cst_21 [1] : vector<256x512xf32> to vector<256xf32>
    %40 = vector.shape_cast %39 : vector<256xf32> to vector<256x1xf32>
    %cst_22 = arith.constant 5.120000e+02 : f32
    %41 = vector.broadcast %cst_22 : f32 to vector<256x1xf32>
    %42 = arith.divf %40, %41 : vector<256x1xf32>
    %cst_23 = arith.constant 9.99999974E-6 : f32
    %43 = vector.broadcast %cst_23 : f32 to vector<256x1xf32>
    %44 = arith.addf %42, %43 : vector<256x1xf32>
    %45 = math.rsqrt %44 : vector<256x1xf32>
    %46 = vector.broadcast %45 : vector<256x1xf32> to vector<256x512xf32>
    %47 = arith.mulf %37, %46 : vector<256x512xf32>
    %48 = vector.broadcast %30 : vector<1x512xf32> to vector<256x512xf32>
    %49 = arith.mulf %47, %48 : vector<256x512xf32>
    %50 = vector.broadcast %31 : vector<1x512xf32> to vector<256x512xf32>
    %51 = arith.addf %49, %50 : vector<256x512xf32>
    %52 = vector.shape_cast %51 : vector<256x512xf32> to vector<4x64x512xf32>
    %c0_24 = arith.constant 0 : index
    %c0_25 = arith.constant 0 : index
    %53 = vector.load %arg8[%c0_24, %c0_25] : memref<64x512xf32, #tpu.memory_space<vmem>>, vector<64x512xf32>
    %54 = vector.shape_cast %53 : vector<64x512xf32> to vector<1x64x512xf32>
    %55 = vector.broadcast %54 : vector<1x64x512xf32> to vector<4x64x512xf32>
    %56 = arith.addf %52, %55 : vector<4x64x512xf32>
    %c0_26 = arith.constant 0 : index
    %c0_27 = arith.constant 0 : index
    %c0_28 = arith.constant 0 : index
    %57 = vector.load %arg9[%c0_26, %c0_27, %c0_28] : memref<4x64x512xf32, #tpu.memory_space<vmem>>, vector<4x64x512xf32>
    tpu.vector_store %arg9[%c0_26, %c0_27, %c0_28], %56 {strides = array<i32>} : memref<4x64x512xf32, #tpu.memory_space<vmem>>, vector<4x64x512xf32>,
    return
  }
  func.func @transform_0(%arg0: i32) -> (i32, i32, i32) {
    %c0_i32 = arith.constant 0 : i32
    %c0_i32_0 = arith.constant 0 : i32
    %c0_i32_1 = arith.constant 0 : i32
    return %arg0, %c0_i32, %c0_i32_0 : i32, i32, i32
  }
  func.func @transform_1(%arg0: i32) -> (i32, i32) {
    %c0_i32 = arith.constant 0 : i32
    %c0_i32_0 = arith.constant 0 : i32
    %c0_i32_1 = arith.constant 0 : i32
    return %c0_i32, %c0_i32_0 : i32, i32
  }
  func.func @transform_2(%arg0: i32) -> (i32, i32) {
    %c0_i32 = arith.constant 0 : i32
    %c0_i32_0 = arith.constant 0 : i32
    %c0_i32_1 = arith.constant 0 : i32
    return %c0_i32, %c0_i32_0 : i32, i32
  }
  func.func @transform_3(%arg0: i32) -> (i32, i32) {
    %c0_i32 = arith.constant 0 : i32
    %c0_i32_0 = arith.constant 0 : i32
    %c0_i32_1 = arith.constant 0 : i32
    return %c0_i32, %c0_i32_0 : i32, i32
  }
  func.func @transform_4(%arg0: i32) -> (i32, i32) {
    %c0_i32 = arith.constant 0 : i32
    %c0_i32_0 = arith.constant 0 : i32
    %c0_i32_1 = arith.constant 0 : i32
    return %c0_i32, %c0_i32_0 : i32, i32
  }
  func.func @transform_5(%arg0: i32) -> (i32, i32) {
    %c0_i32 = arith.constant 0 : i32
    %c0_i32_0 = arith.constant 0 : i32
    %c0_i32_1 = arith.constant 0 : i32
    return %c0_i32, %c0_i32_0 : i32, i32
  }
  func.func @transform_6(%arg0: i32) -> (i32, i32) {
    %c0_i32 = arith.constant 0 : i32
    %c0_i32_0 = arith.constant 0 : i32
    %c0_i32_1 = arith.constant 0 : i32
    return %c0_i32, %c0_i32_0 : i32, i32
  }
  func.func @transform_7(%arg0: i32) -> (i32, i32) {
    %c0_i32 = arith.constant 0 : i32
    %c0_i32_0 = arith.constant 0 : i32
    %c0_i32_1 = arith.constant 0 : i32
    return %c0_i32, %c0_i32_0 : i32, i32
  }
  func.func @transform_8(%arg0: i32) -> (i32, i32, i32) {
    %c0_i32 = arith.constant 0 : i32
    %c0_i32_0 = arith.constant 0 : i32
    %c0_i32_1 = arith.constant 0 : i32
    return %arg0, %c0_i32, %c0_i32_0 : i32, i32, i32
  }
}

</mosaic_0001>

<llo_original>
// kernel: tpu_custom_call.1
$region0: #{tpu_custom_call.1}
  #allocation0 [shape = 'u32[]', space=smem, size = 0x4, offset = 0x4, fixed_abs, tag = 'smem constant byte address 0x4 - core index']
  #allocation1 [shape = 'u32[72,128]{1,0:T(1,128)}', space=vmem, size = 0x9000, scoped, tag = 'internal scratch']
  %s0 = inlined_call_operand.hbm [shape: f32[8,64,192], index: 0, kind: input, shape index: {}]
  %s1 = inlined_call_operand.hbm [shape: f32[1,192], index: 1, kind: input, shape index: {}]
  %s2 = inlined_call_operand.hbm [shape: f32[1,192], index: 2, kind: input, shape index: {}]
  %s3 = inlined_call_operand.hbm [shape: bf16[192,512], index: 3, kind: input, shape index: {}]
  %s4 = inlined_call_operand.hbm [shape: f32[1,512], index: 4, kind: input, shape index: {}]
  %s5 = inlined_call_operand.vmem [shape: f32[1,512], index: 5, kind: input, shape index: {}]
  %s6 = inlined_call_operand.hbm [shape: f32[1,512], index: 6, kind: input, shape index: {}]
  %s7 = inlined_call_operand.hbm [shape: f32[64,512], index: 7, kind: input, shape index: {}]
  %s8 = inlined_call_operand.hbm [shape: f32[8,64,512], index: 8, kind: output, shape index: {}]
  %s9 = sld [smem:[#allocation0]]
  $region93: #{tpu_custom_call.1} parent=0
    _
  %s11 = ssub.s32 1, %s9
  %s12 = scalar_select 0, %s11, %s9
  $region1: #{tpu_custom_call.1} parent=0
    #allocation2 [shape = 'u8[524288]{0}', space=vmem, size = 0x80000, scoped, tag = 'input window, operand 0']
    #allocation3 [shape = 's32[2]{0}', space=sflag, size = 0x8, scoped, tag = 'scoped memory for tpu_custom_call.1']
    #allocation4 [shape = 's32[2]{0}', space=sflag, size = 0x8, scoped, tag = 'scoped memory for tpu_custom_call.1']
    #allocation5 [shape = 'u8[1024]{0}', space=vmem, size = 0x400, scoped, tag = 'input window, operand 1, single buffered']
    #allocation6 [shape = 's32[1]{0}', space=sflag, size = 0x4, scoped, tag = 'scoped memory for tpu_custom_call.1']
    #allocation7 [shape = 'u8[1024]{0}', space=vmem, size = 0x400, scoped, tag = 'input window, operand 2, single buffered']
    #allocation8 [shape = 'u8[196608]{0}', space=vmem, size = 0x30000, scoped, tag = 'input window, operand 3, single buffered']
    #allocation9 [shape = 's32[1]{0}', space=sflag, size = 0x4, scoped, tag = 'scoped memory for tpu_custom_call.1']
    #allocation10 [shape = 'u8[2048]{0}', space=vmem, size = 0x800, scoped, tag = 'input window, operand 4, single buffered']
    #allocation11 [shape = 'u8[2048]{0}', space=vmem, size = 0x800, scoped, tag = 'input window, operand 6, single buffered']
    #allocation12 [shape = 's32[1]{0}', space=sflag, size = 0x4, scoped, tag = 'scoped memory for tpu_custom_call.1']
    #allocation13 [shape = 'u8[131072]{0}', space=vmem, size = 0x20000, scoped, tag = 'input window, operand 7, single buffered']
    #allocation14 [shape = 'u8[1048576]{0}', space=vmem, size = 0x100000, scoped, tag = 'output window, operand 0']
    %13 = vsyncpa [#allocation3], 0
    %s14 = scalar_lea.sflag [#allocation3], 1
    %15 = vsyncpa %s14, 0
    %16 = vsyncpa [#allocation6], 0
    %17 = vsyncpa [#allocation9], 0
    %18 = vsyncpa [#allocation12], 0
    %19 = vsyncpa [#allocation4], 0
    %s20 = scalar_lea.sflag [#allocation4], 1
    %21 = vsyncpa %s20, 0
    loop: start=0, step=1, limit=4
    $region2: #{tpu_custom_call.1} parent=1 // loop_pre_header
      _
    $region3: #{tpu_custom_call.1} parent=1 // loop_header
      %s23 = sphi 0, %s27
      %p24 = scmp.ge.s32.totalorder %s23, 4
      %s33 = sphi 0, %s35
      %s36 = sphi 0, %s33
      %s37 = sphi 0, %s36
      %s53 = sphi 0, %s37
      %s57 = sphi 0, %s57
      %s59 = sphi 0, %s57
      %s60 = sphi 0, %s59
      %s74 = sphi 0, %s60
      %s78 = sphi 0, %s78
      %s80 = sphi 0, %s78
      %s81 = sphi 0, %s80
      %s95 = sphi 0, %s81
      %s99 = sphi 0, %s99
      %s101 = sphi 0, %s99
      %s102 = sphi 0, %s101
      %s116 = sphi 0, %s102
      %s120 = sphi 0, %s120
      %s122 = sphi 0, %s120
      %s123 = sphi 0, %s122
      %s137 = sphi 0, %s123
      %s141 = sphi 0, %s141
      %s143 = sphi 0, %s141
      %s144 = sphi 0, %s143
      %s158 = sphi 0, %s144
      %s162 = sphi 0, %s162
      %s164 = sphi 0, %s162
      %s165 = sphi 0, %s164
      %s179 = sphi 0, %s165
      %s183 = sphi 0, %s183
      %s185 = sphi 0, %s183
      %s186 = sphi 0, %s185
      %s200 = sphi 0, %s186
      %s206 = sphi 0, %s208
      %s209 = sphi 0, %s206
      %s210 = sphi 0, %s209
      %s226 = sphi 0, %s210
    $region4: #{tpu_custom_call.1} parent=1 // loop_header_branch
      %26 = sbr.rel (%p24) target = $region8
    $region5: #{tpu_custom_call.1} parent=1 // loop_body
      %s28 = ssub.s32 %s23, 1
      %s29 = ssub.s32 %s23, 2
      %s30 = sadd.s32 %s23, 1
      %s31 = ssub.s32 %s23, %s30
      %p32 = scmp.eq.s32.totalorder %s31, 0
      %s34 = sadd.s32 %s33, 1
      %s35 = scalar_select %p32, %s33, %s34
      %p38 = pneg %p32
      %p39 = scmp.eq.s32.totalorder %s23, 1
      %p40 = por %p38, %p39
      %p41 = scmp.ne.s32.totalorder %s33, %s36
      %p42 = scmp.eq.s32.totalorder %s23, 0
      %p43 = por %p41, %p42
      %p44 = scmp.ne.s32.totalorder %s33, %s36
      %p45 = scmp.eq.s32.totalorder %s28, 1
      %p46 = por %p44, %p45
      %p47 = scmp.ne.s32.totalorder %s36, %s37
      %p48 = scmp.eq.s32.totalorder %s28, 0
      %p49 = por %p47, %p48
      %p50 = scmp.ne.s32.totalorder %s36, %s37
      %p51 = scmp.eq.s32.totalorder %s29, 1
      %p52 = por %p50, %p51
      %p54 = scmp.ne.s32.totalorder %s37, %s53
      %p55 = scmp.eq.s32.totalorder %s29, 0
      %p56 = por %p54, %p55
      %s58 = sadd.s32 %s57, 1
      %p61 = scmp.eq.s32.totalorder %s23, 1
      %p62 = scmp.ne.s32.totalorder %s57, %s59
      %p63 = scmp.eq.s32.totalorder %s23, 0
      %p64 = por %p62, %p63
      %p65 = scmp.ne.s32.totalorder %s57, %s59
      %p66 = scmp.eq.s32.totalorder %s28, 1
      %p67 = por %p65, %p66
      %p68 = scmp.ne.s32.totalorder %s59, %s60
      %p69 = scmp.eq.s32.totalorder %s28, 0
      %p70 = por %p68, %p69
      %p71 = scmp.ne.s32.totalorder %s59, %s60
      %p72 = scmp.eq.s32.totalorder %s29, 1
      %p73 = por %p71, %p72
      %p75 = scmp.ne.s32.totalorder %s60, %s74
      %p76 = scmp.eq.s32.totalorder %s29, 0
      %p77 = por %p75, %p76
      %s79 = sadd.s32 %s78, 1
      %p82 = scmp.eq.s32.totalorder %s23, 1
      %p83 = scmp.ne.s32.totalorder %s78, %s80
      %p84 = scmp.eq.s32.totalorder %s23, 0
      %p85 = por %p83, %p84
      %p86 = scmp.ne.s32.totalorder %s78, %s80
      %p87 = scmp.eq.s32.totalorder %s28, 1
      %p88 = por %p86, %p87
      %p89 = scmp.ne.s32.totalorder %s80, %s81
      %p90 = scmp.eq.s32.totalorder %s28, 0
      %p91 = por %p89, %p90
      %p92 = scmp.ne.s32.totalorder %s80, %s81
      %p93 = scmp.eq.s32.totalorder %s29, 1
      %p94 = por %p92, %p93
      %p96 = scmp.ne.s32.totalorder %s81, %s95
      %p97 = scmp.eq.s32.totalorder %s29, 0
      %p98 = por %p96, %p97
      %s100 = sadd.s32 %s99, 1
      %p103 = scmp.eq.s32.totalorder %s23, 1
      %p104 = scmp.ne.s32.totalorder %s99, %s101
      %p105 = scmp.eq.s32.totalorder %s23, 0
      %p106 = por %p104, %p105
      %p107 = scmp.ne.s32.totalorder %s99, %s101
      %p108 = scmp.eq.s32.totalorder %s28, 1
      %p109 = por %p107, %p108
      %p110 = scmp.ne.s32.totalorder %s101, %s102
      %p111 = scmp.eq.s32.totalorder %s28, 0
      %p112 = por %p110, %p111
      %p113 = scmp.ne.s32.totalorder %s101, %s102
      %p114 = scmp.eq.s32.totalorder %s29, 1
      %p115 = por %p113, %p114
      %p117 = scmp.ne.s32.totalorder %s102, %s116
      %p118 = scmp.eq.s32.totalorder %s29, 0
      %p119 = por %p117, %p118
      %s121 = sadd.s32 %s120, 1
      %p124 = scmp.eq.s32.totalorder %s23, 1
      %p125 = scmp.ne.s32.totalorder %s120, %s122
      %p126 = scmp.eq.s32.totalorder %s23, 0
      %p127 = por %p125, %p126
      %p128 = scmp.ne.s32.totalorder %s120, %s122
      %p129 = scmp.eq.s32.totalorder %s28, 1
      %p130 = por %p128, %p129
      %p131 = scmp.ne.s32.totalorder %s122, %s123
      %p132 = scmp.eq.s32.totalorder %s28, 0
      %p133 = por %p131, %p132
      %p134 = scmp.ne.s32.totalorder %s122, %s123
      %p135 = scmp.eq.s32.totalorder %s29, 1
      %p136 = por %p134, %p135
      %p138 = scmp.ne.s32.totalorder %s123, %s137
      %p139 = scmp.eq.s32.totalorder %s29, 0
      %p140 = por %p138, %p139
      %s142 = sadd.s32 %s141, 1
      %p145 = scmp.eq.s32.totalorder %s23, 1
      %p146 = scmp.ne.s32.totalorder %s141, %s143
      %p147 = scmp.eq.s32.totalorder %s23, 0
      %p148 = por %p146, %p147
      %p149 = scmp.ne.s32.totalorder %s141, %s143
      %p150 = scmp.eq.s32.totalorder %s28, 1
      %p151 = por %p149, %p150
      %p152 = scmp.ne.s32.totalorder %s143, %s144
      %p153 = scmp.eq.s32.totalorder %s28, 0
      %p154 = por %p152, %p153
      %p155 = scmp.ne.s32.totalorder %s143, %s144
      %p156 = scmp.eq.s32.totalorder %s29, 1
      %p157 = por %p155, %p156
      %p159 = scmp.ne.s32.totalorder %s144, %s158
      %p160 = scmp.eq.s32.totalorder %s29, 0
      %p161 = por %p159, %p160
      %s163 = sadd.s32 %s162, 1
      %p166 = scmp.eq.s32.totalorder %s23, 1
      %p167 = scmp.ne.s32.totalorder %s162, %s164
      %p168 = scmp.eq.s32.totalorder %s23, 0
      %p169 = por %p167, %p168
      %p170 = scmp.ne.s32.totalorder %s162, %s164
      %p171 = scmp.eq.s32.totalorder %s28, 1
      %p172 = por %p170, %p171
      %p173 = scmp.ne.s32.totalorder %s164, %s165
      %p174 = scmp.eq.s32.totalorder %s28, 0
      %p175 = por %p173, %p174
      %p176 = scmp.ne.s32.totalorder %s164, %s165
      %p177 = scmp.eq.s32.totalorder %s29, 1
      %p178 = por %p176, %p177
      %p180 = scmp.ne.s32.totalorder %s165, %s179
      %p181 = scmp.eq.s32.totalorder %s29, 0
      %p182 = por %p180, %p181
      %s184 = sadd.s32 %s183, 1
      %p187 = scmp.eq.s32.totalorder %s23, 1
      %p188 = scmp.ne.s32.totalorder %s183, %s185
      %p189 = scmp.eq.s32.totalorder %s23, 0
      %p190 = por %p188, %p189
      %p191 = scmp.ne.s32.totalorder %s183, %s185
      %p192 = scmp.eq.s32.totalorder %s28, 1
      %p193 = por %p191, %p192
      %p194 = scmp.ne.s32.totalorder %s185, %s186
      %p195 = scmp.eq.s32.totalorder %s28, 0
      %p196 = por %p194, %p195
      %p197 = scmp.ne.s32.totalorder %s185, %s186
      %p198 = scmp.eq.s32.totalorder %s29, 1
      %p199 = por %p197, %p198
      %p201 = scmp.ne.s32.totalorder %s186, %s200
      %p202 = scmp.eq.s32.totalorder %s29, 0
      %p203 = por %p201, %p202
      %s204 = ssub.s32 %s23, %s30
      %p205 = scmp.eq.s32.totalorder %s204, 0
      %s207 = sadd.s32 %s206, 1
      %s208 = scalar_select %p205, %s206, %s207
      %p211 = pneg %p205
      %p212 = scmp.eq.s32.totalorder %s23, 1
      %p213 = por %p211, %p212
      %p214 = scmp.ne.s32.totalorder %s206, %s209
      %p215 = scmp.eq.s32.totalorder %s23, 0
      %p216 = por %p214, %p215
      %p217 = scmp.ne.s32.totalorder %s206, %s209
      %p218 = scmp.eq.s32.totalorder %s28, 1
      %p219 = por %p217, %p218
      %p220 = scmp.ne.s32.totalorder %s209, %s210
      %p221 = scmp.eq.s32.totalorder %s28, 0
      %p222 = por %p220, %p221
      %p223 = scmp.ne.s32.totalorder %s209, %s210
      %p224 = scmp.eq.s32.totalorder %s29, 1
      %p225 = por %p223, %p224
      %p227 = scmp.ne.s32.totalorder %s210, %s226
      %p228 = scmp.eq.s32.totalorder %s29, 0
      %p229 = por %p227, %p228
      %p230 = scmp.le.s32.totalorder 1, %s23
      %p231 = scmp.lt.s32.totalorder %s23, 3
      %p232 = pnand %p230, %p231
      %p233 = pneg %p232
      // Predicated region
      $region9: #{tpu_custom_call.1} parent=5 // pred_check
        _
      $region10: #{tpu_custom_call.1} parent=5 // pred_check_branch
        %235 = sbr.rel (%p232) target = $region12
      $region11: #{tpu_custom_call.1} parent=5 // pred_region
        %s236 = ssub.s32 %s23, 1
        // Predicated region
        $region13: #{tpu_custom_call.1} parent=11 // pred_check
          %p237 = pneg %p70
        $region14: #{tpu_custom_call.1} parent=11 // pred_check_branch
          %239 = sbr.rel (%p237) target = $region16
        $region15: #{tpu_custom_call.1} parent=11 // pred_region
          %241 = vsyncadd [#allocation6], 0
          %s243 = sshll.u32 %s1, 4
          %s244 = int_to_ptr.hbm [resolvable:$true] %s243
          %s245 = sshll.u32 [#allocation5], 4
          %s246 = int_to_ptr.vmem [resolvable:$true] %s245
          %248 = dma.hbm_to_vmem [thread:$0]  %s244, 32, %s246, [#allocation6]
        $region16: #{tpu_custom_call.1} parent=11 // pred_fallthru
          _
        // Predicated region
        $region17: #{tpu_custom_call.1} parent=11 // pred_check
          %p249 = pneg %p91
        $region18: #{tpu_custom_call.1} parent=11 // pred_check_branch
          %251 = sbr.rel (%p249) target = $region20
        $region19: #{tpu_custom_call.1} parent=11 // pred_region
          %253 = vsyncadd [#allocation6], 0
          %s255 = sshll.u32 %s2, 4
          %s256 = int_to_ptr.hbm [resolvable:$true] %s255
          %s257 = sshll.u32 [#allocation7], 4
          %s258 = int_to_ptr.vmem [resolvable:$true] %s257
          %260 = dma.hbm_to_vmem [thread:$0]  %s256, 32, %s258, [#allocation6]
        $region20: #{tpu_custom_call.1} parent=11 // pred_fallthru
          _
        // Predicated region
        $region21: #{tpu_custom_call.1} parent=11 // pred_check
          %p261 = pneg %p112
        $region22: #{tpu_custom_call.1} parent=11 // pred_check_branch
          %263 = sbr.rel (%p261) target = $region24
        $region23: #{tpu_custom_call.1} parent=11 // pred_region
          %265 = vsyncadd [#allocation9], 0
          %s266 = sshll.u32 %s3, 4
          %s267 = int_to_ptr.hbm [resolvable:$true] %s266
          %s268 = sshll.u32 [#allocation8], 4
          %s269 = int_to_ptr.vmem [resolvable:$true] %s268
          %274 = dma.hbm_to_vmem [thread:$0]  %s267, 6144, %s269, [#allocation9], 256, 256, 16
        $region24: #{tpu_custom_call.1} parent=11 // pred_fallthru
          _
        // Predicated region
        $region25: #{tpu_custom_call.1} parent=11 // pred_check
          %p275 = pneg %p133
        $region26: #{tpu_custom_call.1} parent=11 // pred_check_branch
          %277 = sbr.rel (%p275) target = $region28
        $region27: #{tpu_custom_call.1} parent=11 // pred_region
          %279 = vsyncadd [#allocation9], 0
          %s281 = sshll.u32 %s4, 4
          %s282 = int_to_ptr.hbm [resolvable:$true] %s281
          %s283 = sshll.u32 [#allocation10], 4
          %s284 = int_to_ptr.vmem [resolvable:$true] %s283
          %286 = dma.hbm_to_vmem [thread:$0]  %s282, 64, %s284, [#allocation9]
        $region28: #{tpu_custom_call.1} parent=11 // pred_fallthru
          _
        // Predicated region
        $region29: #{tpu_custom_call.1} parent=11 // pred_check
          %p287 = pneg %p154
        $region30: #{tpu_custom_call.1} parent=11 // pred_check_branch
          %289 = sbr.rel (%p287) target = $region32
        $region31: #{tpu_custom_call.1} parent=11 // pred_region
          _
        $region32: #{tpu_custom_call.1} parent=11 // pred_fallthru
          _
        // Predicated region
        $region33: #{tpu_custom_call.1} parent=11 // pred_check
          %p290 = pneg %p175
        $region34: #{tpu_custom_call.1} parent=11 // pred_check_branch
          %292 = sbr.rel (%p290) target = $region36
        $region35: #{tpu_custom_call.1} parent=11 // pred_region
          %294 = vsyncadd [#allocation12], 0
          %s296 = sshll.u32 %s6, 4
          %s297 = int_to_ptr.hbm [resolvable:$true] %s296
          %s298 = sshll.u32 [#allocation11], 4
          %s299 = int_to_ptr.vmem [resolvable:$true] %s298
          %301 = dma.hbm_to_vmem [thread:$0]  %s297, 64, %s299, [#allocation12]
        $region36: #{tpu_custom_call.1} parent=11 // pred_fallthru
          _
        // Predicated region
        $region37: #{tpu_custom_call.1} parent=11 // pred_check
          %p302 = pneg %p196
        $region38: #{tpu_custom_call.1} parent=11 // pred_check_branch
          %304 = sbr.rel (%p302) target = $region40
        $region39: #{tpu_custom_call.1} parent=11 // pred_region
          %306 = vsyncadd [#allocation12], 0
          %s307 = sshll.u32 %s7, 4
          %s308 = int_to_ptr.hbm [resolvable:$true] %s307
          %s309 = sshll.u32 [#allocation13], 4
          %s310 = int_to_ptr.vmem [resolvable:$true] %s309
          %315 = dma.hbm_to_vmem [thread:$0]  %s308, 4096, %s310, [#allocation12], 512, 512, 32
        $region40: #{tpu_custom_call.1} parent=11 // pred_fallthru
          _
      $region12: #{tpu_custom_call.1} parent=5 // pred_fallthru
        _
      %p316 = scmp.lt.s32.totalorder %s23, 2
      // Predicated region
      $region41: #{tpu_custom_call.1} parent=5 // pred_check
        %p317 = pneg %p316
      $region42: #{tpu_custom_call.1} parent=5 // pred_check_branch
        %319 = sbr.rel (%p317) target = $region44
      $region43: #{tpu_custom_call.1} parent=5 // pred_region
        // Predicated region
        $region45: #{tpu_custom_call.1} parent=43 // pred_check
          %p320 = pneg %p43
        $region46: #{tpu_custom_call.1} parent=43 // pred_check_branch
          %322 = sbr.rel (%p320) target = $region48
        $region47: #{tpu_custom_call.1} parent=43 // pred_region
          %s323 = sand.u32 %s33, 1
          %s324 = scalar_lea.sflag [#allocation3], %s323
          %s325 = sand.u32 %s33, 1
          %s326 = smul.addr %s325, 512
          %s327 = scalar_lea.vmem [#allocation2], %s326
          %s328 = smul.u32 4, %s23
          %330 = vsyncadd %s324, 0
          %s331 = smul.addr %s328, 16
          %s332 = smul.addr %s331, 8
          %s333 = scalar_lea.hbm %s0, %s332
          %s334 = sshll.u32 %s333, 4
          %s335 = int_to_ptr.hbm [resolvable:$true] %s334
          %s336 = sshll.u32 %s327, 4
          %s337 = int_to_ptr.vmem [resolvable:$true] %s336
          %342 = dma.hbm_to_vmem [thread:$0]  %s335, 8192, %s337, %s324, 256, 256, 16
        $region48: #{tpu_custom_call.1} parent=43 // pred_fallthru
          _
      $region44: #{tpu_custom_call.1} parent=5 // pred_fallthru
        _
      %p343 = scmp.le.s32.totalorder 1, %s23
      %p344 = scmp.lt.s32.totalorder %s23, 3
      %p345 = pnand %p343, %p344
      %p346 = pneg %p345
      // Predicated region
      $region49: #{tpu_custom_call.1} parent=5 // pred_check
        _
      $region50: #{tpu_custom_call.1} parent=5 // pred_check_branch
        %348 = sbr.rel (%p345) target = $region52
      $region51: #{tpu_custom_call.1} parent=5 // pred_region
        %s349 = ssub.s32 %s23, 1
        %s350 = sand.u32 %s36, 1
        %s351 = scalar_lea.sflag [#allocation3], %s350
        %s352 = sand.u32 %s36, 1
        %s353 = smul.addr %s352, 512
        %s354 = scalar_lea.vmem [#allocation2], %s353
        // Predicated region
        $region53: #{tpu_custom_call.1} parent=51 // pred_check
          %p355 = pneg %p49
        $region54: #{tpu_custom_call.1} parent=51 // pred_check_branch
          %357 = sbr.rel (%p355) target = $region56
        $region55: #{tpu_custom_call.1} parent=51 // pred_region
          %359 = dma.done %s351, 8192
        $region56: #{tpu_custom_call.1} parent=51 // pred_fallthru
          _
        // Predicated region
        $region57: #{tpu_custom_call.1} parent=51 // pred_check
          %p360 = pneg %p70
        $region58: #{tpu_custom_call.1} parent=51 // pred_check_branch
          %362 = sbr.rel (%p360) target = $region60
        $region59: #{tpu_custom_call.1} parent=51 // pred_region
          %364 = dma.done [#allocation6], 32
        $region60: #{tpu_custom_call.1} parent=51 // pred_fallthru
          _
        // Predicated region
        $region61: #{tpu_custom_call.1} parent=51 // pred_check
          %p365 = pneg %p91
        $region62: #{tpu_custom_call.1} parent=51 // pred_check_branch
          %367 = sbr.rel (%p365) target = $region64
        $region63: #{tpu_custom_call.1} parent=51 // pred_region
          %369 = dma.done [#allocation6], 32
        $region64: #{tpu_custom_call.1} parent=51 // pred_fallthru
          _
        // Predicated region
        $region65: #{tpu_custom_call.1} parent=51 // pred_check
          %p370 = pneg %p112
        $region66: #{tpu_custom_call.1} parent=51 // pred_check_branch
          %372 = sbr.rel (%p370) target = $region68
        $region67: #{tpu_custom_call.1} parent=51 // pred_region
          %374 = dma.done [#allocation9], 6144
        $region68: #{tpu_custom_call.1} parent=51 // pred_fallthru
          _
        // Predicated region
        $region69: #{tpu_custom_call.1} parent=51 // pred_check
          %p375 = pneg %p133
        $region70: #{tpu_custom_call.1} parent=51 // pred_check_branch
          %377 = sbr.rel (%p375) target = $region72
        $region71: #{tpu_custom_call.1} parent=51 // pred_region
          %379 = dma.done [#allocation9], 64
        $region72: #{tpu_custom_call.1} parent=51 // pred_fallthru
          _
        // Predicated region
        $region73: #{tpu_custom_call.1} parent=51 // pred_check
          %p380 = pneg %p175
        $region74: #{tpu_custom_call.1} parent=51 // pred_check_branch
          %382 = sbr.rel (%p380) target = $region76
        $region75: #{tpu_custom_call.1} parent=51 // pred_region
          %384 = dma.done [#allocation12], 64
        $region76: #{tpu_custom_call.1} parent=51 // pred_fallthru
          _
        // Predicated region
        $region77: #{tpu_custom_call.1} parent=51 // pred_check
          %p385 = pneg %p196
        $region78: #{tpu_custom_call.1} parent=51 // pred_check_branch
          %387 = sbr.rel (%p385) target = $region80
        $region79: #{tpu_custom_call.1} parent=51 // pred_region
          %389 = dma.done [#allocation12], 4096
        $region80: #{tpu_custom_call.1} parent=51 // pred_fallthru
          _
        %s390 = sand.u32 %s36, 1
        %s391 = scalar_lea.sflag [#allocation3], %s390
        %s392 = sand.u32 %s36, 1
        %s393 = smul.addr %s392, 512
        %s394 = scalar_lea.vmem [#allocation2], %s393
        %p395 = pneg %p49
        %p396 = pneg %p46
        %p397 = pneg %p70
        %p398 = pneg %p67
        %p399 = pneg %p91
        %p400 = pneg %p88
        %p401 = pneg %p112
        %p402 = pneg %p109
        %p403 = pneg %p133
        %p404 = pneg %p130
        %p405 = pneg %p154
        %p406 = pneg %p151
        %p407 = pneg %p175
        %p408 = pneg %p172
        %p409 = pneg %p196
        %p410 = pneg %p193
        %p411 = pneg %p222
        %p412 = pneg %p219
        %s413 = sand.u32 %s209, 1
        %s414 = scalar_lea.sflag [#allocation4], %s413
        %s415 = sand.u32 %s209, 1
        %s416 = smul.addr %s415, 1024
        %s417 = scalar_lea.vmem [#allocation14], %s416
        %s418 = smul.u32 4, %s28
        %s419 = smul.u32 4, %s28
        %v421 = vld [vmem:[%s354] sm:$0xff]
        %v422 = vld [vmem:[%s354 + $0x8] sm:$0xff]
        %v423 = vld [vmem:[%s354 + $0x10] sm:$0xff]
        %v424 = vld [vmem:[%s354 + $0x18] sm:$0xff]
        %v425 = vld [vmem:[%s354 + $0x20] sm:$0xff]
        %v426 = vld [vmem:[%s354 + $0x28] sm:$0xff]
        %v427 = vld [vmem:[%s354 + $0x30] sm:$0xff]
        %v428 = vld [vmem:[%s354 + $0x38] sm:$0xff]
        %v429 = vld [vmem:[%s354 + $0x40] sm:$0xff]
        %v430 = vld [vmem:[%s354 + $0x48] sm:$0xff]
        %v431 = vld [vmem:[%s354 + $0x50] sm:$0xff]
        %v432 = vld [vmem:[%s354 + $0x58] sm:$0xff]
        %v433 = vld [vmem:[%s354 + $0x60] sm:$0xff]
        %v434 = vld [vmem:[%s354 + $0x68] sm:$0xff]
        %v435 = vld [vmem:[%s354 + $0x70] sm:$0xff]
        %v436 = vld [vmem:[%s354 + $0x78] sm:$0xff]
        %v437 = vld [vmem:[%s354 + $0x80] sm:$0xff]
        %v438 = vld [vmem:[%s354 + $0x88] sm:$0xff]
        %v439 = vld [vmem:[%s354 + $0x90] sm:$0xff]
        %v440 = vld [vmem:[%s354 + $0x98] sm:$0xff]
        %v441 = vld [vmem:[%s354 + $0xa0] sm:$0xff]
        %v442 = vld [vmem:[%s354 + $0xa8] sm:$0xff]
        %v443 = vld [vmem:[%s354 + $0xb0] sm:$0xff]
        %v444 = vld [vmem:[%s354 + $0xb8] sm:$0xff]
        %v445 = vld [vmem:[%s354 + $0xc0] sm:$0xff]
        %v446 = vld [vmem:[%s354 + $0xc8] sm:$0xff]
        %v447 = vld [vmem:[%s354 + $0xd0] sm:$0xff]
        %v448 = vld [vmem:[%s354 + $0xd8] sm:$0xff]
        %v449 = vld [vmem:[%s354 + $0xe0] sm:$0xff]
        %v450 = vld [vmem:[%s354 + $0xe8] sm:$0xff]
        %v451 = vld [vmem:[%s354 + $0xf0] sm:$0xff]
        %v452 = vld [vmem:[%s354 + $0xf8] sm:$0xff]
        %v453 = vld [vmem:[%s354 + $0x100] sm:$0xff]
        %v454 = vld [vmem:[%s354 + $0x108] sm:$0xff]
        %v455 = vld [vmem:[%s354 + $0x110] sm:$0xff]
        %v456 = vld [vmem:[%s354 + $0x118] sm:$0xff]
        %v457 = vld [vmem:[%s354 + $0x120] sm:$0xff]
        %v458 = vld [vmem:[%s354 + $0x128] sm:$0xff]
        %v459 = vld [vmem:[%s354 + $0x130] sm:$0xff]
        %v460 = vld [vmem:[%s354 + $0x138] sm:$0xff]
        %v461 = vld [vmem:[%s354 + $0x140] sm:$0xff]
        %v462 = vld [vmem:[%s354 + $0x148] sm:$0xff]
        %v463 = vld [vmem:[%s354 + $0x150] sm:$0xff]
        %v464 = vld [vmem:[%s354 + $0x158] sm:$0xff]
        %v465 = vld [vmem:[%s354 + $0x160] sm:$0xff]
        %v466 = vld [vmem:[%s354 + $0x168] sm:$0xff]
        %v467 = vld [vmem:[%s354 + $0x170] sm:$0xff]
        %v468 = vld [vmem:[%s354 + $0x178] sm:$0xff]
        %v469 = vld [vmem:[%s354 + $0x180] sm:$0xff]
        %v470 = vld [vmem:[%s354 + $0x188] sm:$0xff]
        %v471 = vld [vmem:[%s354 + $0x190] sm:$0xff]
        %v472 = vld [vmem:[%s354 + $0x198] sm:$0xff]
        %v473 = vld [vmem:[%s354 + $0x1a0] sm:$0xff]
        %v474 = vld [vmem:[%s354 + $0x1a8] sm:$0xff]
        %v475 = vld [vmem:[%s354 + $0x1b0] sm:$0xff]
        %v476 = vld [vmem:[%s354 + $0x1b8] sm:$0xff]
        %v477 = vld [vmem:[%s354 + $0x1c0] sm:$0xff]
        %v478 = vld [vmem:[%s354 + $0x1c8] sm:$0xff]
        %v479 = vld [vmem:[%s354 + $0x1d0] sm:$0xff]
        %v480 = vld [vmem:[%s354 + $0x1d8] sm:$0xff]
        %v481 = vld [vmem:[%s354 + $0x1e0] sm:$0xff]
        %v482 = vld [vmem:[%s354 + $0x1e8] sm:$0xff]
        %v483 = vld [vmem:[%s354 + $0x1f0] sm:$0xff]
        %v484 = vld [vmem:[%s354 + $0x1f8] sm:$0xff]
        %v485 = vld [vmem:[#allocation5] sm:$0x3]
        %v486 = vld [vmem:[#allocation7] sm:$0x3]
        %vm487 = vcmask 523264
        %v488 = vsel %vm487, %v422, 0.0
        %v489 = vadd.f32 %v421, %v488
        %490 = vadd.xlane.f32.xlu0 %v489
        %v491 = vpop.xlane.xlu0 %490
        %v492 = vsel %vm487, %v424, 0.0
        %v493 = vadd.f32 %v423, %v492
        %494 = vadd.xlane.f32.xlu0 %v493
        %v495 = vpop.xlane.xlu0 %494
        %v496 = vsel %vm487, %v426, 0.0
        %v497 = vadd.f32 %v425, %v496
        %498 = vadd.xlane.f32.xlu0 %v497
        %v499 = vpop.xlane.xlu0 %498
        %v500 = vsel %vm487, %v428, 0.0
        %v501 = vadd.f32 %v427, %v500
        %502 = vadd.xlane.f32.xlu0 %v501
        %v503 = vpop.xlane.xlu0 %502
        %v504 = vsel %vm487, %v430, 0.0
        %v505 = vadd.f32 %v429, %v504
        %506 = vadd.xlane.f32.xlu0 %v505
        %v507 = vpop.xlane.xlu0 %506
        %v508 = vsel %vm487, %v432, 0.0
        %v509 = vadd.f32 %v431, %v508
        %510 = vadd.xlane.f32.xlu0 %v509
        %v511 = vpop.xlane.xlu0 %510
        %v512 = vsel %vm487, %v434, 0.0
        %v513 = vadd.f32 %v433, %v512
        %514 = vadd.xlane.f32.xlu0 %v513
        %v515 = vpop.xlane.xlu0 %514
        %v516 = vsel %vm487, %v436, 0.0
        %v517 = vadd.f32 %v435, %v516
        %518 = vadd.xlane.f32.xlu0 %v517
        %v519 = vpop.xlane.xlu0 %518
        %v520 = vsel %vm487, %v438, 0.0
        %v521 = vadd.f32 %v437, %v520
        %522 = vadd.xlane.f32.xlu0 %v521
        %v523 = vpop.xlane.xlu0 %522
        %v524 = vsel %vm487, %v440, 0.0
        %v525 = vadd.f32 %v439, %v524
        %526 = vadd.xlane.f32.xlu0 %v525
        %v527 = vpop.xlane.xlu0 %526
        %v528 = vsel %vm487, %v442, 0.0
        %v529 = vadd.f32 %v441, %v528
        %530 = vadd.xlane.f32.xlu0 %v529
        %v531 = vpop.xlane.xlu0 %530
        %v532 = vsel %vm487, %v444, 0.0
        %v533 = vadd.f32 %v443, %v532
        %534 = vadd.xlane.f32.xlu0 %v533
        %v535 = vpop.xlane.xlu0 %534
        %v536 = vsel %vm487, %v446, 0.0
        %v537 = vadd.f32 %v445, %v536
        %538 = vadd.xlane.f32.xlu0 %v537
        %v539 = vpop.xlane.xlu0 %538
        %v540 = vsel %vm487, %v448, 0.0
        %v541 = vadd.f32 %v447, %v540
        %542 = vadd.xlane.f32.xlu0 %v541
        %v543 = vpop.xlane.xlu0 %542
        %v544 = vsel %vm487, %v450, 0.0
        %v545 = vadd.f32 %v449, %v544
        %546 = vadd.xlane.f32.xlu0 %v545
        %v547 = vpop.xlane.xlu0 %546
        %v548 = vsel %vm487, %v452, 0.0
        %v549 = vadd.f32 %v451, %v548
        %550 = vadd.xlane.f32.xlu0 %v549
        %v551 = vpop.xlane.xlu0 %550
        %v552 = vsel %vm487, %v454, 0.0
        %v553 = vadd.f32 %v453, %v552
        %554 = vadd.xlane.f32.xlu0 %v553
        %v555 = vpop.xlane.xlu0 %554
        %v556 = vsel %vm487, %v456, 0.0
        %v557 = vadd.f32 %v455, %v556
        %558 = vadd.xlane.f32.xlu0 %v557
        %v559 = vpop.xlane.xlu0 %558
        %v560 = vsel %vm487, %v458, 0.0
        %v561 = vadd.f32 %v457, %v560
        %562 = vadd.xlane.f32.xlu0 %v561
        %v563 = vpop.xlane.xlu0 %562
        %v564 = vsel %vm487, %v460, 0.0
        %v565 = vadd.f32 %v459, %v564
        %566 = vadd.xlane.f32.xlu0 %v565
        %v567 = vpop.xlane.xlu0 %566
        %v568 = vsel %vm487, %v462, 0.0
        %v569 = vadd.f32 %v461, %v568
        %570 = vadd.xlane.f32.xlu0 %v569
        %v571 = vpop.xlane.xlu0 %570
        %v572 = vsel %vm487, %v464, 0.0
        %v573 = vadd.f32 %v463, %v572
        %574 = vadd.xlane.f32.xlu0 %v573
        %v575 = vpop.xlane.xlu0 %574
        %v576 = vsel %vm487, %v466, 0.0
        %v577 = vadd.f32 %v465, %v576
        %578 = vadd.xlane.f32.xlu0 %v577
        %v579 = vpop.xlane.xlu0 %578
        %v580 = vsel %vm487, %v468, 0.0
        %v581 = vadd.f32 %v467, %v580
        %582 = vadd.xlane.f32.xlu0 %v581
        %v583 = vpop.xlane.xlu0 %582
        %v584 = vsel %vm487, %v470, 0.0
        %v585 = vadd.f32 %v469, %v584
        %586 = vadd.xlane.f32.xlu0 %v585
        %v587 = vpop.xlane.xlu0 %586
        %v588 = vsel %vm487, %v472, 0.0
        %v589 = vadd.f32 %v471, %v588
        %590 = vadd.xlane.f32.xlu0 %v589
        %v591 = vpop.xlane.xlu0 %590
        %v592 = vsel %vm487, %v474, 0.0
        %v593 = vadd.f32 %v473, %v592
        %594 = vadd.xlane.f32.xlu0 %v593
        %v595 = vpop.xlane.xlu0 %594
        %v596 = vsel %vm487, %v476, 0.0
        %v597 = vadd.f32 %v475, %v596
        %598 = vadd.xlane.f32.xlu0 %v597
        %v599 = vpop.xlane.xlu0 %598
        %v600 = vsel %vm487, %v478, 0.0
        %v601 = vadd.f32 %v477, %v600
        %602 = vadd.xlane.f32.xlu0 %v601
        %v603 = vpop.xlane.xlu0 %602
        %v604 = vsel %vm487, %v480, 0.0
        %v605 = vadd.f32 %v479, %v604
        %606 = vadd.xlane.f32.xlu0 %v605
        %v607 = vpop.xlane.xlu0 %606
        %v608 = vsel %vm487, %v482, 0.0
        %v609 = vadd.f32 %v481, %v608
        %610 = vadd.xlane.f32.xlu0 %v609
        %v611 = vpop.xlane.xlu0 %610
        %v612 = vsel %vm487, %v484, 0.0
        %v613 = vadd.f32 %v483, %v612
        %614 = vadd.xlane.f32.xlu0 %v613
        %v615 = vpop.xlane.xlu0 %614
        %v616 = vrcp.pop 192.0
        %v617 = vmul.f32 192.0, %v616
        %v618 = vsub.f32 1.0, %v617
        %v619 = vmul.f32 %v616, %v618
        %v620 = vadd.f32 %v616, %v619
        %vm621 = vweird.f32 %v616
        %v622 = vsel %vm621, %v616, %v620
        %v623 = vmul.f32 %v491, %v622
        %v624 = vmul.f32 %v495, %v622
        %v625 = vmul.f32 %v499, %v622
        %v626 = vmul.f32 %v503, %v622
        %v627 = vmul.f32 %v507, %v622
        %v628 = vmul.f32 %v511, %v622
        %v629 = vmul.f32 %v515, %v622
        %v630 = vmul.f32 %v519, %v622
        %v631 = vmul.f32 %v523, %v622
        %v632 = vmul.f32 %v527, %v622
        %v633 = vmul.f32 %v531, %v622
        %v634 = vmul.f32 %v535, %v622
        %v635 = vmul.f32 %v539, %v622
        %v636 = vmul.f32 %v543, %v622
        %v637 = vmul.f32 %v547, %v622
        %v638 = vmul.f32 %v551, %v622
        %v639 = vmul.f32 %v555, %v622
        %v640 = vmul.f32 %v559, %v622
        %v641 = vmul.f32 %v563, %v622
        %v642 = vmul.f32 %v567, %v622
        %v643 = vmul.f32 %v571, %v622
        %v644 = vmul.f32 %v575, %v622
        %v645 = vmul.f32 %v579, %v622
        %v646 = vmul.f32 %v583, %v622
        %v647 = vmul.f32 %v587, %v622
        %v648 = vmul.f32 %v591, %v622
        %v649 = vmul.f32 %v595, %v622
        %v650 = vmul.f32 %v599, %v622
        %v651 = vmul.f32 %v603, %v622
        %v652 = vmul.f32 %v607, %v622
        %v653 = vmul.f32 %v611, %v622
        %v654 = vmul.f32 %v615, %v622
        %v655 = vsub.f32 %v421, %v623
        %v656 = vsub.f32 %v422, %v623
        %v657 = vsub.f32 %v423, %v624
        %v658 = vsub.f32 %v424, %v624
        %v659 = vsub.f32 %v425, %v625
        %v660 = vsub.f32 %v426, %v625
        %v661 = vsub.f32 %v427, %v626
        %v662 = vsub.f32 %v428, %v626
        %v663 = vsub.f32 %v429, %v627
        %v664 = vsub.f32 %v430, %v627
        %v665 = vsub.f32 %v431, %v628
        %v666 = vsub.f32 %v432, %v628
        %v667 = vsub.f32 %v433, %v629
        %v668 = vsub.f32 %v434, %v629
        %v669 = vsub.f32 %v435, %v630
        %v670 = vsub.f32 %v436, %v630
        %v671 = vsub.f32 %v437, %v631
        %v672 = vsub.f32 %v438, %v631
        %v673 = vsub.f32 %v439, %v632
        %v674 = vsub.f32 %v440, %v632
        %v675 = vsub.f32 %v441, %v633
        %v676 = vsub.f32 %v442, %v633
        %v677 = vsub.f32 %v443, %v634
        %v678 = vsub.f32 %v444, %v634
        %v679 = vsub.f32 %v445, %v635
        %v680 = vsub.f32 %v446, %v635
        %v681 = vsub.f32 %v447, %v636
        %v682 = vsub.f32 %v448, %v636
        %v683 = vsub.f32 %v449, %v637
        %v684 = vsub.f32 %v450, %v637
        %v685 = vsub.f32 %v451, %v638
        %v686 = vsub.f32 %v452, %v638
        %v687 = vsub.f32 %v453, %v639
        %v688 = vsub.f32 %v454, %v639
        %v689 = vsub.f32 %v455, %v640
        %v690 = vsub.f32 %v456, %v640
        %v691 = vsub.f32 %v457, %v641
        %v692 = vsub.f32 %v458, %v641
        %v693 = vsub.f32 %v459, %v642
        %v694 = vsub.f32 %v460, %v642
        %v695 = vsub.f32 %v461, %v643
        %v696 = vsub.f32 %v462, %v643
        %v697 = vsub.f32 %v463, %v644
        %v698 = vsub.f32 %v464, %v644
        %v699 = vsub.f32 %v465, %v645
        %v700 = vsub.f32 %v466, %v645
        %v701 = vsub.f32 %v467, %v646
        %v702 = vsub.f32 %v468, %v646
        %v703 = vsub.f32 %v469, %v647
        %v704 = vsub.f32 %v470, %v647
        %v705 = vsub.f32 %v471, %v648
        %v706 = vsub.f32 %v472, %v648
        %v707 = vsub.f32 %v473, %v649
        %v708 = vsub.f32 %v474, %v649
        %v709 = vsub.f32 %v475, %v650
        %v710 = vsub.f32 %v476, %v650
        %v711 = vsub.f32 %v477, %v651
        %v712 = vsub.f32 %v478, %v651
        %v713 = vsub.f32 %v479, %v652
        %v714 = vsub.f32 %v480, %v652
        %v715 = vsub.f32 %v481, %v653
        %v716 = vsub.f32 %v482, %v653
        %v717 = vsub.f32 %v483, %v654
        %v718 = vsub.f32 %v484, %v654
        %v719 = vmul.f32 %v655, %v655
        %v720 = vmul.f32 %v656, %v656
        %v721 = vmul.f32 %v657, %v657
        %v722 = vmul.f32 %v658, %v658
        %v723 = vmul.f32 %v659, %v659
        %v724 = vmul.f32 %v660, %v660
        %v725 = vmul.f32 %v661, %v661
        %v726 = vmul.f32 %v662, %v662
        %v727 = vmul.f32 %v663, %v663
        %v728 = vmul.f32 %v664, %v664
        %v729 = vmul.f32 %v665, %v665
        %v730 = vmul.f32 %v666, %v666
        %v731 = vmul.f32 %v667, %v667
        %v732 = vmul.f32 %v668, %v668
        %v733 = vmul.f32 %v669, %v669
        %v734 = vmul.f32 %v670, %v670
        %v735 = vmul.f32 %v671, %v671
        %v736 = vmul.f32 %v672, %v672
        %v737 = vmul.f32 %v673, %v673
        %v738 = vmul.f32 %v674, %v674
        %v739 = vmul.f32 %v675, %v675
        %v740 = vmul.f32 %v676, %v676
        %v741 = vmul.f32 %v677, %v677
        %v742 = vmul.f32 %v678, %v678
        %v743 = vmul.f32 %v679, %v679
        %v744 = vmul.f32 %v680, %v680
        %v745 = vmul.f32 %v681, %v681
        %v746 = vmul.f32 %v682, %v682
        %v747 = vmul.f32 %v683, %v683
        %v748 = vmul.f32 %v684, %v684
        %v749 = vmul.f32 %v685, %v685
        %v750 = vmul.f32 %v686, %v686
        %v751 = vmul.f32 %v687, %v687
        %v752 = vmul.f32 %v688, %v688
        %v753 = vmul.f32 %v689, %v689
        %v754 = vmul.f32 %v690, %v690
        %v755 = vmul.f32 %v691, %v691
        %v756 = vmul.f32 %v692, %v692
        %v757 = vmul.f32 %v693, %v693
        %v758 = vmul.f32 %v694, %v694
        %v759 = vmul.f32 %v695, %v695
        %v760 = vmul.f32 %v696, %v696
        %v761 = vmul.f32 %v697, %v697
        %v762 = vmul.f32 %v698, %v698
        %v763 = vmul.f32 %v699, %v699
        %v764 = vmul.f32 %v700, %v700
        %v765 = vmul.f32 %v701, %v701
        %v766 = vmul.f32 %v702, %v702
        %v767 = vmul.f32 %v703, %v703
        %v768 = vmul.f32 %v704, %v704
        %v769 = vmul.f32 %v705, %v705
        %v770 = vmul.f32 %v706, %v706
        %v771 = vmul.f32 %v707, %v707
        %v772 = vmul.f32 %v708, %v708
        %v773 = vmul.f32 %v709, %v709
        %v774 = vmul.f32 %v710, %v710
        %v775 = vmul.f32 %v711, %v711
        %v776 = vmul.f32 %v712, %v712
        %v777 = vmul.f32 %v713, %v713
        %v778 = vmul.f32 %v714, %v714
        %v779 = vmul.f32 %v715, %v715
        %v780 = vmul.f32 %v716, %v716
        %v781 = vmul.f32 %v717, %v717
        %v782 = vmul.f32 %v718, %v718
        %v783 = vsel %vm487, %v720, 0.0
        %v784 = vadd.f32 %v719, %v783
        %785 = vadd.xlane.f32.xlu0 %v784
        %v786 = vpop.xlane.xlu0 %785
        %v787 = vsel %vm487, %v722, 0.0
        %v788 = vadd.f32 %v721, %v787
        %789 = vadd.xlane.f32.xlu0 %v788
        %v790 = vpop.xlane.xlu0 %789
        %v791 = vsel %vm487, %v724, 0.0
        %v792 = vadd.f32 %v723, %v791
        %793 = vadd.xlane.f32.xlu0 %v792
        %v794 = vpop.xlane.xlu0 %793
        %v795 = vsel %vm487, %v726, 0.0
        %v796 = vadd.f32 %v725, %v795
        %797 = vadd.xlane.f32.xlu0 %v796
        %v798 = vpop.xlane.xlu0 %797
        %v799 = vsel %vm487, %v728, 0.0
        %v800 = vadd.f32 %v727, %v799
        %801 = vadd.xlane.f32.xlu0 %v800
        %v802 = vpop.xlane.xlu0 %801
        %v803 = vsel %vm487, %v730, 0.0
        %v804 = vadd.f32 %v729, %v803
        %805 = vadd.xlane.f32.xlu0 %v804
        %v806 = vpop.xlane.xlu0 %805
        %v807 = vsel %vm487, %v732, 0.0
        %v808 = vadd.f32 %v731, %v807
        %809 = vadd.xlane.f32.xlu0 %v808
        %v810 = vpop.xlane.xlu0 %809
        %v811 = vsel %vm487, %v734, 0.0
        %v812 = vadd.f32 %v733, %v811
        %813 = vadd.xlane.f32.xlu0 %v812
        %v814 = vpop.xlane.xlu0 %813
        %v815 = vsel %vm487, %v736, 0.0
        %v816 = vadd.f32 %v735, %v815
        %817 = vadd.xlane.f32.xlu0 %v816
        %v818 = vpop.xlane.xlu0 %817
        %v819 = vsel %vm487, %v738, 0.0
        %v820 = vadd.f32 %v737, %v819
        %821 = vadd.xlane.f32.xlu0 %v820
        %v822 = vpop.xlane.xlu0 %821
        %v823 = vsel %vm487, %v740, 0.0
        %v824 = vadd.f32 %v739, %v823
        %825 = vadd.xlane.f32.xlu0 %v824
        %v826 = vpop.xlane.xlu0 %825
        %v827 = vsel %vm487, %v742, 0.0
        %v828 = vadd.f32 %v741, %v827
        %829 = vadd.xlane.f32.xlu0 %v828
        %v830 = vpop.xlane.xlu0 %829
        %v831 = vsel %vm487, %v744, 0.0
        %v832 = vadd.f32 %v743, %v831
        %833 = vadd.xlane.f32.xlu0 %v832
        %v834 = vpop.xlane.xlu0 %833
        %v835 = vsel %vm487, %v746, 0.0
        %v836 = vadd.f32 %v745, %v835
        %837 = vadd.xlane.f32.xlu0 %v836
        %v838 = vpop.xlane.xlu0 %837
        %v839 = vsel %vm487, %v748, 0.0
        %v840 = vadd.f32 %v747, %v839
        %841 = vadd.xlane.f32.xlu0 %v840
        %v842 = vpop.xlane.xlu0 %841
        %v843 = vsel %vm487, %v750, 0.0
        %v844 = vadd.f32 %v749, %v843
        %845 = vadd.xlane.f32.xlu0 %v844
        %v846 = vpop.xlane.xlu0 %845
        %v847 = vsel %vm487, %v752, 0.0
        %v848 = vadd.f32 %v751, %v847
        %849 = vadd.xlane.f32.xlu0 %v848
        %v850 = vpop.xlane.xlu0 %849
        %v851 = vsel %vm487, %v754, 0.0
        %v852 = vadd.f32 %v753, %v851
        %853 = vadd.xlane.f32.xlu0 %v852
        %v854 = vpop.xlane.xlu0 %853
        %v855 = vsel %vm487, %v756, 0.0
        %v856 = vadd.f32 %v755, %v855
        %857 = vadd.xlane.f32.xlu0 %v856
        %v858 = vpop.xlane.xlu0 %857
        %v859 = vsel %vm487, %v758, 0.0
        %v860 = vadd.f32 %v757, %v859
        %861 = vadd.xlane.f32.xlu0 %v860
        %v862 = vpop.xlane.xlu0 %861
        %v863 = vsel %vm487, %v760, 0.0
        %v864 = vadd.f32 %v759, %v863
        %865 = vadd.xlane.f32.xlu0 %v864
        %v866 = vpop.xlane.xlu0 %865
        %v867 = vsel %vm487, %v762, 0.0
        %v868 = vadd.f32 %v761, %v867
        %869 = vadd.xlane.f32.xlu0 %v868
        %v870 = vpop.xlane.xlu0 %869
        %v871 = vsel %vm487, %v764, 0.0
        %v872 = vadd.f32 %v763, %v871
        %873 = vadd.xlane.f32.xlu0 %v872
        %v874 = vpop.xlane.xlu0 %873
        %v875 = vsel %vm487, %v766, 0.0
        %v876 = vadd.f32 %v765, %v875
        %877 = vadd.xlane.f32.xlu0 %v876
        %v878 = vpop.xlane.xlu0 %877
        %v879 = vsel %vm487, %v768, 0.0
        %v880 = vadd.f32 %v767, %v879
        %881 = vadd.xlane.f32.xlu0 %v880
        %v882 = vpop.xlane.xlu0 %881
        %v883 = vsel %vm487, %v770, 0.0
        %v884 = vadd.f32 %v769, %v883
        %885 = vadd.xlane.f32.xlu0 %v884
        %v886 = vpop.xlane.xlu0 %885
        %v887 = vsel %vm487, %v772, 0.0
        %v888 = vadd.f32 %v771, %v887
        %889 = vadd.xlane.f32.xlu0 %v888
        %v890 = vpop.xlane.xlu0 %889
        %v891 = vsel %vm487, %v774, 0.0
        %v892 = vadd.f32 %v773, %v891
        %893 = vadd.xlane.f32.xlu0 %v892
        %v894 = vpop.xlane.xlu0 %893
        %v895 = vsel %vm487, %v776, 0.0
        %v896 = vadd.f32 %v775, %v895
        %897 = vadd.xlane.f32.xlu0 %v896
        %v898 = vpop.xlane.xlu0 %897
        %v899 = vsel %vm487, %v778, 0.0
        %v900 = vadd.f32 %v777, %v899
        %901 = vadd.xlane.f32.xlu0 %v900
        %v902 = vpop.xlane.xlu0 %901
        %v903 = vsel %vm487, %v780, 0.0
        %v904 = vadd.f32 %v779, %v903
        %905 = vadd.xlane.f32.xlu0 %v904
        %v906 = vpop.xlane.xlu0 %905
        %v907 = vsel %vm487, %v782, 0.0
        %v908 = vadd.f32 %v781, %v907
        %909 = vadd.xlane.f32.xlu0 %v908
        %v910 = vpop.xlane.xlu0 %909
        %v911 = vmul.f32 %v786, %v622
        %v912 = vmul.f32 %v790, %v622
        %v913 = vmul.f32 %v794, %v622
        %v914 = vmul.f32 %v798, %v622
        %v915 = vmul.f32 %v802, %v622
        %v916 = vmul.f32 %v806, %v622
        %v917 = vmul.f32 %v810, %v622
        %v918 = vmul.f32 %v814, %v622
        %v919 = vmul.f32 %v818, %v622
        %v920 = vmul.f32 %v822, %v622
        %v921 = vmul.f32 %v826, %v622
        %v922 = vmul.f32 %v830, %v622
        %v923 = vmul.f32 %v834, %v622
        %v924 = vmul.f32 %v838, %v622
        %v925 = vmul.f32 %v842, %v622
        %v926 = vmul.f32 %v846, %v622
        %v927 = vmul.f32 %v850, %v622
        %v928 = vmul.f32 %v854, %v622
        %v929 = vmul.f32 %v858, %v622
        %v930 = vmul.f32 %v862, %v622
        %v931 = vmul.f32 %v866, %v622
        %v932 = vmul.f32 %v870, %v622
        %v933 = vmul.f32 %v874, %v622
        %v934 = vmul.f32 %v878, %v622
        %v935 = vmul.f32 %v882, %v622
        %v936 = vmul.f32 %v886, %v622
        %v937 = vmul.f32 %v890, %v622
        %v938 = vmul.f32 %v894, %v622
        %v939 = vmul.f32 %v898, %v622
        %v940 = vmul.f32 %v902, %v622
        %v941 = vmul.f32 %v906, %v622
        %v942 = vmul.f32 %v910, %v622
        %v943 = vadd.f32 %v911, 1e-05
        %v944 = vadd.f32 %v912, 1e-05
        %v945 = vadd.f32 %v913, 1e-05
        %v946 = vadd.f32 %v914, 1e-05
        %v947 = vadd.f32 %v915, 1e-05
        %v948 = vadd.f32 %v916, 1e-05
        %v949 = vadd.f32 %v917, 1e-05
        %v950 = vadd.f32 %v918, 1e-05
        %v951 = vadd.f32 %v919, 1e-05
        %v952 = vadd.f32 %v920, 1e-05
        %v953 = vadd.f32 %v921, 1e-05
        %v954 = vadd.f32 %v922, 1e-05
        %v955 = vadd.f32 %v923, 1e-05
        %v956 = vadd.f32 %v924, 1e-05
        %v957 = vadd.f32 %v925, 1e-05
        %v958 = vadd.f32 %v926, 1e-05
        %v959 = vadd.f32 %v927, 1e-05
        %v960 = vadd.f32 %v928, 1e-05
        %v961 = vadd.f32 %v929, 1e-05
        %v962 = vadd.f32 %v930, 1e-05
        %v963 = vadd.f32 %v931, 1e-05
        %v964 = vadd.f32 %v932, 1e-05
        %v965 = vadd.f32 %v933, 1e-05
        %v966 = vadd.f32 %v934, 1e-05
        %v967 = vadd.f32 %v935, 1e-05
        %v968 = vadd.f32 %v936, 1e-05
        %v969 = vadd.f32 %v937, 1e-05
        %v970 = vadd.f32 %v938, 1e-05
        %v971 = vadd.f32 %v939, 1e-05
        %v972 = vadd.f32 %v940, 1e-05
        %v973 = vadd.f32 %v941, 1e-05
        %v974 = vadd.f32 %v942, 1e-05
        %v975 = vrsqrt.pop %v943
        %v976 = vmul.f32 %v975, %v943
        %v977 = vmul.f32 %v976, %v975
        %v978 = vmul.f32 0.5, %v977
        %v979 = vsub.f32 1.5, %v978
        %v980 = vmul.f32 %v975, %v979
        %vm981 = vweird.f32 %v943
        %vm982 = vweird.f32 %v975
        %vm983 = vmor %vm981, %vm982
        %v984 = vsel %vm983, %v975, %v980
        %v985 = vrsqrt.pop %v944
        %v986 = vmul.f32 %v985, %v944
        %v987 = vmul.f32 %v986, %v985
        %v988 = vmul.f32 0.5, %v987
        %v989 = vsub.f32 1.5, %v988
        %v990 = vmul.f32 %v985, %v989
        %vm991 = vweird.f32 %v944
        %vm992 = vweird.f32 %v985
        %vm993 = vmor %vm991, %vm992
        %v994 = vsel %vm993, %v985, %v990
        %v995 = vrsqrt.pop %v945
        %v996 = vmul.f32 %v995, %v945
        %v997 = vmul.f32 %v996, %v995
        %v998 = vmul.f32 0.5, %v997
        %v999 = vsub.f32 1.5, %v998
        %v1000 = vmul.f32 %v995, %v999
        %vm1001 = vweird.f32 %v945
        %vm1002 = vweird.f32 %v995
        %vm1003 = vmor %vm1001, %vm1002
        %v1004 = vsel %vm1003, %v995, %v1000
        %v1005 = vrsqrt.pop %v946
        %v1006 = vmul.f32 %v1005, %v946
        %v1007 = vmul.f32 %v1006, %v1005
        %v1008 = vmul.f32 0.5, %v1007
        %v1009 = vsub.f32 1.5, %v1008
        %v1010 = vmul.f32 %v1005, %v1009
        %vm1011 = vweird.f32 %v946
        %vm1012 = vweird.f32 %v1005
        %vm1013 = vmor %vm1011, %vm1012
        %v1014 = vsel %vm1013, %v1005, %v1010
        %v1015 = vrsqrt.pop %v947
        %v1016 = vmul.f32 %v1015, %v947
        %v1017 = vmul.f32 %v1016, %v1015
        %v1018 = vmul.f32 0.5, %v1017
        %v1019 = vsub.f32 1.5, %v1018
        %v1020 = vmul.f32 %v1015, %v1019
        %vm1021 = vweird.f32 %v947
        %vm1022 = vweird.f32 %v1015
        %vm1023 = vmor %vm1021, %vm1022
        %v1024 = vsel %vm1023, %v1015, %v1020
        %v1025 = vrsqrt.pop %v948
        %v1026 = vmul.f32 %v1025, %v948
        %v1027 = vmul.f32 %v1026, %v1025
        %v1028 = vmul.f32 0.5, %v1027
        %v1029 = vsub.f32 1.5, %v1028
        %v1030 = vmul.f32 %v1025, %v1029
        %vm1031 = vweird.f32 %v948
        %vm1032 = vweird.f32 %v1025
        %vm1033 = vmor %vm1031, %vm1032
        %v1034 = vsel %vm1033, %v1025, %v1030
        %v1035 = vrsqrt.pop %v949
        %v1036 = vmul.f32 %v1035, %v949
        %v1037 = vmul.f32 %v1036, %v1035
        %v1038 = vmul.f32 0.5, %v1037
        %v1039 = vsub.f32 1.5, %v1038
        %v1040 = vmul.f32 %v1035, %v1039
        %vm1041 = vweird.f32 %v949
        %vm1042 = vweird.f32 %v1035
        %vm1043 = vmor %vm1041, %vm1042
        %v1044 = vsel %vm1043, %v1035, %v1040
        %v1045 = vrsqrt.pop %v950
        %v1046 = vmul.f32 %v1045, %v950
        %v1047 = vmul.f32 %v1046, %v1045
        %v1048 = vmul.f32 0.5, %v1047
        %v1049 = vsub.f32 1.5, %v1048
        %v1050 = vmul.f32 %v1045, %v1049
        %vm1051 = vweird.f32 %v950
        %vm1052 = vweird.f32 %v1045
        %vm1053 = vmor %vm1051, %vm1052
        %v1054 = vsel %vm1053, %v1045, %v1050
        %v1055 = vrsqrt.pop %v951
        %v1056 = vmul.f32 %v1055, %v951
        %v1057 = vmul.f32 %v1056, %v1055
        %v1058 = vmul.f32 0.5, %v1057
        %v1059 = vsub.f32 1.5, %v1058
        %v1060 = vmul.f32 %v1055, %v1059
        %vm1061 = vweird.f32 %v951
        %vm1062 = vweird.f32 %v1055
        %vm1063 = vmor %vm1061, %vm1062
        %v1064 = vsel %vm1063, %v1055, %v1060
        %v1065 = vrsqrt.pop %v952
        %v1066 = vmul.f32 %v1065, %v952
        %v1067 = vmul.f32 %v1066, %v1065
        %v1068 = vmul.f32 0.5, %v1067
        %v1069 = vsub.f32 1.5, %v1068
        %v1070 = vmul.f32 %v1065, %v1069
        %vm1071 = vweird.f32 %v952
        %vm1072 = vweird.f32 %v1065
        %vm1073 = vmor %vm1071, %vm1072
        %v1074 = vsel %vm1073, %v1065, %v1070
        %v1075 = vrsqrt.pop %v953
        %v1076 = vmul.f32 %v1075, %v953
        %v1077 = vmul.f32 %v1076, %v1075
        %v1078 = vmul.f32 0.5, %v1077
        %v1079 = vsub.f32 1.5, %v1078
        %v1080 = vmul.f32 %v1075, %v1079
        %vm1081 = vweird.f32 %v953
        %vm1082 = vweird.f32 %v1075
        %vm1083 = vmor %vm1081, %vm1082
        %v1084 = vsel %vm1083, %v1075, %v1080
        %v1085 = vrsqrt.pop %v954
        %v1086 = vmul.f32 %v1085, %v954
        %v1087 = vmul.f32 %v1086, %v1085
        %v1088 = vmul.f32 0.5, %v1087
        %v1089 = vsub.f32 1.5, %v1088
        %v1090 = vmul.f32 %v1085, %v1089
        %vm1091 = vweird.f32 %v954
        %vm1092 = vweird.f32 %v1085
        %vm1093 = vmor %vm1091, %vm1092
        %v1094 = vsel %vm1093, %v1085, %v1090
        %v1095 = vrsqrt.pop %v955
        %v1096 = vmul.f32 %v1095, %v955
        %v1097 = vmul.f32 %v1096, %v1095
        %v1098 = vmul.f32 0.5, %v1097
        %v1099 = vsub.f32 1.5, %v1098
        %v1100 = vmul.f32 %v1095, %v1099
        %vm1101 = vweird.f32 %v955
        %vm1102 = vweird.f32 %v1095
        %vm1103 = vmor %vm1101, %vm1102
        %v1104 = vsel %vm1103, %v1095, %v1100
        %v1105 = vrsqrt.pop %v956
        %v1106 = vmul.f32 %v1105, %v956
        %v1107 = vmul.f32 %v1106, %v1105
        %v1108 = vmul.f32 0.5, %v1107
        %v1109 = vsub.f32 1.5, %v1108
        %v1110 = vmul.f32 %v1105, %v1109
        %vm1111 = vweird.f32 %v956
        %vm1112 = vweird.f32 %v1105
        %vm1113 = vmor %vm1111, %vm1112
        %v1114 = vsel %vm1113, %v1105, %v1110
        %v1115 = vrsqrt.pop %v957
        %v1116 = vmul.f32 %v1115, %v957
        %v1117 = vmul.f32 %v1116, %v1115
        %v1118 = vmul.f32 0.5, %v1117
        %v1119 = vsub.f32 1.5, %v1118
        %v1120 = vmul.f32 %v1115, %v1119
        %vm1121 = vweird.f32 %v957
        %vm1122 = vweird.f32 %v1115
        %vm1123 = vmor %vm1121, %vm1122
        %v1124 = vsel %vm1123, %v1115, %v1120
        %v1125 = vrsqrt.pop %v958
        %v1126 = vmul.f32 %v1125, %v958
        %v1127 = vmul.f32 %v1126, %v1125
        %v1128 = vmul.f32 0.5, %v1127
        %v1129 = vsub.f32 1.5, %v1128
        %v1130 = vmul.f32 %v1125, %v1129
        %vm1131 = vweird.f32 %v958
        %vm1132 = vweird.f32 %v1125
        %vm1133 = vmor %vm1131, %vm1132
        %v1134 = vsel %vm1133, %v1125, %v1130
        %v1135 = vrsqrt.pop %v959
        %v1136 = vmul.f32 %v1135, %v959
        %v1137 = vmul.f32 %v1136, %v1135
        %v1138 = vmul.f32 0.5, %v1137
        %v1139 = vsub.f32 1.5, %v1138
        %v1140 = vmul.f32 %v1135, %v1139
        %vm1141 = vweird.f32 %v959
        %vm1142 = vweird.f32 %v1135
        %vm1143 = vmor %vm1141, %vm1142
        %v1144 = vsel %vm1143, %v1135, %v1140
        %v1145 = vrsqrt.pop %v960
        %v1146 = vmul.f32 %v1145, %v960
        %v1147 = vmul.f32 %v1146, %v1145
        %v1148 = vmul.f32 0.5, %v1147
        %v1149 = vsub.f32 1.5, %v1148
        %v1150 = vmul.f32 %v1145, %v1149
        %vm1151 = vweird.f32 %v960
        %vm1152 = vweird.f32 %v1145
        %vm1153 = vmor %vm1151, %vm1152
        %v1154 = vsel %vm1153, %v1145, %v1150
        %v1155 = vrsqrt.pop %v961
        %v1156 = vmul.f32 %v1155, %v961
        %v1157 = vmul.f32 %v1156, %v1155
        %v1158 = vmul.f32 0.5, %v1157
        %v1159 = vsub.f32 1.5, %v1158
        %v1160 = vmul.f32 %v1155, %v1159
        %vm1161 = vweird.f32 %v961
        %vm1162 = vweird.f32 %v1155
        %vm1163 = vmor %vm1161, %vm1162
        %v1164 = vsel %vm1163, %v1155, %v1160
        %v1165 = vrsqrt.pop %v962
        %v1166 = vmul.f32 %v1165, %v962
        %v1167 = vmul.f32 %v1166, %v1165
        %v1168 = vmul.f32 0.5, %v1167
        %v1169 = vsub.f32 1.5, %v1168
        %v1170 = vmul.f32 %v1165, %v1169
        %vm1171 = vweird.f32 %v962
        %vm1172 = vweird.f32 %v1165
        %vm1173 = vmor %vm1171, %vm1172
        %v1174 = vsel %vm1173, %v1165, %v1170
        %v1175 = vrsqrt.pop %v963
        %v1176 = vmul.f32 %v1175, %v963
        %v1177 = vmul.f32 %v1176, %v1175
        %v1178 = vmul.f32 0.5, %v1177
        %v1179 = vsub.f32 1.5, %v1178
        %v1180 = vmul.f32 %v1175, %v1179
        %vm1181 = vweird.f32 %v963
        %vm1182 = vweird.f32 %v1175
        %vm1183 = vmor %vm1181, %vm1182
        %v1184 = vsel %vm1183, %v1175, %v1180
        %v1185 = vrsqrt.pop %v964
        %v1186 = vmul.f32 %v1185, %v964
        %v1187 = vmul.f32 %v1186, %v1185
        %v1188 = vmul.f32 0.5, %v1187
        %v1189 = vsub.f32 1.5, %v1188
        %v1190 = vmul.f32 %v1185, %v1189
        %vm1191 = vweird.f32 %v964
        %vm1192 = vweird.f32 %v1185
        %vm1193 = vmor %vm1191, %vm1192
        %v1194 = vsel %vm1193, %v1185, %v1190
        %v1195 = vrsqrt.pop %v965
        %v1196 = vmul.f32 %v1195, %v965
        %v1197 = vmul.f32 %v1196, %v1195
        %v1198 = vmul.f32 0.5, %v1197
        %v1199 = vsub.f32 1.5, %v1198
        %v1200 = vmul.f32 %v1195, %v1199
        %vm1201 = vweird.f32 %v965
        %vm1202 = vweird.f32 %v1195
        %vm1203 = vmor %vm1201, %vm1202
        %v1204 = vsel %vm1203, %v1195, %v1200
        %v1205 = vrsqrt.pop %v966
        %v1206 = vmul.f32 %v1205, %v966
        %v1207 = vmul.f32 %v1206, %v1205
        %v1208 = vmul.f32 0.5, %v1207
        %v1209 = vsub.f32 1.5, %v1208
        %v1210 = vmul.f32 %v1205, %v1209
        %vm1211 = vweird.f32 %v966
        %vm1212 = vweird.f32 %v1205
        %vm1213 = vmor %vm1211, %vm1212
        %v1214 = vsel %vm1213, %v1205, %v1210
        %v1215 = vrsqrt.pop %v967
        %v1216 = vmul.f32 %v1215, %v967
        %v1217 = vmul.f32 %v1216, %v1215
        %v1218 = vmul.f32 0.5, %v1217
        %v1219 = vsub.f32 1.5, %v1218
        %v1220 = vmul.f32 %v1215, %v1219
        %vm1221 = vweird.f32 %v967
        %vm1222 = vweird.f32 %v1215
        %vm1223 = vmor %vm1221, %vm1222
        %v1224 = vsel %vm1223, %v1215, %v1220
        %v1225 = vrsqrt.pop %v968
        %v1226 = vmul.f32 %v1225, %v968
        %v1227 = vmul.f32 %v1226, %v1225
        %v1228 = vmul.f32 0.5, %v1227
        %v1229 = vsub.f32 1.5, %v1228
        %v1230 = vmul.f32 %v1225, %v1229
        %vm1231 = vweird.f32 %v968
        %vm1232 = vweird.f32 %v1225
        %vm1233 = vmor %vm1231, %vm1232
        %v1234 = vsel %vm1233, %v1225, %v1230
        %v1235 = vrsqrt.pop %v969
        %v1236 = vmul.f32 %v1235, %v969
        %v1237 = vmul.f32 %v1236, %v1235
        %v1238 = vmul.f32 0.5, %v1237
        %v1239 = vsub.f32 1.5, %v1238
        %v1240 = vmul.f32 %v1235, %v1239
        %vm1241 = vweird.f32 %v969
        %vm1242 = vweird.f32 %v1235
        %vm1243 = vmor %vm1241, %vm1242
        %v1244 = vsel %vm1243, %v1235, %v1240
        %v1245 = vrsqrt.pop %v970
        %v1246 = vmul.f32 %v1245, %v970
        %v1247 = vmul.f32 %v1246, %v1245
        %v1248 = vmul.f32 0.5, %v1247
        %v1249 = vsub.f32 1.5, %v1248
        %v1250 = vmul.f32 %v1245, %v1249
        %vm1251 = vweird.f32 %v970
        %vm1252 = vweird.f32 %v1245
        %vm1253 = vmor %vm1251, %vm1252
        %v1254 = vsel %vm1253, %v1245, %v1250
        %v1255 = vrsqrt.pop %v971
        %v1256 = vmul.f32 %v1255, %v971
        %v1257 = vmul.f32 %v1256, %v1255
        %v1258 = vmul.f32 0.5, %v1257
        %v1259 = vsub.f32 1.5, %v1258
        %v1260 = vmul.f32 %v1255, %v1259
        %vm1261 = vweird.f32 %v971
        %vm1262 = vweird.f32 %v1255
        %vm1263 = vmor %vm1261, %vm1262
        %v1264 = vsel %vm1263, %v1255, %v1260
        %v1265 = vrsqrt.pop %v972
        %v1266 = vmul.f32 %v1265, %v972
        %v1267 = vmul.f32 %v1266, %v1265
        %v1268 = vmul.f32 0.5, %v1267
        %v1269 = vsub.f32 1.5, %v1268
        %v1270 = vmul.f32 %v1265, %v1269
        %vm1271 = vweird.f32 %v972
        %vm1272 = vweird.f32 %v1265
        %vm1273 = vmor %vm1271, %vm1272
        %v1274 = vsel %vm1273, %v1265, %v1270
        %v1275 = vrsqrt.pop %v973
        %v1276 = vmul.f32 %v1275, %v973
        %v1277 = vmul.f32 %v1276, %v1275
        %v1278 = vmul.f32 0.5, %v1277
        %v1279 = vsub.f32 1.5, %v1278
        %v1280 = vmul.f32 %v1275, %v1279
        %vm1281 = vweird.f32 %v973
        %vm1282 = vweird.f32 %v1275
        %vm1283 = vmor %vm1281, %vm1282
        %v1284 = vsel %vm1283, %v1275, %v1280
        %v1285 = vrsqrt.pop %v974
        %v1286 = vmul.f32 %v1285, %v974
        %v1287 = vmul.f32 %v1286, %v1285
        %v1288 = vmul.f32 0.5, %v1287
        %v1289 = vsub.f32 1.5, %v1288
        %v1290 = vmul.f32 %v1285, %v1289
        %vm1291 = vweird.f32 %v974
        %vm1292 = vweird.f32 %v1285
        %vm1293 = vmor %vm1291, %vm1292
        %v1294 = vsel %vm1293, %v1285, %v1290
        %v1295 = vmul.f32 %v655, %v984
        %v1296 = vmul.f32 %v656, %v984
        %v1297 = vmul.f32 %v657, %v994
        %v1298 = vmul.f32 %v658, %v994
        %v1299 = vmul.f32 %v659, %v1004
        %v1300 = vmul.f32 %v660, %v1004
        %v1301 = vmul.f32 %v661, %v1014
        %v1302 = vmul.f32 %v662, %v1014
        %v1303 = vmul.f32 %v663, %v1024
        %v1304 = vmul.f32 %v664, %v1024
        %v1305 = vmul.f32 %v665, %v1034
        %v1306 = vmul.f32 %v666, %v1034
        %v1307 = vmul.f32 %v667, %v1044
        %v1308 = vmul.f32 %v668, %v1044
        %v1309 = vmul.f32 %v669, %v1054
        %v1310 = vmul.f32 %v670, %v1054
        %v1311 = vmul.f32 %v671, %v1064
        %v1312 = vmul.f32 %v672, %v1064
        %v1313 = vmul.f32 %v673, %v1074
        %v1314 = vmul.f32 %v674, %v1074
        %v1315 = vmul.f32 %v675, %v1084
        %v1316 = vmul.f32 %v676, %v1084
        %v1317 = vmul.f32 %v677, %v1094
        %v1318 = vmul.f32 %v678, %v1094
        %v1319 = vmul.f32 %v679, %v1104
        %v1320 = vmul.f32 %v680, %v1104
        %v1321 = vmul.f32 %v681, %v1114
        %v1322 = vmul.f32 %v682, %v1114
        %v1323 = vmul.f32 %v683, %v1124
        %v1324 = vmul.f32 %v684, %v1124
        %v1325 = vmul.f32 %v685, %v1134
        %v1326 = vmul.f32 %v686, %v1134
        %v1327 = vmul.f32 %v687, %v1144
        %v1328 = vmul.f32 %v688, %v1144
        %v1329 = vmul.f32 %v689, %v1154
        %v1330 = vmul.f32 %v690, %v1154
        %v1331 = vmul.f32 %v691, %v1164
        %v1332 = vmul.f32 %v692, %v1164
        %v1333 = vmul.f32 %v693, %v1174
        %v1334 = vmul.f32 %v694, %v1174
        %v1335 = vmul.f32 %v695, %v1184
        %v1336 = vmul.f32 %v696, %v1184
        %v1337 = vmul.f32 %v697, %v1194
        %v1338 = vmul.f32 %v698, %v1194
        %v1339 = vmul.f32 %v699, %v1204
        %v1340 = vmul.f32 %v700, %v1204
        %v1341 = vmul.f32 %v701, %v1214
        %v1342 = vmul.f32 %v702, %v1214
        %v1343 = vmul.f32 %v703, %v1224
        %v1344 = vmul.f32 %v704, %v1224
        %v1345 = vmul.f32 %v705, %v1234
        %v1346 = vmul.f32 %v706, %v1234
        %v1347 = vmul.f32 %v707, %v1244
        %v1348 = vmul.f32 %v708, %v1244
        %v1349 = vmul.f32 %v709, %v1254
        %v1350 = vmul.f32 %v710, %v1254
        %v1351 = vmul.f32 %v711, %v1264
        %v1352 = vmul.f32 %v712, %v1264
        %v1353 = vmul.f32 %v713, %v1274
        %v1354 = vmul.f32 %v714, %v1274
        %v1355 = vmul.f32 %v715, %v1284
        %v1356 = vmul.f32 %v716, %v1284
        %v1357 = vmul.f32 %v717, %v1294
        %v1358 = vmul.f32 %v718, %v1294
        %v1360 = vperm.slane %v485, 0
        %v1361 = vperm.slane %v485, 1
        %v1364 = vmul.f32 %v1295, %v1360
        %v1365 = vmul.f32 %v1296, %v1361
        %v1366 = vmul.f32 %v1297, %v1360
        %v1367 = vmul.f32 %v1298, %v1361
        %v1368 = vmul.f32 %v1299, %v1360
        %v1369 = vmul.f32 %v1300, %v1361
        %v1370 = vmul.f32 %v1301, %v1360
        %v1371 = vmul.f32 %v1302, %v1361
        %v1372 = vmul.f32 %v1303, %v1360
        %v1373 = vmul.f32 %v1304, %v1361
        %v1374 = vmul.f32 %v1305, %v1360
        %v1375 = vmul.f32 %v1306, %v1361
        %v1376 = vmul.f32 %v1307, %v1360
        %v1377 = vmul.f32 %v1308, %v1361
        %v1378 = vmul.f32 %v1309, %v1360
        %v1379 = vmul.f32 %v1310, %v1361
        %v1380 = vmul.f32 %v1311, %v1360
        %v1381 = vmul.f32 %v1312, %v1361
        %v1382 = vmul.f32 %v1313, %v1360
        %v1383 = vmul.f32 %v1314, %v1361
        %v1384 = vmul.f32 %v1315, %v1360
        %v1385 = vmul.f32 %v1316, %v1361
        %v1386 = vmul.f32 %v1317, %v1360
        %v1387 = vmul.f32 %v1318, %v1361
        %v1388 = vmul.f32 %v1319, %v1360
        %v1389 = vmul.f32 %v1320, %v1361
        %v1390 = vmul.f32 %v1321, %v1360
        %v1391 = vmul.f32 %v1322, %v1361
        %v1392 = vmul.f32 %v1323, %v1360
        %v1393 = vmul.f32 %v1324, %v1361
        %v1394 = vmul.f32 %v1325, %v1360
        %v1395 = vmul.f32 %v1326, %v1361
        %v1396 = vmul.f32 %v1327, %v1360
        %v1397 = vmul.f32 %v1328, %v1361
        %v1398 = vmul.f32 %v1329, %v1360
        %v1399 = vmul.f32 %v1330, %v1361
        %v1400 = vmul.f32 %v1331, %v1360
        %v1401 = vmul.f32 %v1332, %v1361
        %v1402 = vmul.f32 %v1333, %v1360
        %v1403 = vmul.f32 %v1334, %v1361
        %v1404 = vmul.f32 %v1335, %v1360
        %v1405 = vmul.f32 %v1336, %v1361
        %v1406 = vmul.f32 %v1337, %v1360
        %v1407 = vmul.f32 %v1338, %v1361
        %v1408 = vmul.f32 %v1339, %v1360
        %v1409 = vmul.f32 %v1340, %v1361
        %v1410 = vmul.f32 %v1341, %v1360
        %v1411 = vmul.f32 %v1342, %v1361
        %v1412 = vmul.f32 %v1343, %v1360
        %v1413 = vmul.f32 %v1344, %v1361
        %v1414 = vmul.f32 %v1345, %v1360
        %v1415 = vmul.f32 %v1346, %v1361
        %v1416 = vmul.f32 %v1347, %v1360
        %v1417 = vmul.f32 %v1348, %v1361
        %v1418 = vmul.f32 %v1349, %v1360
        %v1419 = vmul.f32 %v1350, %v1361
        %v1420 = vmul.f32 %v1351, %v1360
        %v1421 = vmul.f32 %v1352, %v1361
        %v1422 = vmul.f32 %v1353, %v1360
        %v1423 = vmul.f32 %v1354, %v1361
        %v1424 = vmul.f32 %v1355, %v1360
        %v1425 = vmul.f32 %v1356, %v1361
        %v1426 = vmul.f32 %v1357, %v1360
        %v1427 = vmul.f32 %v1358, %v1361
        %v1429 = vperm.slane %v486, 0
        %v1430 = vperm.slane %v486, 1
        %v1433 = vadd.f32 %v1364, %v1429
        %v1434 = vadd.f32 %v1365, %v1430
        %v1435 = vadd.f32 %v1366, %v1429
        %v1436 = vadd.f32 %v1367, %v1430
        %v1437 = vadd.f32 %v1368, %v1429
        %v1438 = vadd.f32 %v1369, %v1430
        %v1439 = vadd.f32 %v1370, %v1429
        %v1440 = vadd.f32 %v1371, %v1430
        %v1441 = vadd.f32 %v1372, %v1429
        %v1442 = vadd.f32 %v1373, %v1430
        %v1443 = vadd.f32 %v1374, %v1429
        %v1444 = vadd.f32 %v1375, %v1430
        %v1445 = vadd.f32 %v1376, %v1429
        %v1446 = vadd.f32 %v1377, %v1430
        %v1447 = vadd.f32 %v1378, %v1429
        %v1448 = vadd.f32 %v1379, %v1430
        %v1449 = vadd.f32 %v1380, %v1429
        %v1450 = vadd.f32 %v1381, %v1430
        %v1451 = vadd.f32 %v1382, %v1429
        %v1452 = vadd.f32 %v1383, %v1430
        %v1453 = vadd.f32 %v1384, %v1429
        %v1454 = vadd.f32 %v1385, %v1430
        %v1455 = vadd.f32 %v1386, %v1429
        %v1456 = vadd.f32 %v1387, %v1430
        %v1457 = vadd.f32 %v1388, %v1429
        %v1458 = vadd.f32 %v1389, %v1430
        %v1459 = vadd.f32 %v1390, %v1429
        %v1460 = vadd.f32 %v1391, %v1430
        %v1461 = vadd.f32 %v1392, %v1429
        %v1462 = vadd.f32 %v1393, %v1430
        %v1463 = vadd.f32 %v1394, %v1429
        %v1464 = vadd.f32 %v1395, %v1430
        %v1465 = vadd.f32 %v1396, %v1429
        %v1466 = vadd.f32 %v1397, %v1430
        %v1467 = vadd.f32 %v1398, %v1429
        %v1468 = vadd.f32 %v1399, %v1430
        %v1469 = vadd.f32 %v1400, %v1429
        %v1470 = vadd.f32 %v1401, %v1430
        %v1471 = vadd.f32 %v1402, %v1429
        %v1472 = vadd.f32 %v1403, %v1430
        %v1473 = vadd.f32 %v1404, %v1429
        %v1474 = vadd.f32 %v1405, %v1430
        %v1475 = vadd.f32 %v1406, %v1429
        %v1476 = vadd.f32 %v1407, %v1430
        %v1477 = vadd.f32 %v1408, %v1429
        %v1478 = vadd.f32 %v1409, %v1430
        %v1479 = vadd.f32 %v1410, %v1429
        %v1480 = vadd.f32 %v1411, %v1430
        %v1481 = vadd.f32 %v1412, %v1429
        %v1482 = vadd.f32 %v1413, %v1430
        %v1483 = vadd.f32 %v1414, %v1429
        %v1484 = vadd.f32 %v1415, %v1430
        %v1485 = vadd.f32 %v1416, %v1429
        %v1486 = vadd.f32 %v1417, %v1430
        %v1487 = vadd.f32 %v1418, %v1429
        %v1488 = vadd.f32 %v1419, %v1430
        %v1489 = vadd.f32 %v1420, %v1429
        %v1490 = vadd.f32 %v1421, %v1430
        %v1491 = vadd.f32 %v1422, %v1429
        %v1492 = vadd.f32 %v1423, %v1430
        %v1493 = vadd.f32 %v1424, %v1429
        %v1494 = vadd.f32 %v1425, %v1430
        %v1495 = vadd.f32 %v1426, %v1429
        %v1496 = vadd.f32 %v1427, %v1430
        %v1497 = vpack.c.bf16 %v1435, %v1433
        %v1498 = vpack.c.bf16 %v1436, %v1434
        %v1499 = vpack.c.bf16 %v1439, %v1437
        %v1500 = vpack.c.bf16 %v1440, %v1438
        %v1501 = vpack.c.bf16 %v1443, %v1441
        %v1502 = vpack.c.bf16 %v1444, %v1442
        %v1503 = vpack.c.bf16 %v1447, %v1445
        %v1504 = vpack.c.bf16 %v1448, %v1446
        %v1505 = vpack.c.bf16 %v1451, %v1449
        %v1506 = vpack.c.bf16 %v1452, %v1450
        %v1507 = vpack.c.bf16 %v1455, %v1453
        %v1508 = vpack.c.bf16 %v1456, %v1454
        %v1509 = vpack.c.bf16 %v1459, %v1457
        %v1510 = vpack.c.bf16 %v1460, %v1458
        %v1511 = vpack.c.bf16 %v1463, %v1461
        %v1512 = vpack.c.bf16 %v1464, %v1462
        %v1513 = vpack.c.bf16 %v1467, %v1465
        %v1514 = vpack.c.bf16 %v1468, %v1466
        %v1515 = vpack.c.bf16 %v1471, %v1469
        %v1516 = vpack.c.bf16 %v1472, %v1470
        %v1517 = vpack.c.bf16 %v1475, %v1473
        %v1518 = vpack.c.bf16 %v1476, %v1474
        %v1519 = vpack.c.bf16 %v1479, %v1477
        %v1520 = vpack.c.bf16 %v1480, %v1478
        %v1521 = vpack.c.bf16 %v1483, %v1481
        %v1522 = vpack.c.bf16 %v1484, %v1482
        %v1523 = vpack.c.bf16 %v1487, %v1485
        %v1524 = vpack.c.bf16 %v1488, %v1486
        %v1525 = vpack.c.bf16 %v1491, %v1489
        %v1526 = vpack.c.bf16 %v1492, %v1490
        %v1527 = vpack.c.bf16 %v1495, %v1493
        %v1528 = vpack.c.bf16 %v1496, %v1494
        %v1529 = vld [vmem:[#allocation8] sm:$0xff]
        %v1530 = vld [vmem:[#allocation8 + $0x8] sm:$0xff]
        %v1531 = vld [vmem:[#allocation8 + $0x10] sm:$0xff]
        %v1532 = vld [vmem:[#allocation8 + $0x18] sm:$0xff]
        %v1533 = vld [vmem:[#allocation8 + $0x20] sm:$0xff]
        %v1534 = vld [vmem:[#allocation8 + $0x28] sm:$0xff]
        %v1535 = vld [vmem:[#allocation8 + $0x30] sm:$0xff]
        %v1536 = vld [vmem:[#allocation8 + $0x38] sm:$0xff]
        %v1537 = vld [vmem:[#allocation8 + $0x40] sm:$0xff]
        %v1538 = vld [vmem:[#allocation8 + $0x48] sm:$0xff]
        %v1539 = vld [vmem:[#allocation8 + $0x50] sm:$0xff]
        %v1540 = vld [vmem:[#allocation8 + $0x58] sm:$0xff]
        %v1541 = vld [vmem:[#allocation8 + $0x60] sm:$0xff]
        %v1542 = vld [vmem:[#allocation8 + $0x68] sm:$0xff]
        %v1543 = vld [vmem:[#allocation8 + $0x70] sm:$0xff]
        %v1544 = vld [vmem:[#allocation8 + $0x78] sm:$0xff]
        %v1545 = vld [vmem:[#allocation8 + $0x80] sm:$0xff]
        %v1546 = vld [vmem:[#allocation8 + $0x88] sm:$0xff]
        %v1547 = vld [vmem:[#allocation8 + $0x90] sm:$0xff]
        %v1548 = vld [vmem:[#allocation8 + $0x98] sm:$0xff]
        %v1549 = vld [vmem:[#allocation8 + $0xa0] sm:$0xff]
        %v1550 = vld [vmem:[#allocation8 + $0xa8] sm:$0xff]
        %v1551 = vld [vmem:[#allocation8 + $0xb0] sm:$0xff]
        %v1552 = vld [vmem:[#allocation8 + $0xb8] sm:$0xff]
        %v1553 = vld [vmem:[#allocation8 + $0xc0] sm:$0xff]
        %v1554 = vld [vmem:[#allocation8 + $0xc8] sm:$0xff]
        %v1555 = vld [vmem:[#allocation8 + $0xd0] sm:$0xff]
        %v1556 = vld [vmem:[#allocation8 + $0xd8] sm:$0xff]
        %v1557 = vld [vmem:[#allocation8 + $0xe0] sm:$0xff]
        %v1558 = vld [vmem:[#allocation8 + $0xe8] sm:$0xff]
        %v1559 = vld [vmem:[#allocation8 + $0xf0] sm:$0xff]
        %v1560 = vld [vmem:[#allocation8 + $0xf8] sm:$0xff]
        %v1561 = vld [vmem:[#allocation8 + $0x100] sm:$0xff]
        %v1562 = vld [vmem:[#allocation8 + $0x108] sm:$0xff]
        %v1563 = vld [vmem:[#allocation8 + $0x110] sm:$0xff]
        %v1564 = vld [vmem:[#allocation8 + $0x118] sm:$0xff]
        %v1565 = vld [vmem:[#allocation8 + $0x120] sm:$0xff]
        %v1566 = vld [vmem:[#allocation8 + $0x128] sm:$0xff]
        %v1567 = vld [vmem:[#allocation8 + $0x130] sm:$0xff]
        %v1568 = vld [vmem:[#allocation8 + $0x138] sm:$0xff]
        %v1569 = vld [vmem:[#allocation8 + $0x140] sm:$0xff]
        %v1570 = vld [vmem:[#allocation8 + $0x148] sm:$0xff]
        %v1571 = vld [vmem:[#allocation8 + $0x150] sm:$0xff]
        %v1572 = vld [vmem:[#allocation8 + $0x158] sm:$0xff]
        %v1573 = vld [vmem:[#allocation8 + $0x160] sm:$0xff]
        %v1574 = vld [vmem:[#allocation8 + $0x168] sm:$0xff]
        %v1575 = vld [vmem:[#allocation8 + $0x170] sm:$0xff]
        %v1576 = vld [vmem:[#allocation8 + $0x178] sm:$0xff]
        %v1577 = vld [vmem:[#allocation10] sm:$0xf]
        %v1579 = vperm.slane %v1577, 0
        %v1580 = vperm.slane %v1577, 1
        %v1581 = vperm.slane %v1577, 2
        %v1582 = vperm.slane %v1577, 3
        %v1635 = vunpack.c.l.b16 %v1529
        %v1636 = vunpack.c.h.b16 %v1529
        %v1637 = vunpack.c.l.b16 %v1530
        %v1638 = vunpack.c.h.b16 %v1530
        %v1639 = vunpack.c.l.b16 %v1531
        %v1640 = vunpack.c.h.b16 %v1531
        %v1641 = vunpack.c.l.b16 %v1532
        %v1642 = vunpack.c.h.b16 %v1532
        %v1643 = vunpack.c.l.b16 %v1533
        %v1644 = vunpack.c.h.b16 %v1533
        %v1645 = vunpack.c.l.b16 %v1534
        %v1646 = vunpack.c.h.b16 %v1534
        %v1647 = vunpack.c.l.b16 %v1535
        %v1648 = vunpack.c.h.b16 %v1535
        %v1649 = vunpack.c.l.b16 %v1536
        %v1650 = vunpack.c.h.b16 %v1536
        %v1651 = vunpack.c.l.b16 %v1537
        %v1652 = vunpack.c.h.b16 %v1537
        %v1653 = vunpack.c.l.b16 %v1538
        %v1654 = vunpack.c.h.b16 %v1538
        %v1655 = vunpack.c.l.b16 %v1539
        %v1656 = vunpack.c.h.b16 %v1539
        %v1657 = vunpack.c.l.b16 %v1540
        %v1658 = vunpack.c.h.b16 %v1540
        %v1659 = vunpack.c.l.b16 %v1541
        %v1660 = vunpack.c.h.b16 %v1541
        %v1661 = vunpack.c.l.b16 %v1542
        %v1662 = vunpack.c.h.b16 %v1542
        %v1663 = vunpack.c.l.b16 %v1543
        %v1664 = vunpack.c.h.b16 %v1543
        %v1665 = vunpack.c.l.b16 %v1544
        %v1666 = vunpack.c.h.b16 %v1544
        %v1667 = vunpack.c.l.b16 %v1545
        %v1668 = vunpack.c.h.b16 %v1545
        %v1669 = vunpack.c.l.b16 %v1546
        %v1670 = vunpack.c.h.b16 %v1546
        %v1671 = vunpack.c.l.b16 %v1547
        %v1672 = vunpack.c.h.b16 %v1547
        %v1673 = vunpack.c.l.b16 %v1548
        %v1674 = vunpack.c.h.b16 %v1548
        %v1675 = vunpack.c.l.b16 %v1549
        %v1676 = vunpack.c.h.b16 %v1549
        %v1677 = vunpack.c.l.b16 %v1550
        %v1678 = vunpack.c.h.b16 %v1550
        %v1679 = vunpack.c.l.b16 %v1551
        %v1680 = vunpack.c.h.b16 %v1551
        %v1681 = vunpack.c.l.b16 %v1552
        %v1682 = vunpack.c.h.b16 %v1552
        %v1683 = vunpack.c.l.b16 %v1553
        %v1684 = vunpack.c.h.b16 %v1553
        %v1685 = vunpack.c.l.b16 %v1554
        %v1686 = vunpack.c.h.b16 %v1554
        %v1687 = vunpack.c.l.b16 %v1555
        %v1688 = vunpack.c.h.b16 %v1555
        %v1689 = vunpack.c.l.b16 %v1556
        %v1690 = vunpack.c.h.b16 %v1556
        %v1691 = vunpack.c.l.b16 %v1557
        %v1692 = vunpack.c.h.b16 %v1557
        %v1693 = vunpack.c.l.b16 %v1558
        %v1694 = vunpack.c.h.b16 %v1558
        %v1695 = vunpack.c.l.b16 %v1559
        %v1696 = vunpack.c.h.b16 %v1559
        %v1697 = vunpack.c.l.b16 %v1560
        %v1698 = vunpack.c.h.b16 %v1560
        %v1699 = vunpack.c.l.b16 %v1561
        %v1700 = vunpack.c.h.b16 %v1561
        %v1701 = vunpack.c.l.b16 %v1562
        %v1702 = vunpack.c.h.b16 %v1562
        %v1703 = vunpack.c.l.b16 %v1563
        %v1704 = vunpack.c.h.b16 %v1563
        %v1705 = vunpack.c.l.b16 %v1564
        %v1706 = vunpack.c.h.b16 %v1564
        %v1707 = vunpack.c.l.b16 %v1565
        %v1708 = vunpack.c.h.b16 %v1565
        %v1709 = vunpack.c.l.b16 %v1566
        %v1710 = vunpack.c.h.b16 %v1566
        %v1711 = vunpack.c.l.b16 %v1567
        %v1712 = vunpack.c.h.b16 %v1567
        %v1713 = vunpack.c.l.b16 %v1568
        %v1714 = vunpack.c.h.b16 %v1568
        %v1715 = vunpack.c.l.b16 %v1569
        %v1716 = vunpack.c.h.b16 %v1569
        %v1717 = vunpack.c.l.b16 %v1570
        %v1718 = vunpack.c.h.b16 %v1570
        %v1719 = vunpack.c.l.b16 %v1571
        %v1720 = vunpack.c.h.b16 %v1571
        %v1721 = vunpack.c.l.b16 %v1572
        %v1722 = vunpack.c.h.b16 %v1572
        %v1723 = vunpack.c.l.b16 %v1573
        %v1724 = vunpack.c.h.b16 %v1573
        %v1725 = vunpack.c.l.b16 %v1574
        %v1726 = vunpack.c.h.b16 %v1574
        %v1727 = vunpack.c.l.b16 %v1575
        %v1728 = vunpack.c.h.b16 %v1575
        %v1729 = vunpack.c.l.b16 %v1576
        %v1730 = vunpack.c.h.b16 %v1576
        %v1731 = vpack.c.b16 %v1639, %v1635
        %v1732 = vpack.c.b16 %v1640, %v1636
        %v1733 = vpack.c.b16 %v1641, %v1637
        %v1734 = vpack.c.b16 %v1642, %v1638
        %v1735 = vpack.c.b16 %v1647, %v1643
        %v1736 = vpack.c.b16 %v1648, %v1644
        %v1737 = vpack.c.b16 %v1649, %v1645
        %v1738 = vpack.c.b16 %v1650, %v1646
        %v1739 = vpack.c.b16 %v1655, %v1651
        %v1740 = vpack.c.b16 %v1656, %v1652
        %v1741 = vpack.c.b16 %v1657, %v1653
        %v1742 = vpack.c.b16 %v1658, %v1654
        %v1743 = vpack.c.b16 %v1663, %v1659
        %v1744 = vpack.c.b16 %v1664, %v1660
        %v1745 = vpack.c.b16 %v1665, %v1661
        %v1746 = vpack.c.b16 %v1666, %v1662
        %v1747 = vpack.c.b16 %v1671, %v1667
        %v1748 = vpack.c.b16 %v1672, %v1668
        %v1749 = vpack.c.b16 %v1673, %v1669
        %v1750 = vpack.c.b16 %v1674, %v1670
        %v1751 = vpack.c.b16 %v1679, %v1675
        %v1752 = vpack.c.b16 %v1680, %v1676
        %v1753 = vpack.c.b16 %v1681, %v1677
        %v1754 = vpack.c.b16 %v1682, %v1678
        %v1755 = vpack.c.b16 %v1687, %v1683
        %v1756 = vpack.c.b16 %v1688, %v1684
        %v1757 = vpack.c.b16 %v1689, %v1685
        %v1758 = vpack.c.b16 %v1690, %v1686
        %v1759 = vpack.c.b16 %v1695, %v1691
        %v1760 = vpack.c.b16 %v1696, %v1692
        %v1761 = vpack.c.b16 %v1697, %v1693
        %v1762 = vpack.c.b16 %v1698, %v1694
        %v1763 = vpack.c.b16 %v1703, %v1699
        %v1764 = vpack.c.b16 %v1704, %v1700
        %v1765 = vpack.c.b16 %v1705, %v1701
        %v1766 = vpack.c.b16 %v1706, %v1702
        %v1767 = vpack.c.b16 %v1711, %v1707
        %v1768 = vpack.c.b16 %v1712, %v1708
        %v1769 = vpack.c.b16 %v1713, %v1709
        %v1770 = vpack.c.b16 %v1714, %v1710
        %v1771 = vpack.c.b16 %v1719, %v1715
        %v1772 = vpack.c.b16 %v1720, %v1716
        %v1773 = vpack.c.b16 %v1721, %v1717
        %v1774 = vpack.c.b16 %v1722, %v1718
        %v1775 = vpack.c.b16 %v1727, %v1723
        %v1776 = vpack.c.b16 %v1728, %v1724
        %v1777 = vpack.c.b16 %v1729, %v1725
        %v1778 = vpack.c.b16 %v1730, %v1726
        %v1828 = vsel %vm487, %v1498, 0
        %v1831 = vsel %vm487, %v1500, 0
        %v1834 = vsel %vm487, %v1502, 0
        %v1837 = vsel %vm487, %v1504, 0
        %v1840 = vsel %vm487, %v1506, 0
        %v1843 = vsel %vm487, %v1508, 0
        %v1846 = vsel %vm487, %v1510, 0
        %v1849 = vsel %vm487, %v1512, 0
        %v1852 = vsel %vm487, %v1514, 0
        %v1855 = vsel %vm487, %v1516, 0
        %v1858 = vsel %vm487, %v1518, 0
        %v1861 = vsel %vm487, %v1520, 0
        %v1864 = vsel %vm487, %v1522, 0
        %v1867 = vsel %vm487, %v1524, 0
        %v1870 = vsel %vm487, %v1526, 0
        %v1873 = vsel %vm487, %v1528, 0
        %1875 = vmatpush.bf16.msra.mxu0 %v1759
        %1876 = vmatpush.bf16.msra.mxu0 %v1755
        %1877 = vmatpush.bf16.msra.mxu0 %v1751
        %1878 = vmatpush.bf16.msra.mxu0 %v1747
        %1879 = vmatpush.bf16.msra.mxu0 %v1743
        %1880 = vmatpush.bf16.msra.mxu0 %v1739
        %1881 = vmatpush.bf16.msra.mxu0 %v1735
        %1882 = vmatpush.bf16.msra.mxu0 %v1731
        %1883 = vmatmul.bf16.gmra.mxu0 %v1497
        %v1884 = vpop.f32.mrf.mxu0
        %v1885 = vadd.f32 %v1579, %v1884
        %v1886 = vpop.f32.mrf.mxu0
        %v1887 = vadd.f32 %v1579, %v1886
        %1888 = vmatmul.bf16.gmra.mxu0 %v1499
        %v1889 = vpop.f32.mrf.mxu0
        %v1890 = vadd.f32 %v1579, %v1889
        %v1891 = vpop.f32.mrf.mxu0
        %v1892 = vadd.f32 %v1579, %v1891
        %1893 = vmatmul.bf16.gmra.mxu0 %v1501
        %v1894 = vpop.f32.mrf.mxu0
        %v1895 = vadd.f32 %v1579, %v1894
        %v1896 = vpop.f32.mrf.mxu0
        %v1897 = vadd.f32 %v1579, %v1896
        %1898 = vmatmul.bf16.gmra.mxu0 %v1503
        %v1899 = vpop.f32.mrf.mxu0
        %v1900 = vadd.f32 %v1579, %v1899
        %v1901 = vpop.f32.mrf.mxu0
        %v1902 = vadd.f32 %v1579, %v1901
        %1903 = vmatmul.bf16.gmra.mxu0 %v1505
        %v1904 = vpop.f32.mrf.mxu0
        %v1905 = vadd.f32 %v1579, %v1904
        %v1906 = vpop.f32.mrf.mxu0
        %v1907 = vadd.f32 %v1579, %v1906
        %1908 = vmatmul.bf16.gmra.mxu0 %v1507
        %v1909 = vpop.f32.mrf.mxu0
        %v1910 = vadd.f32 %v1579, %v1909
        %v1911 = vpop.f32.mrf.mxu0
        %v1912 = vadd.f32 %v1579, %v1911
        %1913 = vmatmul.bf16.gmra.mxu0 %v1509
        %v1914 = vpop.f32.mrf.mxu0
        %v1915 = vadd.f32 %v1579, %v1914
        %v1916 = vpop.f32.mrf.mxu0
        %v1917 = vadd.f32 %v1579, %v1916
        %1918 = vmatmul.bf16.gmra.mxu0 %v1511
        %v1919 = vpop.f32.mrf.mxu0
        %v1920 = vadd.f32 %v1579, %v1919
        %v1921 = vpop.f32.mrf.mxu0
        %v1922 = vadd.f32 %v1579, %v1921
        %1923 = vmatmul.bf16.gmra.mxu0 %v1513
        %v1924 = vpop.f32.mrf.mxu0
        %v1925 = vadd.f32 %v1579, %v1924
        %v1926 = vpop.f32.mrf.mxu0
        %v1927 = vadd.f32 %v1579, %v1926
        %1928 = vmatmul.bf16.gmra.mxu0 %v1515
        %v1929 = vpop.f32.mrf.mxu0
        %v1930 = vadd.f32 %v1579, %v1929
        %v1931 = vpop.f32.mrf.mxu0
        %v1932 = vadd.f32 %v1579, %v1931
        %1933 = vmatmul.bf16.gmra.mxu0 %v1517
        %v1934 = vpop.f32.mrf.mxu0
        %v1935 = vadd.f32 %v1579, %v1934
        %v1936 = vpop.f32.mrf.mxu0
        %v1937 = vadd.f32 %v1579, %v1936
        %1938 = vmatmul.bf16.gmra.mxu0 %v1519
        %v1939 = vpop.f32.mrf.mxu0
        %v1940 = vadd.f32 %v1579, %v1939
        %v1941 = vpop.f32.mrf.mxu0
        %v1942 = vadd.f32 %v1579, %v1941
        %1943 = vmatmul.bf16.gmra.mxu0 %v1521
        %v1944 = vpop.f32.mrf.mxu0
        %v1945 = vadd.f32 %v1579, %v1944
        %v1946 = vpop.f32.mrf.mxu0
        %v1947 = vadd.f32 %v1579, %v1946
        %1948 = vmatmul.bf16.gmra.mxu0 %v1523
        %v1949 = vpop.f32.mrf.mxu0
        %v1950 = vadd.f32 %v1579, %v1949
        %v1951 = vpop.f32.mrf.mxu0
        %v1952 = vadd.f32 %v1579, %v1951
        %1953 = vmatmul.bf16.gmra.mxu0 %v1525
        %v1954 = vpop.f32.mrf.mxu0
        %v1955 = vadd.f32 %v1579, %v1954
        %v1956 = vpop.f32.mrf.mxu0
        %v1957 = vadd.f32 %v1579, %v1956
        %1958 = vmatmul.bf16.gmra.mxu0 %v1527
        %v1959 = vpop.f32.mrf.mxu0
        %v1960 = vadd.f32 %v1579, %v1959
        %v1961 = vpop.f32.mrf.mxu0
        %v1962 = vadd.f32 %v1579, %v1961
        %1963 = vdwg.mxu0
        %1964 = vmatpush.bf16.msra.mxu0 0
        %1965 = vmatpush.bf16.msra.mxu0 0
        %1966 = vmatpush.bf16.msra.mxu0 0
        %1967 = vmatpush.bf16.msra.mxu0 0
        %1968 = vmatpush.bf16.msra.mxu0 %v1775
        %1969 = vmatpush.bf16.msra.mxu0 %v1771
        %1970 = vmatpush.bf16.msra.mxu0 %v1767
        %1971 = vmatpush.bf16.msra.mxu0 %v1763
        %1972 = vmatmul.bf16.gmra.mxu0 %v1828
        %v1973 = vpop.f32.mrf.mxu0
        %v1974 = vadd.f32 %v1885, %v1973
        %v1975 = vpop.f32.mrf.mxu0
        %v1976 = vadd.f32 %v1887, %v1975
        %1977 = vmatmul.bf16.gmra.mxu0 %v1831
        %v1978 = vpop.f32.mrf.mxu0
        %v1979 = vadd.f32 %v1890, %v1978
        %v1980 = vpop.f32.mrf.mxu0
        %v1981 = vadd.f32 %v1892, %v1980
        %1982 = vmatmul.bf16.gmra.mxu0 %v1834
        %v1983 = vpop.f32.mrf.mxu0
        %v1984 = vadd.f32 %v1895, %v1983
        %v1985 = vpop.f32.mrf.mxu0
        %v1986 = vadd.f32 %v1897, %v1985
        %1987 = vmatmul.bf16.gmra.mxu0 %v1837
        %v1988 = vpop.f32.mrf.mxu0
        %v1989 = vadd.f32 %v1900, %v1988
        %v1990 = vpop.f32.mrf.mxu0
        %v1991 = vadd.f32 %v1902, %v1990
        %1992 = vmatmul.bf16.gmra.mxu0 %v1840
        %v1993 = vpop.f32.mrf.mxu0
        %v1994 = vadd.f32 %v1905, %v1993
        %v1995 = vpop.f32.mrf.mxu0
        %v1996 = vadd.f32 %v1907, %v1995
        %1997 = vmatmul.bf16.gmra.mxu0 %v1843
        %v1998 = vpop.f32.mrf.mxu0
        %v1999 = vadd.f32 %v1910, %v1998
        %v2000 = vpop.f32.mrf.mxu0
        %v2001 = vadd.f32 %v1912, %v2000
        %2002 = vmatmul.bf16.gmra.mxu0 %v1846
        %v2003 = vpop.f32.mrf.mxu0
        %v2004 = vadd.f32 %v1915, %v2003
        %v2005 = vpop.f32.mrf.mxu0
        %v2006 = vadd.f32 %v1917, %v2005
        %2007 = vmatmul.bf16.gmra.mxu0 %v1849
        %v2008 = vpop.f32.mrf.mxu0
        %v2009 = vadd.f32 %v1920, %v2008
        %v2010 = vpop.f32.mrf.mxu0
        %v2011 = vadd.f32 %v1922, %v2010
        %2012 = vmatmul.bf16.gmra.mxu0 %v1852
        %v2013 = vpop.f32.mrf.mxu0
        %v2014 = vadd.f32 %v1925, %v2013
        %v2015 = vpop.f32.mrf.mxu0
        %v2016 = vadd.f32 %v1927, %v2015
        %2017 = vmatmul.bf16.gmra.mxu0 %v1855
        %v2018 = vpop.f32.mrf.mxu0
        %v2019 = vadd.f32 %v1930, %v2018
        %v2020 = vpop.f32.mrf.mxu0
        %v2021 = vadd.f32 %v1932, %v2020
        %2022 = vmatmul.bf16.gmra.mxu0 %v1858
        %v2023 = vpop.f32.mrf.mxu0
        %v2024 = vadd.f32 %v1935, %v2023
        %v2025 = vpop.f32.mrf.mxu0
        %v2026 = vadd.f32 %v1937, %v2025
        %2027 = vmatmul.bf16.gmra.mxu0 %v1861
        %v2028 = vpop.f32.mrf.mxu0
        %v2029 = vadd.f32 %v1940, %v2028
        %v2030 = vpop.f32.mrf.mxu0
        %v2031 = vadd.f32 %v1942, %v2030
        %2032 = vmatmul.bf16.gmra.mxu0 %v1864
        %v2033 = vpop.f32.mrf.mxu0
        %v2034 = vadd.f32 %v1945, %v2033
        %v2035 = vpop.f32.mrf.mxu0
        %v2036 = vadd.f32 %v1947, %v2035
        %2037 = vmatmul.bf16.gmra.mxu0 %v1867
        %v2038 = vpop.f32.mrf.mxu0
        %v2039 = vadd.f32 %v1950, %v2038
        %v2040 = vpop.f32.mrf.mxu0
        %v2041 = vadd.f32 %v1952, %v2040
        %2042 = vmatmul.bf16.gmra.mxu0 %v1870
        %v2043 = vpop.f32.mrf.mxu0
        %v2044 = vadd.f32 %v1955, %v2043
        %v2045 = vpop.f32.mrf.mxu0
        %v2046 = vadd.f32 %v1957, %v2045
        %2047 = vmatmul.bf16.gmra.mxu0 %v1873
        %v2048 = vpop.f32.mrf.mxu0
        %v2049 = vadd.f32 %v1960, %v2048
        %v2050 = vpop.f32.mrf.mxu0
        %v2051 = vadd.f32 %v1962, %v2050
        %2052 = vdwg.mxu0
        %2053 = vmatpush.bf16.msra.mxu0 %v1760
        %2054 = vmatpush.bf16.msra.mxu0 %v1756
        %2055 = vmatpush.bf16.msra.mxu0 %v1752
        %2056 = vmatpush.bf16.msra.mxu0 %v1748
        %2057 = vmatpush.bf16.msra.mxu0 %v1744
        %2058 = vmatpush.bf16.msra.mxu0 %v1740
        %2059 = vmatpush.bf16.msra.mxu0 %v1736
        %2060 = vmatpush.bf16.msra.mxu0 %v1732
        %2061 = vmatmul.bf16.gmra.mxu0 %v1497
        %v2062 = vpop.f32.mrf.mxu0
        %v2063 = vadd.f32 %v1580, %v2062
        %v2064 = vpop.f32.mrf.mxu0
        %v2065 = vadd.f32 %v1580, %v2064
        %2066 = vmatmul.bf16.gmra.mxu0 %v1499
        %v2067 = vpop.f32.mrf.mxu0
        %v2068 = vadd.f32 %v1580, %v2067
        %v2069 = vpop.f32.mrf.mxu0
        %v2070 = vadd.f32 %v1580, %v2069
        %2071 = vmatmul.bf16.gmra.mxu0 %v1501
        %v2072 = vpop.f32.mrf.mxu0
        %v2073 = vadd.f32 %v1580, %v2072
        %v2074 = vpop.f32.mrf.mxu0
        %v2075 = vadd.f32 %v1580, %v2074
        %2076 = vmatmul.bf16.gmra.mxu0 %v1503
        %v2077 = vpop.f32.mrf.mxu0
        %v2078 = vadd.f32 %v1580, %v2077
        %v2079 = vpop.f32.mrf.mxu0
        %v2080 = vadd.f32 %v1580, %v2079
        %2081 = vmatmul.bf16.gmra.mxu0 %v1505
        %v2082 = vpop.f32.mrf.mxu0
        %v2083 = vadd.f32 %v1580, %v2082
        %v2084 = vpop.f32.mrf.mxu0
        %v2085 = vadd.f32 %v1580, %v2084
        %2086 = vmatmul.bf16.gmra.mxu0 %v1507
        %v2087 = vpop.f32.mrf.mxu0
        %v2088 = vadd.f32 %v1580, %v2087
        %v2089 = vpop.f32.mrf.mxu0
        %v2090 = vadd.f32 %v1580, %v2089
        %2091 = vmatmul.bf16.gmra.mxu0 %v1509
        %v2092 = vpop.f32.mrf.mxu0
        %v2093 = vadd.f32 %v1580, %v2092
        %v2094 = vpop.f32.mrf.mxu0
        %v2095 = vadd.f32 %v1580, %v2094
        %2096 = vmatmul.bf16.gmra.mxu0 %v1511
        %v2097 = vpop.f32.mrf.mxu0
        %v2098 = vadd.f32 %v1580, %v2097
        %v2099 = vpop.f32.mrf.mxu0
        %v2100 = vadd.f32 %v1580, %v2099
        %2101 = vmatmul.bf16.gmra.mxu0 %v1513
        %v2102 = vpop.f32.mrf.mxu0
        %v2103 = vadd.f32 %v1580, %v2102
        %v2104 = vpop.f32.mrf.mxu0
        %v2105 = vadd.f32 %v1580, %v2104
        %2106 = vmatmul.bf16.gmra.mxu0 %v1515
        %v2107 = vpop.f32.mrf.mxu0
        %v2108 = vadd.f32 %v1580, %v2107
        %v2109 = vpop.f32.mrf.mxu0
        %v2110 = vadd.f32 %v1580, %v2109
        %2111 = vmatmul.bf16.gmra.mxu0 %v1517
        %v2112 = vpop.f32.mrf.mxu0
        %v2113 = vadd.f32 %v1580, %v2112
        %v2114 = vpop.f32.mrf.mxu0
        %v2115 = vadd.f32 %v1580, %v2114
        %2116 = vmatmul.bf16.gmra.mxu0 %v1519
        %v2117 = vpop.f32.mrf.mxu0
        %v2118 = vadd.f32 %v1580, %v2117
        %v2119 = vpop.f32.mrf.mxu0
        %v2120 = vadd.f32 %v1580, %v2119
        %2121 = vmatmul.bf16.gmra.mxu0 %v1521
        %v2122 = vpop.f32.mrf.mxu0
        %v2123 = vadd.f32 %v1580, %v2122
        %v2124 = vpop.f32.mrf.mxu0
        %v2125 = vadd.f32 %v1580, %v2124
        %2126 = vmatmul.bf16.gmra.mxu0 %v1523
        %v2127 = vpop.f32.mrf.mxu0
        %v2128 = vadd.f32 %v1580, %v2127
        %v2129 = vpop.f32.mrf.mxu0
        %v2130 = vadd.f32 %v1580, %v2129
        %2131 = vmatmul.bf16.gmra.mxu0 %v1525
        %v2132 = vpop.f32.mrf.mxu0
        %v2133 = vadd.f32 %v1580, %v2132
        %v2134 = vpop.f32.mrf.mxu0
        %v2135 = vadd.f32 %v1580, %v2134
        %2136 = vmatmul.bf16.gmra.mxu0 %v1527
        %v2137 = vpop.f32.mrf.mxu0
        %v2138 = vadd.f32 %v1580, %v2137
        %v2139 = vpop.f32.mrf.mxu0
        %v2140 = vadd.f32 %v1580, %v2139
        %2141 = vdwg.mxu0
        %2142 = vmatpush.bf16.msra.mxu0 0
        %2143 = vmatpush.bf16.msra.mxu0 0
        %2144 = vmatpush.bf16.msra.mxu0 0
        %2145 = vmatpush.bf16.msra.mxu0 0
        %2146 = vmatpush.bf16.msra.mxu0 %v1776
        %2147 = vmatpush.bf16.msra.mxu0 %v1772
        %2148 = vmatpush.bf16.msra.mxu0 %v1768
        %2149 = vmatpush.bf16.msra.mxu0 %v1764
        %2150 = vmatmul.bf16.gmra.mxu0 %v1828
        %v2151 = vpop.f32.mrf.mxu0
        %v2152 = vadd.f32 %v2063, %v2151
        %v2153 = vpop.f32.mrf.mxu0
        %v2154 = vadd.f32 %v2065, %v2153
        %2155 = vmatmul.bf16.gmra.mxu0 %v1831
        %v2156 = vpop.f32.mrf.mxu0
        %v2157 = vadd.f32 %v2068, %v2156
        %v2158 = vpop.f32.mrf.mxu0
        %v2159 = vadd.f32 %v2070, %v2158
        %2160 = vmatmul.bf16.gmra.mxu0 %v1834
        %v2161 = vpop.f32.mrf.mxu0
        %v2162 = vadd.f32 %v2073, %v2161
        %v2163 = vpop.f32.mrf.mxu0
        %v2164 = vadd.f32 %v2075, %v2163
        %2165 = vmatmul.bf16.gmra.mxu0 %v1837
        %v2166 = vpop.f32.mrf.mxu0
        %v2167 = vadd.f32 %v2078, %v2166
        %v2168 = vpop.f32.mrf.mxu0
        %v2169 = vadd.f32 %v2080, %v2168
        %2170 = vmatmul.bf16.gmra.mxu0 %v1840
        %v2171 = vpop.f32.mrf.mxu0
        %v2172 = vadd.f32 %v2083, %v2171
        %v2173 = vpop.f32.mrf.mxu0
        %v2174 = vadd.f32 %v2085, %v2173
        %2175 = vmatmul.bf16.gmra.mxu0 %v1843
        %v2176 = vpop.f32.mrf.mxu0
        %v2177 = vadd.f32 %v2088, %v2176
        %v2178 = vpop.f32.mrf.mxu0
        %v2179 = vadd.f32 %v2090, %v2178
        %2180 = vmatmul.bf16.gmra.mxu0 %v1846
        %v2181 = vpop.f32.mrf.mxu0
        %v2182 = vadd.f32 %v2093, %v2181
        %v2183 = vpop.f32.mrf.mxu0
        %v2184 = vadd.f32 %v2095, %v2183
        %2185 = vmatmul.bf16.gmra.mxu0 %v1849
        %v2186 = vpop.f32.mrf.mxu0
        %v2187 = vadd.f32 %v2098, %v2186
        %v2188 = vpop.f32.mrf.mxu0
        %v2189 = vadd.f32 %v2100, %v2188
        %2190 = vmatmul.bf16.gmra.mxu0 %v1852
        %v2191 = vpop.f32.mrf.mxu0
        %v2192 = vadd.f32 %v2103, %v2191
        %v2193 = vpop.f32.mrf.mxu0
        %v2194 = vadd.f32 %v2105, %v2193
        %2195 = vmatmul.bf16.gmra.mxu0 %v1855
        %v2196 = vpop.f32.mrf.mxu0
        %v2197 = vadd.f32 %v2108, %v2196
        %v2198 = vpop.f32.mrf.mxu0
        %v2199 = vadd.f32 %v2110, %v2198
        %2200 = vmatmul.bf16.gmra.mxu0 %v1858
        %v2201 = vpop.f32.mrf.mxu0
        %v2202 = vadd.f32 %v2113, %v2201
        %v2203 = vpop.f32.mrf.mxu0
        %v2204 = vadd.f32 %v2115, %v2203
        %2205 = vmatmul.bf16.gmra.mxu0 %v1861
        %v2206 = vpop.f32.mrf.mxu0
        %v2207 = vadd.f32 %v2118, %v2206
        %v2208 = vpop.f32.mrf.mxu0
        %v2209 = vadd.f32 %v2120, %v2208
        %2210 = vmatmul.bf16.gmra.mxu0 %v1864
        %v2211 = vpop.f32.mrf.mxu0
        %v2212 = vadd.f32 %v2123, %v2211
        %v2213 = vpop.f32.mrf.mxu0
        %v2214 = vadd.f32 %v2125, %v2213
        %2215 = vmatmul.bf16.gmra.mxu0 %v1867
        %v2216 = vpop.f32.mrf.mxu0
        %v2217 = vadd.f32 %v2128, %v2216
        %v2218 = vpop.f32.mrf.mxu0
        %v2219 = vadd.f32 %v2130, %v2218
        %2220 = vmatmul.bf16.gmra.mxu0 %v1870
        %v2221 = vpop.f32.mrf.mxu0
        %v2222 = vadd.f32 %v2133, %v2221
        %v2223 = vpop.f32.mrf.mxu0
        %v2224 = vadd.f32 %v2135, %v2223
        %2225 = vmatmul.bf16.gmra.mxu0 %v1873
        %v2226 = vpop.f32.mrf.mxu0
        %v2227 = vadd.f32 %v2138, %v2226
        %v2228 = vpop.f32.mrf.mxu0
        %v2229 = vadd.f32 %v2140, %v2228
        %2230 = vdwg.mxu0
        %2231 = vmatpush.bf16.msra.mxu0 %v1761
        %2232 = vmatpush.bf16.msra.mxu0 %v1757
        %2233 = vmatpush.bf16.msra.mxu0 %v1753
        %2234 = vmatpush.bf16.msra.mxu0 %v1749
        %2235 = vmatpush.bf16.msra.mxu0 %v1745
        %2236 = vmatpush.bf16.msra.mxu0 %v1741
        %2237 = vmatpush.bf16.msra.mxu0 %v1737
        %2238 = vmatpush.bf16.msra.mxu0 %v1733
        %2239 = vmatmul.bf16.gmra.mxu0 %v1497
        %v2240 = vpop.f32.mrf.mxu0
        %v2241 = vadd.f32 %v1581, %v2240
        %v2242 = vpop.f32.mrf.mxu0
        %v2243 = vadd.f32 %v1581, %v2242
        %2244 = vmatmul.bf16.gmra.mxu0 %v1499
        %v2245 = vpop.f32.mrf.mxu0
        %v2246 = vadd.f32 %v1581, %v2245
        %v2247 = vpop.f32.mrf.mxu0
        %v2248 = vadd.f32 %v1581, %v2247
        %2249 = vmatmul.bf16.gmra.mxu0 %v1501
        %v2250 = vpop.f32.mrf.mxu0
        %v2251 = vadd.f32 %v1581, %v2250
        %v2252 = vpop.f32.mrf.mxu0
        %v2253 = vadd.f32 %v1581, %v2252
        %2254 = vmatmul.bf16.gmra.mxu0 %v1503
        %v2255 = vpop.f32.mrf.mxu0
        %v2256 = vadd.f32 %v1581, %v2255
        %v2257 = vpop.f32.mrf.mxu0
        %v2258 = vadd.f32 %v1581, %v2257
        %2259 = vmatmul.bf16.gmra.mxu0 %v1505
        %v2260 = vpop.f32.mrf.mxu0
        %v2261 = vadd.f32 %v1581, %v2260
        %v2262 = vpop.f32.mrf.mxu0
        %v2263 = vadd.f32 %v1581, %v2262
        %2264 = vmatmul.bf16.gmra.mxu0 %v1507
        %v2265 = vpop.f32.mrf.mxu0
        %v2266 = vadd.f32 %v1581, %v2265
        %v2267 = vpop.f32.mrf.mxu0
        %v2268 = vadd.f32 %v1581, %v2267
        %2269 = vmatmul.bf16.gmra.mxu0 %v1509
        %v2270 = vpop.f32.mrf.mxu0
        %v2271 = vadd.f32 %v1581, %v2270
        %v2272 = vpop.f32.mrf.mxu0
        %v2273 = vadd.f32 %v1581, %v2272
        %2274 = vmatmul.bf16.gmra.mxu0 %v1511
        %v2275 = vpop.f32.mrf.mxu0
        %v2276 = vadd.f32 %v1581, %v2275
        %v2277 = vpop.f32.mrf.mxu0
        %v2278 = vadd.f32 %v1581, %v2277
        %2279 = vmatmul.bf16.gmra.mxu0 %v1513
        %v2280 = vpop.f32.mrf.mxu0
        %v2281 = vadd.f32 %v1581, %v2280
        %v2282 = vpop.f32.mrf.mxu0
        %v2283 = vadd.f32 %v1581, %v2282
        %2284 = vmatmul.bf16.gmra.mxu0 %v1515
        %v2285 = vpop.f32.mrf.mxu0
        %v2286 = vadd.f32 %v1581, %v2285
        %v2287 = vpop.f32.mrf.mxu0
        %v2288 = vadd.f32 %v1581, %v2287
        %2289 = vmatmul.bf16.gmra.mxu0 %v1517
        %v2290 = vpop.f32.mrf.mxu0
        %v2291 = vadd.f32 %v1581, %v2290
        %v2292 = vpop.f32.mrf.mxu0
        %v2293 = vadd.f32 %v1581, %v2292
        %2294 = vmatmul.bf16.gmra.mxu0 %v1519
        %v2295 = vpop.f32.mrf.mxu0
        %v2296 = vadd.f32 %v1581, %v2295
        %v2297 = vpop.f32.mrf.mxu0
        %v2298 = vadd.f32 %v1581, %v2297
        %2299 = vmatmul.bf16.gmra.mxu0 %v1521
        %v2300 = vpop.f32.mrf.mxu0
        %v2301 = vadd.f32 %v1581, %v2300
        %v2302 = vpop.f32.mrf.mxu0
        %v2303 = vadd.f32 %v1581, %v2302
        %2304 = vmatmul.bf16.gmra.mxu0 %v1523
        %v2305 = vpop.f32.mrf.mxu0
        %v2306 = vadd.f32 %v1581, %v2305
        %v2307 = vpop.f32.mrf.mxu0
        %v2308 = vadd.f32 %v1581, %v2307
        %2309 = vmatmul.bf16.gmra.mxu0 %v1525
        %v2310 = vpop.f32.mrf.mxu0
        %v2311 = vadd.f32 %v1581, %v2310
        %v2312 = vpop.f32.mrf.mxu0
        %v2313 = vadd.f32 %v1581, %v2312
        %2314 = vmatmul.bf16.gmra.mxu0 %v1527
        %v2315 = vpop.f32.mrf.mxu0
        %v2316 = vadd.f32 %v1581, %v2315
        %v2317 = vpop.f32.mrf.mxu0
        %v2318 = vadd.f32 %v1581, %v2317
        %2319 = vdwg.mxu0
        %2320 = vmatpush.bf16.msra.mxu0 0
        %2321 = vmatpush.bf16.msra.mxu0 0
        %2322 = vmatpush.bf16.msra.mxu0 0
        %2323 = vmatpush.bf16.msra.mxu0 0
        %2324 = vmatpush.bf16.msra.mxu0 %v1777
        %2325 = vmatpush.bf16.msra.mxu0 %v1773
        %2326 = vmatpush.bf16.msra.mxu0 %v1769
        %2327 = vmatpush.bf16.msra.mxu0 %v1765
        %2328 = vmatmul.bf16.gmra.mxu0 %v1828
        %v2329 = vpop.f32.mrf.mxu0
        %v2330 = vadd.f32 %v2241, %v2329
        %v2331 = vpop.f32.mrf.mxu0
        %v2332 = vadd.f32 %v2243, %v2331
        %2333 = vmatmul.bf16.gmra.mxu0 %v1831
        %v2334 = vpop.f32.mrf.mxu0
        %v2335 = vadd.f32 %v2246, %v2334
        %v2336 = vpop.f32.mrf.mxu0
        %v2337 = vadd.f32 %v2248, %v2336
        %2338 = vmatmul.bf16.gmra.mxu0 %v1834
        %v2339 = vpop.f32.mrf.mxu0
        %v2340 = vadd.f32 %v2251, %v2339
        %v2341 = vpop.f32.mrf.mxu0
        %v2342 = vadd.f32 %v2253, %v2341
        %2343 = vmatmul.bf16.gmra.mxu0 %v1837
        %v2344 = vpop.f32.mrf.mxu0
        %v2345 = vadd.f32 %v2256, %v2344
        %v2346 = vpop.f32.mrf.mxu0
        %v2347 = vadd.f32 %v2258, %v2346
        %2348 = vmatmul.bf16.gmra.mxu0 %v1840
        %v2349 = vpop.f32.mrf.mxu0
        %v2350 = vadd.f32 %v2261, %v2349
        %v2351 = vpop.f32.mrf.mxu0
        %v2352 = vadd.f32 %v2263, %v2351
        %2353 = vmatmul.bf16.gmra.mxu0 %v1843
        %v2354 = vpop.f32.mrf.mxu0
        %v2355 = vadd.f32 %v2266, %v2354
        %v2356 = vpop.f32.mrf.mxu0
        %v2357 = vadd.f32 %v2268, %v2356
        %2358 = vmatmul.bf16.gmra.mxu0 %v1846
        %v2359 = vpop.f32.mrf.mxu0
        %v2360 = vadd.f32 %v2271, %v2359
        %v2361 = vpop.f32.mrf.mxu0
        %v2362 = vadd.f32 %v2273, %v2361
        %2363 = vmatmul.bf16.gmra.mxu0 %v1849
        %v2364 = vpop.f32.mrf.mxu0
        %v2365 = vadd.f32 %v2276, %v2364
        %v2366 = vpop.f32.mrf.mxu0
        %v2367 = vadd.f32 %v2278, %v2366
        %2368 = vmatmul.bf16.gmra.mxu0 %v1852
        %v2369 = vpop.f32.mrf.mxu0
        %v2370 = vadd.f32 %v2281, %v2369
        %v2371 = vpop.f32.mrf.mxu0
        %v2372 = vadd.f32 %v2283, %v2371
        %2373 = vmatmul.bf16.gmra.mxu0 %v1855
        %v2374 = vpop.f32.mrf.mxu0
        %v2375 = vadd.f32 %v2286, %v2374
        %v2376 = vpop.f32.mrf.mxu0
        %v2377 = vadd.f32 %v2288, %v2376
        %2378 = vmatmul.bf16.gmra.mxu0 %v1858
        %v2379 = vpop.f32.mrf.mxu0
        %v2380 = vadd.f32 %v2291, %v2379
        %v2381 = vpop.f32.mrf.mxu0
        %v2382 = vadd.f32 %v2293, %v2381
        %2383 = vmatmul.bf16.gmra.mxu0 %v1861
        %v2384 = vpop.f32.mrf.mxu0
        %v2385 = vadd.f32 %v2296, %v2384
        %v2386 = vpop.f32.mrf.mxu0
        %v2387 = vadd.f32 %v2298, %v2386
        %2388 = vmatmul.bf16.gmra.mxu0 %v1864
        %v2389 = vpop.f32.mrf.mxu0
        %v2390 = vadd.f32 %v2301, %v2389
        %v2391 = vpop.f32.mrf.mxu0
        %v2392 = vadd.f32 %v2303, %v2391
        %2393 = vmatmul.bf16.gmra.mxu0 %v1867
        %v2394 = vpop.f32.mrf.mxu0
        %v2395 = vadd.f32 %v2306, %v2394
        %v2396 = vpop.f32.mrf.mxu0
        %v2397 = vadd.f32 %v2308, %v2396
        %2398 = vmatmul.bf16.gmra.mxu0 %v1870
        %v2399 = vpop.f32.mrf.mxu0
        %v2400 = vadd.f32 %v2311, %v2399
        %v2401 = vpop.f32.mrf.mxu0
        %v2402 = vadd.f32 %v2313, %v2401
        %2403 = vmatmul.bf16.gmra.mxu0 %v1873
        %v2404 = vpop.f32.mrf.mxu0
        %v2405 = vadd.f32 %v2316, %v2404
        %v2406 = vpop.f32.mrf.mxu0
        %v2407 = vadd.f32 %v2318, %v2406
        %2408 = vdwg.mxu0
        %2409 = vmatpush.bf16.msra.mxu0 %v1762
        %2410 = vmatpush.bf16.msra.mxu0 %v1758
        %2411 = vmatpush.bf16.msra.mxu0 %v1754
        %2412 = vmatpush.bf16.msra.mxu0 %v1750
        %2413 = vmatpush.bf16.msra.mxu0 %v1746
        %2414 = vmatpush.bf16.msra.mxu0 %v1742
        %2415 = vmatpush.bf16.msra.mxu0 %v1738
        %2416 = vmatpush.bf16.msra.mxu0 %v1734
        %2417 = vmatmul.bf16.gmra.mxu0 %v1497
        %v2418 = vpop.f32.mrf.mxu0
        %v2419 = vadd.f32 %v1582, %v2418
        %v2420 = vpop.f32.mrf.mxu0
        %v2421 = vadd.f32 %v1582, %v2420
        %2422 = vmatmul.bf16.gmra.mxu0 %v1499
        %v2423 = vpop.f32.mrf.mxu0
        %v2424 = vadd.f32 %v1582, %v2423
        %v2425 = vpop.f32.mrf.mxu0
        %v2426 = vadd.f32 %v1582, %v2425
        %2427 = vmatmul.bf16.gmra.mxu0 %v1501
        %v2428 = vpop.f32.mrf.mxu0
        %v2429 = vadd.f32 %v1582, %v2428
        %v2430 = vpop.f32.mrf.mxu0
        %v2431 = vadd.f32 %v1582, %v2430
        %2432 = vmatmul.bf16.gmra.mxu0 %v1503
        %v2433 = vpop.f32.mrf.mxu0
        %v2434 = vadd.f32 %v1582, %v2433
        %v2435 = vpop.f32.mrf.mxu0
        %v2436 = vadd.f32 %v1582, %v2435
        %2437 = vmatmul.bf16.gmra.mxu0 %v1505
        %v2438 = vpop.f32.mrf.mxu0
        %v2439 = vadd.f32 %v1582, %v2438
        %v2440 = vpop.f32.mrf.mxu0
        %v2441 = vadd.f32 %v1582, %v2440
        %2442 = vmatmul.bf16.gmra.mxu0 %v1507
        %v2443 = vpop.f32.mrf.mxu0
        %v2444 = vadd.f32 %v1582, %v2443
        %v2445 = vpop.f32.mrf.mxu0
        %v2446 = vadd.f32 %v1582, %v2445
        %2447 = vmatmul.bf16.gmra.mxu0 %v1509
        %v2448 = vpop.f32.mrf.mxu0
        %v2449 = vadd.f32 %v1582, %v2448
        %v2450 = vpop.f32.mrf.mxu0
        %v2451 = vadd.f32 %v1582, %v2450
        %2452 = vmatmul.bf16.gmra.mxu0 %v1511
        %v2453 = vpop.f32.mrf.mxu0
        %v2454 = vadd.f32 %v1582, %v2453
        %v2455 = vpop.f32.mrf.mxu0
        %v2456 = vadd.f32 %v1582, %v2455
        %2457 = vmatmul.bf16.gmra.mxu0 %v1513
        %v2458 = vpop.f32.mrf.mxu0
        %v2459 = vadd.f32 %v1582, %v2458
        %v2460 = vpop.f32.mrf.mxu0
        %v2461 = vadd.f32 %v1582, %v2460
        %2462 = vmatmul.bf16.gmra.mxu0 %v1515
        %v2463 = vpop.f32.mrf.mxu0
        %v2464 = vadd.f32 %v1582, %v2463
        %v2465 = vpop.f32.mrf.mxu0
        %v2466 = vadd.f32 %v1582, %v2465
        %2467 = vmatmul.bf16.gmra.mxu0 %v1517
        %v2468 = vpop.f32.mrf.mxu0
        %v2469 = vadd.f32 %v1582, %v2468
        %v2470 = vpop.f32.mrf.mxu0
        %v2471 = vadd.f32 %v1582, %v2470
        %2472 = vmatmul.bf16.gmra.mxu0 %v1519
        %v2473 = vpop.f32.mrf.mxu0
        %v2474 = vadd.f32 %v1582, %v2473
        %v2475 = vpop.f32.mrf.mxu0
        %v2476 = vadd.f32 %v1582, %v2475
        %2477 = vmatmul.bf16.gmra.mxu0 %v1521
        %v2478 = vpop.f32.mrf.mxu0
        %v2479 = vadd.f32 %v1582, %v2478
        %v2480 = vpop.f32.mrf.mxu0
        %v2481 = vadd.f32 %v1582, %v2480
        %2482 = vmatmul.bf16.gmra.mxu0 %v1523
        %v2483 = vpop.f32.mrf.mxu0
        %v2484 = vadd.f32 %v1582, %v2483
        %v2485 = vpop.f32.mrf.mxu0
        %v2486 = vadd.f32 %v1582, %v2485
        %2487 = vmatmul.bf16.gmra.mxu0 %v1525
        %v2488 = vpop.f32.mrf.mxu0
        %v2489 = vadd.f32 %v1582, %v2488
        %v2490 = vpop.f32.mrf.mxu0
        %v2491 = vadd.f32 %v1582, %v2490
        %2492 = vmatmul.bf16.gmra.mxu0 %v1527
        %v2493 = vpop.f32.mrf.mxu0
        %v2494 = vadd.f32 %v1582, %v2493
        %v2495 = vpop.f32.mrf.mxu0
        %v2496 = vadd.f32 %v1582, %v2495
        %2497 = vdwg.mxu0
        %2498 = vmatpush.bf16.msra.mxu0 0
        %2499 = vmatpush.bf16.msra.mxu0 0
        %2500 = vmatpush.bf16.msra.mxu0 0
        %2501 = vmatpush.bf16.msra.mxu0 0
        %2502 = vmatpush.bf16.msra.mxu0 %v1778
        %2503 = vmatpush.bf16.msra.mxu0 %v1774
        %2504 = vmatpush.bf16.msra.mxu0 %v1770
        %2505 = vmatpush.bf16.msra.mxu0 %v1766
        %2506 = vmatmul.bf16.gmra.mxu0 %v1828
        %v2507 = vpop.f32.mrf.mxu0
        %v2508 = vadd.f32 %v2419, %v2507
        %v2509 = vpop.f32.mrf.mxu0
        %v2510 = vadd.f32 %v2421, %v2509
        %2511 = vmatmul.bf16.gmra.mxu0 %v1831
        %v2512 = vpop.f32.mrf.mxu0
        %v2513 = vadd.f32 %v2424, %v2512
        %v2514 = vpop.f32.mrf.mxu0
        %v2515 = vadd.f32 %v2426, %v2514
        %2516 = vmatmul.bf16.gmra.mxu0 %v1834
        %v2517 = vpop.f32.mrf.mxu0
        %v2518 = vadd.f32 %v2429, %v2517
        %v2519 = vpop.f32.mrf.mxu0
        %v2520 = vadd.f32 %v2431, %v2519
        %2521 = vmatmul.bf16.gmra.mxu0 %v1837
        %v2522 = vpop.f32.mrf.mxu0
        %v2523 = vadd.f32 %v2434, %v2522
        %v2524 = vpop.f32.mrf.mxu0
        %v2525 = vadd.f32 %v2436, %v2524
        %2526 = vmatmul.bf16.gmra.mxu0 %v1840
        %v2527 = vpop.f32.mrf.mxu0
        %v2528 = vadd.f32 %v2439, %v2527
        %v2529 = vpop.f32.mrf.mxu0
        %v2530 = vadd.f32 %v2441, %v2529
        %2531 = vmatmul.bf16.gmra.mxu0 %v1843
        %v2532 = vpop.f32.mrf.mxu0
        %v2533 = vadd.f32 %v2444, %v2532
        %v2534 = vpop.f32.mrf.mxu0
        %v2535 = vadd.f32 %v2446, %v2534
        %2536 = vmatmul.bf16.gmra.mxu0 %v1846
        %v2537 = vpop.f32.mrf.mxu0
        %v2538 = vadd.f32 %v2449, %v2537
        %v2539 = vpop.f32.mrf.mxu0
        %v2540 = vadd.f32 %v2451, %v2539
        %2541 = vmatmul.bf16.gmra.mxu0 %v1849
        %v2542 = vpop.f32.mrf.mxu0
        %v2543 = vadd.f32 %v2454, %v2542
        %v2544 = vpop.f32.mrf.mxu0
        %v2545 = vadd.f32 %v2456, %v2544
        %2546 = vmatmul.bf16.gmra.mxu0 %v1852
        %v2547 = vpop.f32.mrf.mxu0
        %v2548 = vadd.f32 %v2459, %v2547
        %v2549 = vpop.f32.mrf.mxu0
        %v2550 = vadd.f32 %v2461, %v2549
        %2551 = vmatmul.bf16.gmra.mxu0 %v1855
        %v2552 = vpop.f32.mrf.mxu0
        %v2553 = vadd.f32 %v2464, %v2552
        %v2554 = vpop.f32.mrf.mxu0
        %v2555 = vadd.f32 %v2466, %v2554
        %2556 = vmatmul.bf16.gmra.mxu0 %v1858
        %v2557 = vpop.f32.mrf.mxu0
        %v2558 = vadd.f32 %v2469, %v2557
        %v2559 = vpop.f32.mrf.mxu0
        %v2560 = vadd.f32 %v2471, %v2559
        %2561 = vmatmul.bf16.gmra.mxu0 %v1861
        %v2562 = vpop.f32.mrf.mxu0
        %v2563 = vadd.f32 %v2474, %v2562
        %v2564 = vpop.f32.mrf.mxu0
        %v2565 = vadd.f32 %v2476, %v2564
        %2566 = vmatmul.bf16.gmra.mxu0 %v1864
        %v2567 = vpop.f32.mrf.mxu0
        %v2568 = vadd.f32 %v2479, %v2567
        %v2569 = vpop.f32.mrf.mxu0
        %v2570 = vadd.f32 %v2481, %v2569
        %2571 = vmatmul.bf16.gmra.mxu0 %v1867
        %v2572 = vpop.f32.mrf.mxu0
        %v2573 = vadd.f32 %v2484, %v2572
        %v2574 = vpop.f32.mrf.mxu0
        %v2575 = vadd.f32 %v2486, %v2574
        %2576 = vmatmul.bf16.gmra.mxu0 %v1870
        %v2577 = vpop.f32.mrf.mxu0
        %v2578 = vadd.f32 %v2489, %v2577
        %v2579 = vpop.f32.mrf.mxu0
        %v2580 = vadd.f32 %v2491, %v2579
        %2581 = vmatmul.bf16.gmra.mxu0 %v1873
        %v2582 = vpop.f32.mrf.mxu0
        %v2583 = vadd.f32 %v2494, %v2582
        %v2584 = vpop.f32.mrf.mxu0
        %v2585 = vadd.f32 %v2496, %v2584
        %2586 = vdwg.mxu0
        %v2587 = vld [vmem:[%s5] sm:$0xf]
        %v2588 = vld [vmem:[#allocation11] sm:$0xf]
        %v2589 = vadd.f32 %v1974, %v2152
        %v2590 = vadd.f32 %v2589, %v2330
        %v2591 = vadd.f32 %v2590, %v2508
        %2592 = vadd.xlane.f32.xlu0 %v2591
        %v2593 = vpop.xlane.xlu0 %2592
        %v2594 = vadd.f32 %v1976, %v2154
        %v2595 = vadd.f32 %v2594, %v2332
        %v2596 = vadd.f32 %v2595, %v2510
        %2597 = vadd.xlane.f32.xlu0 %v2596
        %v2598 = vpop.xlane.xlu0 %2597
        %v2599 = vadd.f32 %v1979, %v2157
        %v2600 = vadd.f32 %v2599, %v2335
        %v2601 = vadd.f32 %v2600, %v2513
        %2602 = vadd.xlane.f32.xlu0 %v2601
        %v2603 = vpop.xlane.xlu0 %2602
        %v2604 = vadd.f32 %v1981, %v2159
        %v2605 = vadd.f32 %v2604, %v2337
        %v2606 = vadd.f32 %v2605, %v2515
        %2607 = vadd.xlane.f32.xlu0 %v2606
        %v2608 = vpop.xlane.xlu0 %2607
        %v2609 = vadd.f32 %v1984, %v2162
        %v2610 = vadd.f32 %v2609, %v2340
        %v2611 = vadd.f32 %v2610, %v2518
        %2612 = vadd.xlane.f32.xlu0 %v2611
        %v2613 = vpop.xlane.xlu0 %2612
        %v2614 = vadd.f32 %v1986, %v2164
        %v2615 = vadd.f32 %v2614, %v2342
        %v2616 = vadd.f32 %v2615, %v2520
        %2617 = vadd.xlane.f32.xlu0 %v2616
        %v2618 = vpop.xlane.xlu0 %2617
        %v2619 = vadd.f32 %v1989, %v2167
        %v2620 = vadd.f32 %v2619, %v2345
        %v2621 = vadd.f32 %v2620, %v2523
        %2622 = vadd.xlane.f32.xlu0 %v2621
        %v2623 = vpop.xlane.xlu0 %2622
        %v2624 = vadd.f32 %v1991, %v2169
        %v2625 = vadd.f32 %v2624, %v2347
        %v2626 = vadd.f32 %v2625, %v2525
        %2627 = vadd.xlane.f32.xlu0 %v2626
        %v2628 = vpop.xlane.xlu0 %2627
        %v2629 = vadd.f32 %v1994, %v2172
        %v2630 = vadd.f32 %v2629, %v2350
        %v2631 = vadd.f32 %v2630, %v2528
        %2632 = vadd.xlane.f32.xlu0 %v2631
        %v2633 = vpop.xlane.xlu0 %2632
        %v2634 = vadd.f32 %v1996, %v2174
        %v2635 = vadd.f32 %v2634, %v2352
        %v2636 = vadd.f32 %v2635, %v2530
        %2637 = vadd.xlane.f32.xlu0 %v2636
        %v2638 = vpop.xlane.xlu0 %2637
        %v2639 = vadd.f32 %v1999, %v2177
        %v2640 = vadd.f32 %v2639, %v2355
        %v2641 = vadd.f32 %v2640, %v2533
        %2642 = vadd.xlane.f32.xlu0 %v2641
        %v2643 = vpop.xlane.xlu0 %2642
        %v2644 = vadd.f32 %v2001, %v2179
        %v2645 = vadd.f32 %v2644, %v2357
        %v2646 = vadd.f32 %v2645, %v2535
        %2647 = vadd.xlane.f32.xlu0 %v2646
        %v2648 = vpop.xlane.xlu0 %2647
        %v2649 = vadd.f32 %v2004, %v2182
        %v2650 = vadd.f32 %v2649, %v2360
        %v2651 = vadd.f32 %v2650, %v2538
        %2652 = vadd.xlane.f32.xlu0 %v2651
        %v2653 = vpop.xlane.xlu0 %2652
        %v2654 = vadd.f32 %v2006, %v2184
        %v2655 = vadd.f32 %v2654, %v2362
        %v2656 = vadd.f32 %v2655, %v2540
        %2657 = vadd.xlane.f32.xlu0 %v2656
        %v2658 = vpop.xlane.xlu0 %2657
        %v2659 = vadd.f32 %v2009, %v2187
        %v2660 = vadd.f32 %v2659, %v2365
        %v2661 = vadd.f32 %v2660, %v2543
        %2662 = vadd.xlane.f32.xlu0 %v2661
        %v2663 = vpop.xlane.xlu0 %2662
        %v2664 = vadd.f32 %v2011, %v2189
        %v2665 = vadd.f32 %v2664, %v2367
        %v2666 = vadd.f32 %v2665, %v2545
        %2667 = vadd.xlane.f32.xlu0 %v2666
        %v2668 = vpop.xlane.xlu0 %2667
        %v2669 = vadd.f32 %v2014, %v2192
        %v2670 = vadd.f32 %v2669, %v2370
        %v2671 = vadd.f32 %v2670, %v2548
        %2672 = vadd.xlane.f32.xlu0 %v2671
        %v2673 = vpop.xlane.xlu0 %2672
        %v2674 = vadd.f32 %v2016, %v2194
        %v2675 = vadd.f32 %v2674, %v2372
        %v2676 = vadd.f32 %v2675, %v2550
        %2677 = vadd.xlane.f32.xlu0 %v2676
        %v2678 = vpop.xlane.xlu0 %2677
        %v2679 = vadd.f32 %v2019, %v2197
        %v2680 = vadd.f32 %v2679, %v2375
        %v2681 = vadd.f32 %v2680, %v2553
        %2682 = vadd.xlane.f32.xlu0 %v2681
        %v2683 = vpop.xlane.xlu0 %2682
        %v2684 = vadd.f32 %v2021, %v2199
        %v2685 = vadd.f32 %v2684, %v2377
        %v2686 = vadd.f32 %v2685, %v2555
        %2687 = vadd.xlane.f32.xlu0 %v2686
        %v2688 = vpop.xlane.xlu0 %2687
        %v2689 = vadd.f32 %v2024, %v2202
        %v2690 = vadd.f32 %v2689, %v2380
        %v2691 = vadd.f32 %v2690, %v2558
        %2692 = vadd.xlane.f32.xlu0 %v2691
        %v2693 = vpop.xlane.xlu0 %2692
        %v2694 = vadd.f32 %v2026, %v2204
        %v2695 = vadd.f32 %v2694, %v2382
        %v2696 = vadd.f32 %v2695, %v2560
        %2697 = vadd.xlane.f32.xlu0 %v2696
        %v2698 = vpop.xlane.xlu0 %2697
        %v2699 = vadd.f32 %v2029, %v2207
        %v2700 = vadd.f32 %v2699, %v2385
        %v2701 = vadd.f32 %v2700, %v2563
        %2702 = vadd.xlane.f32.xlu0 %v2701
        %v2703 = vpop.xlane.xlu0 %2702
        %v2704 = vadd.f32 %v2031, %v2209
        %v2705 = vadd.f32 %v2704, %v2387
        %v2706 = vadd.f32 %v2705, %v2565
        %2707 = vadd.xlane.f32.xlu0 %v2706
        %v2708 = vpop.xlane.xlu0 %2707
        %v2709 = vadd.f32 %v2034, %v2212
        %v2710 = vadd.f32 %v2709, %v2390
        %v2711 = vadd.f32 %v2710, %v2568
        %2712 = vadd.xlane.f32.xlu0 %v2711
        %v2713 = vpop.xlane.xlu0 %2712
        %v2714 = vadd.f32 %v2036, %v2214
        %v2715 = vadd.f32 %v2714, %v2392
        %v2716 = vadd.f32 %v2715, %v2570
        %2717 = vadd.xlane.f32.xlu0 %v2716
        %v2718 = vpop.xlane.xlu0 %2717
        %v2719 = vadd.f32 %v2039, %v2217
        %v2720 = vadd.f32 %v2719, %v2395
        %v2721 = vadd.f32 %v2720, %v2573
        %2722 = vadd.xlane.f32.xlu0 %v2721
        %v2723 = vpop.xlane.xlu0 %2722
        %v2724 = vadd.f32 %v2041, %v2219
        %v2725 = vadd.f32 %v2724, %v2397
        %v2726 = vadd.f32 %v2725, %v2575
        %2727 = vadd.xlane.f32.xlu0 %v2726
        %v2728 = vpop.xlane.xlu0 %2727
        %v2729 = vadd.f32 %v2044, %v2222
        %v2730 = vadd.f32 %v2729, %v2400
        %v2731 = vadd.f32 %v2730, %v2578
        %2732 = vadd.xlane.f32.xlu0 %v2731
        %v2733 = vpop.xlane.xlu0 %2732
        %v2734 = vadd.f32 %v2046, %v2224
        %v2735 = vadd.f32 %v2734, %v2402
        %v2736 = vadd.f32 %v2735, %v2580
        %2737 = vadd.xlane.f32.xlu0 %v2736
        %v2738 = vpop.xlane.xlu0 %2737
        %v2739 = vadd.f32 %v2049, %v2227
        %v2740 = vadd.f32 %v2739, %v2405
        %v2741 = vadd.f32 %v2740, %v2583
        %2742 = vadd.xlane.f32.xlu0 %v2741
        %v2743 = vpop.xlane.xlu0 %2742
        %v2744 = vadd.f32 %v2051, %v2229
        %v2745 = vadd.f32 %v2744, %v2407
        %v2746 = vadd.f32 %v2745, %v2585
        %2747 = vadd.xlane.f32.xlu0 %v2746
        %v2748 = vpop.xlane.xlu0 %2747
        %v2749 = vrcp.pop 512.0
        %v2750 = vmul.f32 512.0, %v2749
        %v2751 = vsub.f32 1.0, %v2750
        %v2752 = vmul.f32 %v2749, %v2751
        %v2753 = vadd.f32 %v2749, %v2752
        %vm2754 = vweird.f32 %v2749
        %v2755 = vsel %vm2754, %v2749, %v2753
        %v2756 = vmul.f32 %v2593, %v2755
        %v2757 = vmul.f32 %v2598, %v2755
        %v2758 = vmul.f32 %v2603, %v2755
        %v2759 = vmul.f32 %v2608, %v2755
        %v2760 = vmul.f32 %v2613, %v2755
        %v2761 = vmul.f32 %v2618, %v2755
        %v2762 = vmul.f32 %v2623, %v2755
        %v2763 = vmul.f32 %v2628, %v2755
        %v2764 = vmul.f32 %v2633, %v2755
        %v2765 = vmul.f32 %v2638, %v2755
        %v2766 = vmul.f32 %v2643, %v2755
        %v2767 = vmul.f32 %v2648, %v2755
        %v2768 = vmul.f32 %v2653, %v2755
        %v2769 = vmul.f32 %v2658, %v2755
        %v2770 = vmul.f32 %v2663, %v2755
        %v2771 = vmul.f32 %v2668, %v2755
        %v2772 = vmul.f32 %v2673, %v2755
        %v2773 = vmul.f32 %v2678, %v2755
        %v2774 = vmul.f32 %v2683, %v2755
        %v2775 = vmul.f32 %v2688, %v2755
        %v2776 = vmul.f32 %v2693, %v2755
        %v2777 = vmul.f32 %v2698, %v2755
        %v2778 = vmul.f32 %v2703, %v2755
        %v2779 = vmul.f32 %v2708, %v2755
        %v2780 = vmul.f32 %v2713, %v2755
        %v2781 = vmul.f32 %v2718, %v2755
        %v2782 = vmul.f32 %v2723, %v2755
        %v2783 = vmul.f32 %v2728, %v2755
        %v2784 = vmul.f32 %v2733, %v2755
        %v2785 = vmul.f32 %v2738, %v2755
        %v2786 = vmul.f32 %v2743, %v2755
        %v2787 = vmul.f32 %v2748, %v2755
        %v2788 = vsub.f32 %v1974, %v2756
        %v2789 = vsub.f32 %v2152, %v2756
        %v2790 = vsub.f32 %v2330, %v2756
        %v2791 = vsub.f32 %v2508, %v2756
        %v2792 = vsub.f32 %v1976, %v2757
        %v2793 = vsub.f32 %v2154, %v2757
        %v2794 = vsub.f32 %v2332, %v2757
        %v2795 = vsub.f32 %v2510, %v2757
        %v2796 = vsub.f32 %v1979, %v2758
        %v2797 = vsub.f32 %v2157, %v2758
        %v2798 = vsub.f32 %v2335, %v2758
        %v2799 = vsub.f32 %v2513, %v2758
        %v2800 = vsub.f32 %v1981, %v2759
        %v2801 = vsub.f32 %v2159, %v2759
        %v2802 = vsub.f32 %v2337, %v2759
        %v2803 = vsub.f32 %v2515, %v2759
        %v2804 = vsub.f32 %v1984, %v2760
        %v2805 = vsub.f32 %v2162, %v2760
        %v2806 = vsub.f32 %v2340, %v2760
        %v2807 = vsub.f32 %v2518, %v2760
        %v2808 = vsub.f32 %v1986, %v2761
        %v2809 = vsub.f32 %v2164, %v2761
        %v2810 = vsub.f32 %v2342, %v2761
        %v2811 = vsub.f32 %v2520, %v2761
        %v2812 = vsub.f32 %v1989, %v2762
        %v2813 = vsub.f32 %v2167, %v2762
        %v2814 = vsub.f32 %v2345, %v2762
        %v2815 = vsub.f32 %v2523, %v2762
        %v2816 = vsub.f32 %v1991, %v2763
        %v2817 = vsub.f32 %v2169, %v2763
        %v2818 = vsub.f32 %v2347, %v2763
        %v2819 = vsub.f32 %v2525, %v2763
        %v2820 = vsub.f32 %v1994, %v2764
        %v2821 = vsub.f32 %v2172, %v2764
        %v2822 = vsub.f32 %v2350, %v2764
        %v2823 = vsub.f32 %v2528, %v2764
        %v2824 = vsub.f32 %v1996, %v2765
        %v2825 = vsub.f32 %v2174, %v2765
        %v2826 = vsub.f32 %v2352, %v2765
        %v2827 = vsub.f32 %v2530, %v2765
        %v2828 = vsub.f32 %v1999, %v2766
        %v2829 = vsub.f32 %v2177, %v2766
        %v2830 = vsub.f32 %v2355, %v2766
        %v2831 = vsub.f32 %v2533, %v2766
        %v2832 = vsub.f32 %v2001, %v2767
        %v2833 = vsub.f32 %v2179, %v2767
        %v2834 = vsub.f32 %v2357, %v2767
        %v2835 = vsub.f32 %v2535, %v2767
        %v2836 = vsub.f32 %v2004, %v2768
        %v2837 = vsub.f32 %v2182, %v2768
        %v2838 = vsub.f32 %v2360, %v2768
        %v2839 = vsub.f32 %v2538, %v2768
        %v2840 = vsub.f32 %v2006, %v2769
        %v2841 = vsub.f32 %v2184, %v2769
        %v2842 = vsub.f32 %v2362, %v2769
        %v2843 = vsub.f32 %v2540, %v2769
        %v2844 = vsub.f32 %v2009, %v2770
        %v2845 = vsub.f32 %v2187, %v2770
        %v2846 = vsub.f32 %v2365, %v2770
        %v2847 = vsub.f32 %v2543, %v2770
        %v2848 = vsub.f32 %v2011, %v2771
        %v2849 = vsub.f32 %v2189, %v2771
        %v2850 = vsub.f32 %v2367, %v2771
        %v2851 = vsub.f32 %v2545, %v2771
        %v2852 = vsub.f32 %v2014, %v2772
        %v2853 = vsub.f32 %v2192, %v2772
        %v2854 = vsub.f32 %v2370, %v2772
        %v2855 = vsub.f32 %v2548, %v2772
        %v2856 = vsub.f32 %v2016, %v2773
        %v2857 = vsub.f32 %v2194, %v2773
        %v2858 = vsub.f32 %v2372, %v2773
        %v2859 = vsub.f32 %v2550, %v2773
        %v2860 = vsub.f32 %v2019, %v2774
        %v2861 = vsub.f32 %v2197, %v2774
        %v2862 = vsub.f32 %v2375, %v2774
        %v2863 = vsub.f32 %v2553, %v2774
        %v2864 = vsub.f32 %v2021, %v2775
        %v2865 = vsub.f32 %v2199, %v2775
        %v2866 = vsub.f32 %v2377, %v2775
        %v2867 = vsub.f32 %v2555, %v2775
        %v2868 = vsub.f32 %v2024, %v2776
        %v2869 = vsub.f32 %v2202, %v2776
        %v2870 = vsub.f32 %v2380, %v2776
        %v2871 = vsub.f32 %v2558, %v2776
        %v2872 = vsub.f32 %v2026, %v2777
        %v2873 = vsub.f32 %v2204, %v2777
        %v2874 = vsub.f32 %v2382, %v2777
        %v2875 = vsub.f32 %v2560, %v2777
        %v2876 = vsub.f32 %v2029, %v2778
        %v2877 = vsub.f32 %v2207, %v2778
        %v2878 = vsub.f32 %v2385, %v2778
        %v2879 = vsub.f32 %v2563, %v2778
        %v2880 = vsub.f32 %v2031, %v2779
        %v2881 = vsub.f32 %v2209, %v2779
        %v2882 = vsub.f32 %v2387, %v2779
        %v2883 = vsub.f32 %v2565, %v2779
        %v2884 = vsub.f32 %v2034, %v2780
        %v2885 = vsub.f32 %v2212, %v2780
        %v2886 = vsub.f32 %v2390, %v2780
        %v2887 = vsub.f32 %v2568, %v2780
        %v2888 = vsub.f32 %v2036, %v2781
        %v2889 = vsub.f32 %v2214, %v2781
        %v2890 = vsub.f32 %v2392, %v2781
        %v2891 = vsub.f32 %v2570, %v2781
        %v2892 = vsub.f32 %v2039, %v2782
        %v2893 = vsub.f32 %v2217, %v2782
        %v2894 = vsub.f32 %v2395, %v2782
        %v2895 = vsub.f32 %v2573, %v2782
        %v2896 = vsub.f32 %v2041, %v2783
        %v2897 = vsub.f32 %v2219, %v2783
        %v2898 = vsub.f32 %v2397, %v2783
        %v2899 = vsub.f32 %v2575, %v2783
        %v2900 = vsub.f32 %v2044, %v2784
        %v2901 = vsub.f32 %v2222, %v2784
        %v2902 = vsub.f32 %v2400, %v2784
        %v2903 = vsub.f32 %v2578, %v2784
        %v2904 = vsub.f32 %v2046, %v2785
        %v2905 = vsub.f32 %v2224, %v2785
        %v2906 = vsub.f32 %v2402, %v2785
        %v2907 = vsub.f32 %v2580, %v2785
        %v2908 = vsub.f32 %v2049, %v2786
        %v2909 = vsub.f32 %v2227, %v2786
        %v2910 = vsub.f32 %v2405, %v2786
        %v2911 = vsub.f32 %v2583, %v2786
        %v2912 = vsub.f32 %v2051, %v2787
        %v2913 = vsub.f32 %v2229, %v2787
        %v2914 = vsub.f32 %v2407, %v2787
        %v2915 = vsub.f32 %v2585, %v2787
        %v2916 = vmul.f32 %v2788, %v2788
        %v2917 = vmul.f32 %v2789, %v2789
        %v2918 = vmul.f32 %v2790, %v2790
        %v2919 = vmul.f32 %v2791, %v2791
        %v2920 = vmul.f32 %v2792, %v2792
        %v2921 = vmul.f32 %v2793, %v2793
        %v2922 = vmul.f32 %v2794, %v2794
        %v2923 = vmul.f32 %v2795, %v2795
        %v2924 = vmul.f32 %v2796, %v2796
        %v2925 = vmul.f32 %v2797, %v2797
        %v2926 = vmul.f32 %v2798, %v2798
        %v2927 = vmul.f32 %v2799, %v2799
        %v2928 = vmul.f32 %v2800, %v2800
        %v2929 = vmul.f32 %v2801, %v2801
        %v2930 = vmul.f32 %v2802, %v2802
        %v2931 = vmul.f32 %v2803, %v2803
        %v2932 = vmul.f32 %v2804, %v2804
        %v2933 = vmul.f32 %v2805, %v2805
        %v2934 = vmul.f32 %v2806, %v2806
        %v2935 = vmul.f32 %v2807, %v2807
        %v2936 = vmul.f32 %v2808, %v2808
        %v2937 = vmul.f32 %v2809, %v2809
        %v2938 = vmul.f32 %v2810, %v2810
        %v2939 = vmul.f32 %v2811, %v2811
        %v2940 = vmul.f32 %v2812, %v2812
        %v2941 = vmul.f32 %v2813, %v2813
        %v2942 = vmul.f32 %v2814, %v2814
        %v2943 = vmul.f32 %v2815, %v2815
        %v2944 = vmul.f32 %v2816, %v2816
        %v2945 = vmul.f32 %v2817, %v2817
        %v2946 = vmul.f32 %v2818, %v2818
        %v2947 = vmul.f32 %v2819, %v2819
        %v2948 = vmul.f32 %v2820, %v2820
        %v2949 = vmul.f32 %v2821, %v2821
        %v2950 = vmul.f32 %v2822, %v2822
        %v2951 = vmul.f32 %v2823, %v2823
        %v2952 = vmul.f32 %v2824, %v2824
        %v2953 = vmul.f32 %v2825, %v2825
        %v2954 = vmul.f32 %v2826, %v2826
        %v2955 = vmul.f32 %v2827, %v2827
        %v2956 = vmul.f32 %v2828, %v2828
        %v2957 = vmul.f32 %v2829, %v2829
        %v2958 = vmul.f32 %v2830, %v2830
        %v2959 = vmul.f32 %v2831, %v2831
        %v2960 = vmul.f32 %v2832, %v2832
        %v2961 = vmul.f32 %v2833, %v2833
        %v2962 = vmul.f32 %v2834, %v2834
        %v2963 = vmul.f32 %v2835, %v2835
        %v2964 = vmul.f32 %v2836, %v2836
        %v2965 = vmul.f32 %v2837, %v2837
        %v2966 = vmul.f32 %v2838, %v2838
        %v2967 = vmul.f32 %v2839, %v2839
        %v2968 = vmul.f32 %v2840, %v2840
        %v2969 = vmul.f32 %v2841, %v2841
        %v2970 = vmul.f32 %v2842, %v2842
        %v2971 = vmul.f32 %v2843, %v2843
        %v2972 = vmul.f32 %v2844, %v2844
        %v2973 = vmul.f32 %v2845, %v2845
        %v2974 = vmul.f32 %v2846, %v2846
        %v2975 = vmul.f32 %v2847, %v2847
        %v2976 = vmul.f32 %v2848, %v2848
        %v2977 = vmul.f32 %v2849, %v2849
        %v2978 = vmul.f32 %v2850, %v2850
        %v2979 = vmul.f32 %v2851, %v2851
        %v2980 = vmul.f32 %v2852, %v2852
        %v2981 = vmul.f32 %v2853, %v2853
        %v2982 = vmul.f32 %v2854, %v2854
        %v2983 = vmul.f32 %v2855, %v2855
        %v2984 = vmul.f32 %v2856, %v2856
        %v2985 = vmul.f32 %v2857, %v2857
        %v2986 = vmul.f32 %v2858, %v2858
        %v2987 = vmul.f32 %v2859, %v2859
        %v2988 = vmul.f32 %v2860, %v2860
        %v2989 = vmul.f32 %v2861, %v2861
        %v2990 = vmul.f32 %v2862, %v2862
        %v2991 = vmul.f32 %v2863, %v2863
        %v2992 = vmul.f32 %v2864, %v2864
        %v2993 = vmul.f32 %v2865, %v2865
        %v2994 = vmul.f32 %v2866, %v2866
        %v2995 = vmul.f32 %v2867, %v2867
        %v2996 = vmul.f32 %v2868, %v2868
        %v2997 = vmul.f32 %v2869, %v2869
        %v2998 = vmul.f32 %v2870, %v2870
        %v2999 = vmul.f32 %v2871, %v2871
        %v3000 = vmul.f32 %v2872, %v2872
        %v3001 = vmul.f32 %v2873, %v2873
        %v3002 = vmul.f32 %v2874, %v2874
        %v3003 = vmul.f32 %v2875, %v2875
        %v3004 = vmul.f32 %v2876, %v2876
        %v3005 = vmul.f32 %v2877, %v2877
        %v3006 = vmul.f32 %v2878, %v2878
        %v3007 = vmul.f32 %v2879, %v2879
        %v3008 = vmul.f32 %v2880, %v2880
        %v3009 = vmul.f32 %v2881, %v2881
        %v3010 = vmul.f32 %v2882, %v2882
        %v3011 = vmul.f32 %v2883, %v2883
        %v3012 = vmul.f32 %v2884, %v2884
        %v3013 = vmul.f32 %v2885, %v2885
        %v3014 = vmul.f32 %v2886, %v2886
        %v3015 = vmul.f32 %v2887, %v2887
        %v3016 = vmul.f32 %v2888, %v2888
        %v3017 = vmul.f32 %v2889, %v2889
        %v3018 = vmul.f32 %v2890, %v2890
        %v3019 = vmul.f32 %v2891, %v2891
        %v3020 = vmul.f32 %v2892, %v2892
        %v3021 = vmul.f32 %v2893, %v2893
        %v3022 = vmul.f32 %v2894, %v2894
        %v3023 = vmul.f32 %v2895, %v2895
        %v3024 = vmul.f32 %v2896, %v2896
        %v3025 = vmul.f32 %v2897, %v2897
        %v3026 = vmul.f32 %v2898, %v2898
        %v3027 = vmul.f32 %v2899, %v2899
        %v3028 = vmul.f32 %v2900, %v2900
        %v3029 = vmul.f32 %v2901, %v2901
        %v3030 = vmul.f32 %v2902, %v2902
        %v3031 = vmul.f32 %v2903, %v2903
        %v3032 = vmul.f32 %v2904, %v2904
        %v3033 = vmul.f32 %v2905, %v2905
        %v3034 = vmul.f32 %v2906, %v2906
        %v3035 = vmul.f32 %v2907, %v2907
        %v3036 = vmul.f32 %v2908, %v2908
        %v3037 = vmul.f32 %v2909, %v2909
        %v3038 = vmul.f32 %v2910, %v2910
        %v3039 = vmul.f32 %v2911, %v2911
        %v3040 = vmul.f32 %v2912, %v2912
        %v3041 = vmul.f32 %v2913, %v2913
        %v3042 = vmul.f32 %v2914, %v2914
        %v3043 = vmul.f32 %v2915, %v2915
        %v3044 = vadd.f32 %v2916, %v2917
        %v3045 = vadd.f32 %v3044, %v2918
        %v3046 = vadd.f32 %v3045, %v2919
        %3047 = vadd.xlane.f32.xlu0 %v3046
        %v3048 = vpop.xlane.xlu0 %3047
        %v3049 = vadd.f32 %v2920, %v2921
        %v3050 = vadd.f32 %v3049, %v2922
        %v3051 = vadd.f32 %v3050, %v2923
        %3052 = vadd.xlane.f32.xlu0 %v3051
        %v3053 = vpop.xlane.xlu0 %3052
        %v3054 = vadd.f32 %v2924, %v2925
        %v3055 = vadd.f32 %v3054, %v2926
        %v3056 = vadd.f32 %v3055, %v2927
        %3057 = vadd.xlane.f32.xlu0 %v3056
        %v3058 = vpop.xlane.xlu0 %3057
        %v3059 = vadd.f32 %v2928, %v2929
        %v3060 = vadd.f32 %v3059, %v2930
        %v3061 = vadd.f32 %v3060, %v2931
        %3062 = vadd.xlane.f32.xlu0 %v3061
        %v3063 = vpop.xlane.xlu0 %3062
        %v3064 = vadd.f32 %v2932, %v2933
        %v3065 = vadd.f32 %v3064, %v2934
        %v3066 = vadd.f32 %v3065, %v2935
        %3067 = vadd.xlane.f32.xlu0 %v3066
        %v3068 = vpop.xlane.xlu0 %3067
        %v3069 = vadd.f32 %v2936, %v2937
        %v3070 = vadd.f32 %v3069, %v2938
        %v3071 = vadd.f32 %v3070, %v2939
        %3072 = vadd.xlane.f32.xlu0 %v3071
        %v3073 = vpop.xlane.xlu0 %3072
        %v3074 = vadd.f32 %v2940, %v2941
        %v3075 = vadd.f32 %v3074, %v2942
        %v3076 = vadd.f32 %v3075, %v2943
        %3077 = vadd.xlane.f32.xlu0 %v3076
        %v3078 = vpop.xlane.xlu0 %3077
        %v3079 = vadd.f32 %v2944, %v2945
        %v3080 = vadd.f32 %v3079, %v2946
        %v3081 = vadd.f32 %v3080, %v2947
        %3082 = vadd.xlane.f32.xlu0 %v3081
        %v3083 = vpop.xlane.xlu0 %3082
        %v3084 = vadd.f32 %v2948, %v2949
        %v3085 = vadd.f32 %v3084, %v2950
        %v3086 = vadd.f32 %v3085, %v2951
        %3087 = vadd.xlane.f32.xlu0 %v3086
        %v3088 = vpop.xlane.xlu0 %3087
        %v3089 = vadd.f32 %v2952, %v2953
        %v3090 = vadd.f32 %v3089, %v2954
        %v3091 = vadd.f32 %v3090, %v2955
        %3092 = vadd.xlane.f32.xlu0 %v3091
        %v3093 = vpop.xlane.xlu0 %3092
        %v3094 = vadd.f32 %v2956, %v2957
        %v3095 = vadd.f32 %v3094, %v2958
        %v3096 = vadd.f32 %v3095, %v2959
        %3097 = vadd.xlane.f32.xlu0 %v3096
        %v3098 = vpop.xlane.xlu0 %3097
        %v3099 = vadd.f32 %v2960, %v2961
        %v3100 = vadd.f32 %v3099, %v2962
        %v3101 = vadd.f32 %v3100, %v2963
        %3102 = vadd.xlane.f32.xlu0 %v3101
        %v3103 = vpop.xlane.xlu0 %3102
        %v3104 = vadd.f32 %v2964, %v2965
        %v3105 = vadd.f32 %v3104, %v2966
        %v3106 = vadd.f32 %v3105, %v2967
        %3107 = vadd.xlane.f32.xlu0 %v3106
        %v3108 = vpop.xlane.xlu0 %3107
        %v3109 = vadd.f32 %v2968, %v2969
        %v3110 = vadd.f32 %v3109, %v2970
        %v3111 = vadd.f32 %v3110, %v2971
        %3112 = vadd.xlane.f32.xlu0 %v3111
        %v3113 = vpop.xlane.xlu0 %3112
        %v3114 = vadd.f32 %v2972, %v2973
        %v3115 = vadd.f32 %v3114, %v2974
        %v3116 = vadd.f32 %v3115, %v2975
        %3117 = vadd.xlane.f32.xlu0 %v3116
        %v3118 = vpop.xlane.xlu0 %3117
        %v3119 = vadd.f32 %v2976, %v2977
        %v3120 = vadd.f32 %v3119, %v2978
        %v3121 = vadd.f32 %v3120, %v2979
        %3122 = vadd.xlane.f32.xlu0 %v3121
        %v3123 = vpop.xlane.xlu0 %3122
        %v3124 = vadd.f32 %v2980, %v2981
        %v3125 = vadd.f32 %v3124, %v2982
        %v3126 = vadd.f32 %v3125, %v2983
        %3127 = vadd.xlane.f32.xlu0 %v3126
        %v3128 = vpop.xlane.xlu0 %3127
        %v3129 = vadd.f32 %v2984, %v2985
        %v3130 = vadd.f32 %v3129, %v2986
        %v3131 = vadd.f32 %v3130, %v2987
        %3132 = vadd.xlane.f32.xlu0 %v3131
        %v3133 = vpop.xlane.xlu0 %3132
        %v3134 = vadd.f32 %v2988, %v2989
        %v3135 = vadd.f32 %v3134, %v2990
        %v3136 = vadd.f32 %v3135, %v2991
        %3137 = vadd.xlane.f32.xlu0 %v3136
        %v3138 = vpop.xlane.xlu0 %3137
        %v3139 = vadd.f32 %v2992, %v2993
        %v3140 = vadd.f32 %v3139, %v2994
        %v3141 = vadd.f32 %v3140, %v2995
        %3142 = vadd.xlane.f32.xlu0 %v3141
        %v3143 = vpop.xlane.xlu0 %3142
        %v3144 = vadd.f32 %v2996, %v2997
        %v3145 = vadd.f32 %v3144, %v2998
        %v3146 = vadd.f32 %v3145, %v2999
        %3147 = vadd.xlane.f32.xlu0 %v3146
        %v3148 = vpop.xlane.xlu0 %3147
        %v3149 = vadd.f32 %v3000, %v3001
        %v3150 = vadd.f32 %v3149, %v3002
        %v3151 = vadd.f32 %v3150, %v3003
        %3152 = vadd.xlane.f32.xlu0 %v3151
        %v3153 = vpop.xlane.xlu0 %3152
        %v3154 = vadd.f32 %v3004, %v3005
        %v3155 = vadd.f32 %v3154, %v3006
        %v3156 = vadd.f32 %v3155, %v3007
        %3157 = vadd.xlane.f32.xlu0 %v3156
        %v3158 = vpop.xlane.xlu0 %3157
        %v3159 = vadd.f32 %v3008, %v3009
        %v3160 = vadd.f32 %v3159, %v3010
        %v3161 = vadd.f32 %v3160, %v3011
        %3162 = vadd.xlane.f32.xlu0 %v3161
        %v3163 = vpop.xlane.xlu0 %3162
        %v3164 = vadd.f32 %v3012, %v3013
        %v3165 = vadd.f32 %v3164, %v3014
        %v3166 = vadd.f32 %v3165, %v3015
        %3167 = vadd.xlane.f32.xlu0 %v3166
        %v3168 = vpop.xlane.xlu0 %3167
        %v3169 = vadd.f32 %v3016, %v3017
        %v3170 = vadd.f32 %v3169, %v3018
        %v3171 = vadd.f32 %v3170, %v3019
        %3172 = vadd.xlane.f32.xlu0 %v3171
        %v3173 = vpop.xlane.xlu0 %3172
        %v3174 = vadd.f32 %v3020, %v3021
        %v3175 = vadd.f32 %v3174, %v3022
        %v3176 = vadd.f32 %v3175, %v3023
        %3177 = vadd.xlane.f32.xlu0 %v3176
        %v3178 = vpop.xlane.xlu0 %3177
        %v3179 = vadd.f32 %v3024, %v3025
        %v3180 = vadd.f32 %v3179, %v3026
        %v3181 = vadd.f32 %v3180, %v3027
        %3182 = vadd.xlane.f32.xlu0 %v3181
        %v3183 = vpop.xlane.xlu0 %3182
        %v3184 = vadd.f32 %v3028, %v3029
        %v3185 = vadd.f32 %v3184, %v3030
        %v3186 = vadd.f32 %v3185, %v3031
        %3187 = vadd.xlane.f32.xlu0 %v3186
        %v3188 = vpop.xlane.xlu0 %3187
        %v3189 = vadd.f32 %v3032, %v3033
        %v3190 = vadd.f32 %v3189, %v3034
        %v3191 = vadd.f32 %v3190, %v3035
        %3192 = vadd.xlane.f32.xlu0 %v3191
        %v3193 = vpop.xlane.xlu0 %3192
        %v3194 = vadd.f32 %v3036, %v3037
        %v3195 = vadd.f32 %v3194, %v3038
        %v3196 = vadd.f32 %v3195, %v3039
        %3197 = vadd.xlane.f32.xlu0 %v3196
        %v3198 = vpop.xlane.xlu0 %3197
        %v3199 = vadd.f32 %v3040, %v3041
        %v3200 = vadd.f32 %v3199, %v3042
        %v3201 = vadd.f32 %v3200, %v3043
        %3202 = vadd.xlane.f32.xlu0 %v3201
        %v3203 = vpop.xlane.xlu0 %3202
        %v3204 = vmul.f32 %v3048, %v2755
        %v3205 = vmul.f32 %v3053, %v2755
        %v3206 = vmul.f32 %v3058, %v2755
        %v3207 = vmul.f32 %v3063, %v2755
        %v3208 = vmul.f32 %v3068, %v2755
        %v3209 = vmul.f32 %v3073, %v2755
        %v3210 = vmul.f32 %v3078, %v2755
        %v3211 = vmul.f32 %v3083, %v2755
        %v3212 = vmul.f32 %v3088, %v2755
        %v3213 = vmul.f32 %v3093, %v2755
        %v3214 = vmul.f32 %v3098, %v2755
        %v3215 = vmul.f32 %v3103, %v2755
        %v3216 = vmul.f32 %v3108, %v2755
        %v3217 = vmul.f32 %v3113, %v2755
        %v3218 = vmul.f32 %v3118, %v2755
        %v3219 = vmul.f32 %v3123, %v2755
        %v3220 = vmul.f32 %v3128, %v2755
        %v3221 = vmul.f32 %v3133, %v2755
        %v3222 = vmul.f32 %v3138, %v2755
        %v3223 = vmul.f32 %v3143, %v2755
        %v3224 = vmul.f32 %v3148, %v2755
        %v3225 = vmul.f32 %v3153, %v2755
        %v3226 = vmul.f32 %v3158, %v2755
        %v3227 = vmul.f32 %v3163, %v2755
        %v3228 = vmul.f32 %v3168, %v2755
        %v3229 = vmul.f32 %v3173, %v2755
        %v3230 = vmul.f32 %v3178, %v2755
        %v3231 = vmul.f32 %v3183, %v2755
        %v3232 = vmul.f32 %v3188, %v2755
        %v3233 = vmul.f32 %v3193, %v2755
        %v3234 = vmul.f32 %v3198, %v2755
        %v3235 = vmul.f32 %v3203, %v2755
        %v3236 = vadd.f32 %v3204, 1e-05
        %v3237 = vadd.f32 %v3205, 1e-05
        %v3238 = vadd.f32 %v3206, 1e-05
        %v3239 = vadd.f32 %v3207, 1e-05
        %v3240 = vadd.f32 %v3208, 1e-05
        %v3241 = vadd.f32 %v3209, 1e-05
        %v3242 = vadd.f32 %v3210, 1e-05
        %v3243 = vadd.f32 %v3211, 1e-05
        %v3244 = vadd.f32 %v3212, 1e-05
        %v3245 = vadd.f32 %v3213, 1e-05
        %v3246 = vadd.f32 %v3214, 1e-05
        %v3247 = vadd.f32 %v3215, 1e-05
        %v3248 = vadd.f32 %v3216, 1e-05
        %v3249 = vadd.f32 %v3217, 1e-05
        %v3250 = vadd.f32 %v3218, 1e-05
        %v3251 = vadd.f32 %v3219, 1e-05
        %v3252 = vadd.f32 %v3220, 1e-05
        %v3253 = vadd.f32 %v3221, 1e-05
        %v3254 = vadd.f32 %v3222, 1e-05
        %v3255 = vadd.f32 %v3223, 1e-05
        %v3256 = vadd.f32 %v3224, 1e-05
        %v3257 = vadd.f32 %v3225, 1e-05
        %v3258 = vadd.f32 %v3226, 1e-05
        %v3259 = vadd.f32 %v3227, 1e-05
        %v3260 = vadd.f32 %v3228, 1e-05
        %v3261 = vadd.f32 %v3229, 1e-05
        %v3262 = vadd.f32 %v3230, 1e-05
        %v3263 = vadd.f32 %v3231, 1e-05
        %v3264 = vadd.f32 %v3232, 1e-05
        %v3265 = vadd.f32 %v3233, 1e-05
        %v3266 = vadd.f32 %v3234, 1e-05
        %v3267 = vadd.f32 %v3235, 1e-05
        %v3268 = vrsqrt.pop %v3236
        %v3269 = vmul.f32 %v3268, %v3236
        %v3270 = vmul.f32 %v3269, %v3268
        %v3271 = vmul.f32 0.5, %v3270
        %v3272 = vsub.f32 1.5, %v3271
        %v3273 = vmul.f32 %v3268, %v3272
        %vm3274 = vweird.f32 %v3236
        %vm3275 = vweird.f32 %v3268
        %vm3276 = vmor %vm3274, %vm3275
        %v3277 = vsel %vm3276, %v3268, %v3273
        %v3278 = vrsqrt.pop %v3237
        %v3279 = vmul.f32 %v3278, %v3237
        %v3280 = vmul.f32 %v3279, %v3278
        %v3281 = vmul.f32 0.5, %v3280
        %v3282 = vsub.f32 1.5, %v3281
        %v3283 = vmul.f32 %v3278, %v3282
        %vm3284 = vweird.f32 %v3237
        %vm3285 = vweird.f32 %v3278
        %vm3286 = vmor %vm3284, %vm3285
        %v3287 = vsel %vm3286, %v3278, %v3283
        %v3288 = vrsqrt.pop %v3238
        %v3289 = vmul.f32 %v3288, %v3238
        %v3290 = vmul.f32 %v3289, %v3288
        %v3291 = vmul.f32 0.5, %v3290
        %v3292 = vsub.f32 1.5, %v3291
        %v3293 = vmul.f32 %v3288, %v3292
        %vm3294 = vweird.f32 %v3238
        %vm3295 = vweird.f32 %v3288
        %vm3296 = vmor %vm3294, %vm3295
        %v3297 = vsel %vm3296, %v3288, %v3293
        %v3298 = vrsqrt.pop %v3239
        %v3299 = vmul.f32 %v3298, %v3239
        %v3300 = vmul.f32 %v3299, %v3298
        %v3301 = vmul.f32 0.5, %v3300
        %v3302 = vsub.f32 1.5, %v3301
        %v3303 = vmul.f32 %v3298, %v3302
        %vm3304 = vweird.f32 %v3239
        %vm3305 = vweird.f32 %v3298
        %vm3306 = vmor %vm3304, %vm3305
        %v3307 = vsel %vm3306, %v3298, %v3303
        %v3308 = vrsqrt.pop %v3240
        %v3309 = vmul.f32 %v3308, %v3240
        %v3310 = vmul.f32 %v3309, %v3308
        %v3311 = vmul.f32 0.5, %v3310
        %v3312 = vsub.f32 1.5, %v3311
        %v3313 = vmul.f32 %v3308, %v3312
        %vm3314 = vweird.f32 %v3240
        %vm3315 = vweird.f32 %v3308
        %vm3316 = vmor %vm3314, %vm3315
        %v3317 = vsel %vm3316, %v3308, %v3313
        %v3318 = vrsqrt.pop %v3241
        %v3319 = vmul.f32 %v3318, %v3241
        %v3320 = vmul.f32 %v3319, %v3318
        %v3321 = vmul.f32 0.5, %v3320
        %v3322 = vsub.f32 1.5, %v3321
        %v3323 = vmul.f32 %v3318, %v3322
        %vm3324 = vweird.f32 %v3241
        %vm3325 = vweird.f32 %v3318
        %vm3326 = vmor %vm3324, %vm3325
        %v3327 = vsel %vm3326, %v3318, %v3323
        %v3328 = vrsqrt.pop %v3242
        %v3329 = vmul.f32 %v3328, %v3242
        %v3330 = vmul.f32 %v3329, %v3328
        %v3331 = vmul.f32 0.5, %v3330
        %v3332 = vsub.f32 1.5, %v3331
        %v3333 = vmul.f32 %v3328, %v3332
        %vm3334 = vweird.f32 %v3242
        %vm3335 = vweird.f32 %v3328
        %vm3336 = vmor %vm3334, %vm3335
        %v3337 = vsel %vm3336, %v3328, %v3333
        %v3338 = vrsqrt.pop %v3243
        %v3339 = vmul.f32 %v3338, %v3243
        %v3340 = vmul.f32 %v3339, %v3338
        %v3341 = vmul.f32 0.5, %v3340
        %v3342 = vsub.f32 1.5, %v3341
        %v3343 = vmul.f32 %v3338, %v3342
        %vm3344 = vweird.f32 %v3243
        %vm3345 = vweird.f32 %v3338
        %vm3346 = vmor %vm3344, %vm3345
        %v3347 = vsel %vm3346, %v3338, %v3343
        %v3348 = vrsqrt.pop %v3244
        %v3349 = vmul.f32 %v3348, %v3244
        %v3350 = vmul.f32 %v3349, %v3348
        %v3351 = vmul.f32 0.5, %v3350
        %v3352 = vsub.f32 1.5, %v3351
        %v3353 = vmul.f32 %v3348, %v3352
        %vm3354 = vweird.f32 %v3244
        %vm3355 = vweird.f32 %v3348
        %vm3356 = vmor %vm3354, %vm3355
        %v3357 = vsel %vm3356, %v3348, %v3353
        %v3358 = vrsqrt.pop %v3245
        %v3359 = vmul.f32 %v3358, %v3245
        %v3360 = vmul.f32 %v3359, %v3358
        %v3361 = vmul.f32 0.5, %v3360
        %v3362 = vsub.f32 1.5, %v3361
        %v3363 = vmul.f32 %v3358, %v3362
        %vm3364 = vweird.f32 %v3245
        %vm3365 = vweird.f32 %v3358
        %vm3366 = vmor %vm3364, %vm3365
        %v3367 = vsel %vm3366, %v3358, %v3363
        %v3368 = vrsqrt.pop %v3246
        %v3369 = vmul.f32 %v3368, %v3246
        %v3370 = vmul.f32 %v3369, %v3368
        %v3371 = vmul.f32 0.5, %v3370
        %v3372 = vsub.f32 1.5, %v3371
        %v3373 = vmul.f32 %v3368, %v3372
        %vm3374 = vweird.f32 %v3246
        %vm3375 = vweird.f32 %v3368
        %vm3376 = vmor %vm3374, %vm3375
        %v3377 = vsel %vm3376, %v3368, %v3373
        %v3378 = vrsqrt.pop %v3247
        %v3379 = vmul.f32 %v3378, %v3247
        %v3380 = vmul.f32 %v3379, %v3378
        %v3381 = vmul.f32 0.5, %v3380
        %v3382 = vsub.f32 1.5, %v3381
        %v3383 = vmul.f32 %v3378, %v3382
        %vm3384 = vweird.f32 %v3247
        %vm3385 = vweird.f32 %v3378
        %vm3386 = vmor %vm3384, %vm3385
        %v3387 = vsel %vm3386, %v3378, %v3383
        %v3388 = vrsqrt.pop %v3248
        %v3389 = vmul.f32 %v3388, %v3248
        %v3390 = vmul.f32 %v3389, %v3388
        %v3391 = vmul.f32 0.5, %v3390
        %v3392 = vsub.f32 1.5, %v3391
        %v3393 = vmul.f32 %v3388, %v3392
        %vm3394 = vweird.f32 %v3248
        %vm3395 = vweird.f32 %v3388
        %vm3396 = vmor %vm3394, %vm3395
        %v3397 = vsel %vm3396, %v3388, %v3393
        %v3398 = vrsqrt.pop %v3249
        %v3399 = vmul.f32 %v3398, %v3249
        %v3400 = vmul.f32 %v3399, %v3398
        %v3401 = vmul.f32 0.5, %v3400
        %v3402 = vsub.f32 1.5, %v3401
        %v3403 = vmul.f32 %v3398, %v3402
        %vm3404 = vweird.f32 %v3249
        %vm3405 = vweird.f32 %v3398
        %vm3406 = vmor %vm3404, %vm3405
        %v3407 = vsel %vm3406, %v3398, %v3403
        %v3408 = vrsqrt.pop %v3250
        %v3409 = vmul.f32 %v3408, %v3250
        %v3410 = vmul.f32 %v3409, %v3408
        %v3411 = vmul.f32 0.5, %v3410
        %v3412 = vsub.f32 1.5, %v3411
        %v3413 = vmul.f32 %v3408, %v3412
        %vm3414 = vweird.f32 %v3250
        %vm3415 = vweird.f32 %v3408
        %vm3416 = vmor %vm3414, %vm3415
        %v3417 = vsel %vm3416, %v3408, %v3413
        %v3418 = vrsqrt.pop %v3251
        %v3419 = vmul.f32 %v3418, %v3251
        %v3420 = vmul.f32 %v3419, %v3418
        %v3421 = vmul.f32 0.5, %v3420
        %v3422 = vsub.f32 1.5, %v3421
        %v3423 = vmul.f32 %v3418, %v3422
        %vm3424 = vweird.f32 %v3251
        %vm3425 = vweird.f32 %v3418
        %vm3426 = vmor %vm3424, %vm3425
        %v3427 = vsel %vm3426, %v3418, %v3423
        %v3428 = vrsqrt.pop %v3252
        %v3429 = vmul.f32 %v3428, %v3252
        %v3430 = vmul.f32 %v3429, %v3428
        %v3431 = vmul.f32 0.5, %v3430
        %v3432 = vsub.f32 1.5, %v3431
        %v3433 = vmul.f32 %v3428, %v3432
        %vm3434 = vweird.f32 %v3252
        %vm3435 = vweird.f32 %v3428
        %vm3436 = vmor %vm3434, %vm3435
        %v3437 = vsel %vm3436, %v3428, %v3433
        %v3438 = vrsqrt.pop %v3253
        %v3439 = vmul.f32 %v3438, %v3253
        %v3440 = vmul.f32 %v3439, %v3438
        %v3441 = vmul.f32 0.5, %v3440
        %v3442 = vsub.f32 1.5, %v3441
        %v3443 = vmul.f32 %v3438, %v3442
        %vm3444 = vweird.f32 %v3253
        %vm3445 = vweird.f32 %v3438
        %vm3446 = vmor %vm3444, %vm3445
        %v3447 = vsel %vm3446, %v3438, %v3443
        %v3448 = vrsqrt.pop %v3254
        %v3449 = vmul.f32 %v3448, %v3254
        %v3450 = vmul.f32 %v3449, %v3448
        %v3451 = vmul.f32 0.5, %v3450
        %v3452 = vsub.f32 1.5, %v3451
        %v3453 = vmul.f32 %v3448, %v3452
        %vm3454 = vweird.f32 %v3254
        %vm3455 = vweird.f32 %v3448
        %vm3456 = vmor %vm3454, %vm3455
        %v3457 = vsel %vm3456, %v3448, %v3453
        %v3458 = vrsqrt.pop %v3255
        %v3459 = vmul.f32 %v3458, %v3255
        %v3460 = vmul.f32 %v3459, %v3458
        %v3461 = vmul.f32 0.5, %v3460
        %v3462 = vsub.f32 1.5, %v3461
        %v3463 = vmul.f32 %v3458, %v3462
        %vm3464 = vweird.f32 %v3255
        %vm3465 = vweird.f32 %v3458
        %vm3466 = vmor %vm3464, %vm3465
        %v3467 = vsel %vm3466, %v3458, %v3463
        %v3468 = vrsqrt.pop %v3256
        %v3469 = vmul.f32 %v3468, %v3256
        %v3470 = vmul.f32 %v3469, %v3468
        %v3471 = vmul.f32 0.5, %v3470
        %v3472 = vsub.f32 1.5, %v3471
        %v3473 = vmul.f32 %v3468, %v3472
        %vm3474 = vweird.f32 %v3256
        %vm3475 = vweird.f32 %v3468
        %vm3476 = vmor %vm3474, %vm3475
        %v3477 = vsel %vm3476, %v3468, %v3473
        %v3478 = vrsqrt.pop %v3257
        %v3479 = vmul.f32 %v3478, %v3257
        %v3480 = vmul.f32 %v3479, %v3478
        %v3481 = vmul.f32 0.5, %v3480
        %v3482 = vsub.f32 1.5, %v3481
        %v3483 = vmul.f32 %v3478, %v3482
        %vm3484 = vweird.f32 %v3257
        %vm3485 = vweird.f32 %v3478
        %vm3486 = vmor %vm3484, %vm3485
        %v3487 = vsel %vm3486, %v3478, %v3483
        %v3488 = vrsqrt.pop %v3258
        %v3489 = vmul.f32 %v3488, %v3258
        %v3490 = vmul.f32 %v3489, %v3488
        %v3491 = vmul.f32 0.5, %v3490
        %v3492 = vsub.f32 1.5, %v3491
        %v3493 = vmul.f32 %v3488, %v3492
        %vm3494 = vweird.f32 %v3258
        %vm3495 = vweird.f32 %v3488
        %vm3496 = vmor %vm3494, %vm3495
        %v3497 = vsel %vm3496, %v3488, %v3493
        %v3498 = vrsqrt.pop %v3259
        %v3499 = vmul.f32 %v3498, %v3259
        %v3500 = vmul.f32 %v3499, %v3498
        %v3501 = vmul.f32 0.5, %v3500
        %v3502 = vsub.f32 1.5, %v3501
        %v3503 = vmul.f32 %v3498, %v3502
        %vm3504 = vweird.f32 %v3259
        %vm3505 = vweird.f32 %v3498
        %vm3506 = vmor %vm3504, %vm3505
        %v3507 = vsel %vm3506, %v3498, %v3503
        %v3508 = vrsqrt.pop %v3260
        %v3509 = vmul.f32 %v3508, %v3260
        %v3510 = vmul.f32 %v3509, %v3508
        %v3511 = vmul.f32 0.5, %v3510
        %v3512 = vsub.f32 1.5, %v3511
        %v3513 = vmul.f32 %v3508, %v3512
        %vm3514 = vweird.f32 %v3260
        %vm3515 = vweird.f32 %v3508
        %vm3516 = vmor %vm3514, %vm3515
        %v3517 = vsel %vm3516, %v3508, %v3513
        %v3518 = vrsqrt.pop %v3261
        %v3519 = vmul.f32 %v3518, %v3261
        %v3520 = vmul.f32 %v3519, %v3518
        %v3521 = vmul.f32 0.5, %v3520
        %v3522 = vsub.f32 1.5, %v3521
        %v3523 = vmul.f32 %v3518, %v3522
        %vm3524 = vweird.f32 %v3261
        %vm3525 = vweird.f32 %v3518
        %vm3526 = vmor %vm3524, %vm3525
        %v3527 = vsel %vm3526, %v3518, %v3523
        %v3528 = vrsqrt.pop %v3262
        %v3529 = vmul.f32 %v3528, %v3262
        %v3530 = vmul.f32 %v3529, %v3528
        %v3531 = vmul.f32 0.5, %v3530
        %v3532 = vsub.f32 1.5, %v3531
        %v3533 = vmul.f32 %v3528, %v3532
        %vm3534 = vweird.f32 %v3262
        %vm3535 = vweird.f32 %v3528
        %vm3536 = vmor %vm3534, %vm3535
        %v3537 = vsel %vm3536, %v3528, %v3533
        %v3538 = vrsqrt.pop %v3263
        %v3539 = vmul.f32 %v3538, %v3263
        %v3540 = vmul.f32 %v3539, %v3538
        %v3541 = vmul.f32 0.5, %v3540
        %v3542 = vsub.f32 1.5, %v3541
        %v3543 = vmul.f32 %v3538, %v3542
        %vm3544 = vweird.f32 %v3263
        %vm3545 = vweird.f32 %v3538
        %vm3546 = vmor %vm3544, %vm3545
        %v3547 = vsel %vm3546, %v3538, %v3543
        %v3548 = vrsqrt.pop %v3264
        %v3549 = vmul.f32 %v3548, %v3264
        %v3550 = vmul.f32 %v3549, %v3548
        %v3551 = vmul.f32 0.5, %v3550
        %v3552 = vsub.f32 1.5, %v3551
        %v3553 = vmul.f32 %v3548, %v3552
        %vm3554 = vweird.f32 %v3264
        %vm3555 = vweird.f32 %v3548
        %vm3556 = vmor %vm3554, %vm3555
        %v3557 = vsel %vm3556, %v3548, %v3553
        %v3558 = vrsqrt.pop %v3265
        %v3559 = vmul.f32 %v3558, %v3265
        %v3560 = vmul.f32 %v3559, %v3558
        %v3561 = vmul.f32 0.5, %v3560
        %v3562 = vsub.f32 1.5, %v3561
        %v3563 = vmul.f32 %v3558, %v3562
        %vm3564 = vweird.f32 %v3265
        %vm3565 = vweird.f32 %v3558
        %vm3566 = vmor %vm3564, %vm3565
        %v3567 = vsel %vm3566, %v3558, %v3563
        %v3568 = vrsqrt.pop %v3266
        %v3569 = vmul.f32 %v3568, %v3266
        %v3570 = vmul.f32 %v3569, %v3568
        %v3571 = vmul.f32 0.5, %v3570
        %v3572 = vsub.f32 1.5, %v3571
        %v3573 = vmul.f32 %v3568, %v3572
        %vm3574 = vweird.f32 %v3266
        %vm3575 = vweird.f32 %v3568
        %vm3576 = vmor %vm3574, %vm3575
        %v3577 = vsel %vm3576, %v3568, %v3573
        %v3578 = vrsqrt.pop %v3267
        %v3579 = vmul.f32 %v3578, %v3267
        %v3580 = vmul.f32 %v3579, %v3578
        %v3581 = vmul.f32 0.5, %v3580
        %v3582 = vsub.f32 1.5, %v3581
        %v3583 = vmul.f32 %v3578, %v3582
        %vm3584 = vweird.f32 %v3267
        %vm3585 = vweird.f32 %v3578
        %vm3586 = vmor %vm3584, %vm3585
        %v3587 = vsel %vm3586, %v3578, %v3583
        %v3588 = vmul.f32 %v2788, %v3277
        %v3589 = vmul.f32 %v2789, %v3277
        %v3590 = vmul.f32 %v2790, %v3277
        %v3591 = vmul.f32 %v2791, %v3277
        %v3592 = vmul.f32 %v2792, %v3287
        %v3593 = vmul.f32 %v2793, %v3287
        %v3594 = vmul.f32 %v2794, %v3287
        %v3595 = vmul.f32 %v2795, %v3287
        %v3596 = vmul.f32 %v2796, %v3297
        %v3597 = vmul.f32 %v2797, %v3297
        %v3598 = vmul.f32 %v2798, %v3297
        %v3599 = vmul.f32 %v2799, %v3297
        %v3600 = vmul.f32 %v2800, %v3307
        %v3601 = vmul.f32 %v2801, %v3307
        %v3602 = vmul.f32 %v2802, %v3307
        %v3603 = vmul.f32 %v2803, %v3307
        %v3604 = vmul.f32 %v2804, %v3317
        %v3605 = vmul.f32 %v2805, %v3317
        %v3606 = vmul.f32 %v2806, %v3317
        %v3607 = vmul.f32 %v2807, %v3317
        %v3608 = vmul.f32 %v2808, %v3327
        %v3609 = vmul.f32 %v2809, %v3327
        %v3610 = vmul.f32 %v2810, %v3327
        %v3611 = vmul.f32 %v2811, %v3327
        %v3612 = vmul.f32 %v2812, %v3337
        %v3613 = vmul.f32 %v2813, %v3337
        %v3614 = vmul.f32 %v2814, %v3337
        %v3615 = vmul.f32 %v2815, %v3337
        %v3616 = vmul.f32 %v2816, %v3347
        %v3617 = vmul.f32 %v2817, %v3347
        %v3618 = vmul.f32 %v2818, %v3347
        %v3619 = vmul.f32 %v2819, %v3347
        %v3620 = vmul.f32 %v2820, %v3357
        %v3621 = vmul.f32 %v2821, %v3357
        %v3622 = vmul.f32 %v2822, %v3357
        %v3623 = vmul.f32 %v2823, %v3357
        %v3624 = vmul.f32 %v2824, %v3367
        %v3625 = vmul.f32 %v2825, %v3367
        %v3626 = vmul.f32 %v2826, %v3367
        %v3627 = vmul.f32 %v2827, %v3367
        %v3628 = vmul.f32 %v2828, %v3377
        %v3629 = vmul.f32 %v2829, %v3377
        %v3630 = vmul.f32 %v2830, %v3377
        %v3631 = vmul.f32 %v2831, %v3377
        %v3632 = vmul.f32 %v2832, %v3387
        %v3633 = vmul.f32 %v2833, %v3387
        %v3634 = vmul.f32 %v2834, %v3387
        %v3635 = vmul.f32 %v2835, %v3387
        %v3636 = vmul.f32 %v2836, %v3397
        %v3637 = vmul.f32 %v2837, %v3397
        %v3638 = vmul.f32 %v2838, %v3397
        %v3639 = vmul.f32 %v2839, %v3397
        %v3640 = vmul.f32 %v2840, %v3407
        %v3641 = vmul.f32 %v2841, %v3407
        %v3642 = vmul.f32 %v2842, %v3407
        %v3643 = vmul.f32 %v2843, %v3407
        %v3644 = vmul.f32 %v2844, %v3417
        %v3645 = vmul.f32 %v2845, %v3417
        %v3646 = vmul.f32 %v2846, %v3417
        %v3647 = vmul.f32 %v2847, %v3417
        %v3648 = vmul.f32 %v2848, %v3427
        %v3649 = vmul.f32 %v2849, %v3427
        %v3650 = vmul.f32 %v2850, %v3427
        %v3651 = vmul.f32 %v2851, %v3427
        %v3652 = vmul.f32 %v2852, %v3437
        %v3653 = vmul.f32 %v2853, %v3437
        %v3654 = vmul.f32 %v2854, %v3437
        %v3655 = vmul.f32 %v2855, %v3437
        %v3656 = vmul.f32 %v2856, %v3447
        %v3657 = vmul.f32 %v2857, %v3447
        %v3658 = vmul.f32 %v2858, %v3447
        %v3659 = vmul.f32 %v2859, %v3447
        %v3660 = vmul.f32 %v2860, %v3457
        %v3661 = vmul.f32 %v2861, %v3457
        %v3662 = vmul.f32 %v2862, %v3457
        %v3663 = vmul.f32 %v2863, %v3457
        %v3664 = vmul.f32 %v2864, %v3467
        %v3665 = vmul.f32 %v2865, %v3467
        %v3666 = vmul.f32 %v2866, %v3467
        %v3667 = vmul.f32 %v2867, %v3467
        %v3668 = vmul.f32 %v2868, %v3477
        %v3669 = vmul.f32 %v2869, %v3477
        %v3670 = vmul.f32 %v2870, %v3477
        %v3671 = vmul.f32 %v2871, %v3477
        %v3672 = vmul.f32 %v2872, %v3487
        %v3673 = vmul.f32 %v2873, %v3487
        %v3674 = vmul.f32 %v2874, %v3487
        %v3675 = vmul.f32 %v2875, %v3487
        %v3676 = vmul.f32 %v2876, %v3497
        %v3677 = vmul.f32 %v2877, %v3497
        %v3678 = vmul.f32 %v2878, %v3497
        %v3679 = vmul.f32 %v2879, %v3497
        %v3680 = vmul.f32 %v2880, %v3507
        %v3681 = vmul.f32 %v2881, %v3507
        %v3682 = vmul.f32 %v2882, %v3507
        %v3683 = vmul.f32 %v2883, %v3507
        %v3684 = vmul.f32 %v2884, %v3517
        %v3685 = vmul.f32 %v2885, %v3517
        %v3686 = vmul.f32 %v2886, %v3517
        %v3687 = vmul.f32 %v2887, %v3517
        %v3688 = vmul.f32 %v2888, %v3527
        %v3689 = vmul.f32 %v2889, %v3527
        %v3690 = vmul.f32 %v2890, %v3527
        %v3691 = vmul.f32 %v2891, %v3527
        %v3692 = vmul.f32 %v2892, %v3537
        %v3693 = vmul.f32 %v2893, %v3537
        %v3694 = vmul.f32 %v2894, %v3537
        %v3695 = vmul.f32 %v2895, %v3537
        %v3696 = vmul.f32 %v2896, %v3547
        %v3697 = vmul.f32 %v2897, %v3547
        %v3698 = vmul.f32 %v2898, %v3547
        %v3699 = vmul.f32 %v2899, %v3547
        %v3700 = vmul.f32 %v2900, %v3557
        %v3701 = vmul.f32 %v2901, %v3557
        %v3702 = vmul.f32 %v2902, %v3557
        %v3703 = vmul.f32 %v2903, %v3557
        %v3704 = vmul.f32 %v2904, %v3567
        %v3705 = vmul.f32 %v2905, %v3567
        %v3706 = vmul.f32 %v2906, %v3567
        %v3707 = vmul.f32 %v2907, %v3567
        %v3708 = vmul.f32 %v2908, %v3577
        %v3709 = vmul.f32 %v2909, %v3577
        %v3710 = vmul.f32 %v2910, %v3577
        %v3711 = vmul.f32 %v2911, %v3577
        %v3712 = vmul.f32 %v2912, %v3587
        %v3713 = vmul.f32 %v2913, %v3587
        %v3714 = vmul.f32 %v2914, %v3587
        %v3715 = vmul.f32 %v2915, %v3587
        %v3717 = vperm.slane %v2587, 0
        %v3718 = vperm.slane %v2587, 1
        %v3719 = vperm.slane %v2587, 2
        %v3720 = vperm.slane %v2587, 3
        %v3725 = vmul.f32 %v3588, %v3717
        %v3726 = vmul.f32 %v3589, %v3718
        %v3727 = vmul.f32 %v3590, %v3719
        %v3728 = vmul.f32 %v3591, %v3720
        %v3729 = vmul.f32 %v3592, %v3717
        %v3730 = vmul.f32 %v3593, %v3718
        %v3731 = vmul.f32 %v3594, %v3719
        %v3732 = vmul.f32 %v3595, %v3720
        %v3733 = vmul.f32 %v3596, %v3717
        %v3734 = vmul.f32 %v3597, %v3718
        %v3735 = vmul.f32 %v3598, %v3719
        %v3736 = vmul.f32 %v3599, %v3720
        %v3737 = vmul.f32 %v3600, %v3717
        %v3738 = vmul.f32 %v3601, %v3718
        %v3739 = vmul.f32 %v3602, %v3719
        %v3740 = vmul.f32 %v3603, %v3720
        %v3741 = vmul.f32 %v3604, %v3717
        %v3742 = vmul.f32 %v3605, %v3718
        %v3743 = vmul.f32 %v3606, %v3719
        %v3744 = vmul.f32 %v3607, %v3720
        %v3745 = vmul.f32 %v3608, %v3717
        %v3746 = vmul.f32 %v3609, %v3718
        %v3747 = vmul.f32 %v3610, %v3719
        %v3748 = vmul.f32 %v3611, %v3720
        %v3749 = vmul.f32 %v3612, %v3717
        %v3750 = vmul.f32 %v3613, %v3718
        %v3751 = vmul.f32 %v3614, %v3719
        %v3752 = vmul.f32 %v3615, %v3720
        %v3753 = vmul.f32 %v3616, %v3717
        %v3754 = vmul.f32 %v3617, %v3718
        %v3755 = vmul.f32 %v3618, %v3719
        %v3756 = vmul.f32 %v3619, %v3720
        %v3757 = vmul.f32 %v3620, %v3717
        %v3758 = vmul.f32 %v3621, %v3718
        %v3759 = vmul.f32 %v3622, %v3719
        %v3760 = vmul.f32 %v3623, %v3720
        %v3761 = vmul.f32 %v3624, %v3717
        %v3762 = vmul.f32 %v3625, %v3718
        %v3763 = vmul.f32 %v3626, %v3719
        %v3764 = vmul.f32 %v3627, %v3720
        %v3765 = vmul.f32 %v3628, %v3717
        %v3766 = vmul.f32 %v3629, %v3718
        %v3767 = vmul.f32 %v3630, %v3719
        %v3768 = vmul.f32 %v3631, %v3720
        %v3769 = vmul.f32 %v3632, %v3717
        %v3770 = vmul.f32 %v3633, %v3718
        %v3771 = vmul.f32 %v3634, %v3719
        %v3772 = vmul.f32 %v3635, %v3720
        %v3773 = vmul.f32 %v3636, %v3717
        %v3774 = vmul.f32 %v3637, %v3718
        %v3775 = vmul.f32 %v3638, %v3719
        %v3776 = vmul.f32 %v3639, %v3720
        %v3777 = vmul.f32 %v3640, %v3717
        %v3778 = vmul.f32 %v3641, %v3718
        %v3779 = vmul.f32 %v3642, %v3719
        %v3780 = vmul.f32 %v3643, %v3720
        %v3781 = vmul.f32 %v3644, %v3717
        %v3782 = vmul.f32 %v3645, %v3718
        %v3783 = vmul.f32 %v3646, %v3719
        %v3784 = vmul.f32 %v3647, %v3720
        %v3785 = vmul.f32 %v3648, %v3717
        %v3786 = vmul.f32 %v3649, %v3718
        %v3787 = vmul.f32 %v3650, %v3719
        %v3788 = vmul.f32 %v3651, %v3720
        %v3789 = vmul.f32 %v3652, %v3717
        %v3790 = vmul.f32 %v3653, %v3718
        %v3791 = vmul.f32 %v3654, %v3719
        %v3792 = vmul.f32 %v3655, %v3720
        %v3793 = vmul.f32 %v3656, %v3717
        %v3794 = vmul.f32 %v3657, %v3718
        %v3795 = vmul.f32 %v3658, %v3719
        %v3796 = vmul.f32 %v3659, %v3720
        %v3797 = vmul.f32 %v3660, %v3717
        %v3798 = vmul.f32 %v3661, %v3718
        %v3799 = vmul.f32 %v3662, %v3719
        %v3800 = vmul.f32 %v3663, %v3720
        %v3801 = vmul.f32 %v3664, %v3717
        %v3802 = vmul.f32 %v3665, %v3718
        %v3803 = vmul.f32 %v3666, %v3719
        %v3804 = vmul.f32 %v3667, %v3720
        %v3805 = vmul.f32 %v3668, %v3717
        %v3806 = vmul.f32 %v3669, %v3718
        %v3807 = vmul.f32 %v3670, %v3719
        %v3808 = vmul.f32 %v3671, %v3720
        %v3809 = vmul.f32 %v3672, %v3717
        %v3810 = vmul.f32 %v3673, %v3718
        %v3811 = vmul.f32 %v3674, %v3719
        %v3812 = vmul.f32 %v3675, %v3720
        %v3813 = vmul.f32 %v3676, %v3717
        %v3814 = vmul.f32 %v3677, %v3718
        %v3815 = vmul.f32 %v3678, %v3719
        %v3816 = vmul.f32 %v3679, %v3720
        %v3817 = vmul.f32 %v3680, %v3717
        %v3818 = vmul.f32 %v3681, %v3718
        %v3819 = vmul.f32 %v3682, %v3719
        %v3820 = vmul.f32 %v3683, %v3720
        %v3821 = vmul.f32 %v3684, %v3717
        %v3822 = vmul.f32 %v3685, %v3718
        %v3823 = vmul.f32 %v3686, %v3719
        %v3824 = vmul.f32 %v3687, %v3720
        %v3825 = vmul.f32 %v3688, %v3717
        %v3826 = vmul.f32 %v3689, %v3718
        %v3827 = vmul.f32 %v3690, %v3719
        %v3828 = vmul.f32 %v3691, %v3720
        %v3829 = vmul.f32 %v3692, %v3717
        %v3830 = vmul.f32 %v3693, %v3718
        %v3831 = vmul.f32 %v3694, %v3719
        %v3832 = vmul.f32 %v3695, %v3720
        %v3833 = vmul.f32 %v3696, %v3717
        %v3834 = vmul.f32 %v3697, %v3718
        %v3835 = vmul.f32 %v3698, %v3719
        %v3836 = vmul.f32 %v3699, %v3720
        %v3837 = vmul.f32 %v3700, %v3717
        %v3838 = vmul.f32 %v3701, %v3718
        %v3839 = vmul.f32 %v3702, %v3719
        %v3840 = vmul.f32 %v3703, %v3720
        %v3841 = vmul.f32 %v3704, %v3717
        %v3842 = vmul.f32 %v3705, %v3718
        %v3843 = vmul.f32 %v3706, %v3719
        %v3844 = vmul.f32 %v3707, %v3720
        %v3845 = vmul.f32 %v3708, %v3717
        %v3846 = vmul.f32 %v3709, %v3718
        %v3847 = vmul.f32 %v3710, %v3719
        %v3848 = vmul.f32 %v3711, %v3720
        %v3849 = vmul.f32 %v3712, %v3717
        %v3850 = vmul.f32 %v3713, %v3718
        %v3851 = vmul.f32 %v3714, %v3719
        %v3852 = vmul.f32 %v3715, %v3720
        %v3854 = vperm.slane %v2588, 0
        %v3855 = vperm.slane %v2588, 1
        %v3856 = vperm.slane %v2588, 2
        %v3857 = vperm.slane %v2588, 3
        %v3862 = vadd.f32 %v3725, %v3854
        %v3863 = vadd.f32 %v3726, %v3855
        %v3864 = vadd.f32 %v3727, %v3856
        %v3865 = vadd.f32 %v3728, %v3857
        %v3866 = vadd.f32 %v3729, %v3854
        %v3867 = vadd.f32 %v3730, %v3855
        %v3868 = vadd.f32 %v3731, %v3856
        %v3869 = vadd.f32 %v3732, %v3857
        %v3870 = vadd.f32 %v3733, %v3854
        %v3871 = vadd.f32 %v3734, %v3855
        %v3872 = vadd.f32 %v3735, %v3856
        %v3873 = vadd.f32 %v3736, %v3857
        %v3874 = vadd.f32 %v3737, %v3854
        %v3875 = vadd.f32 %v3738, %v3855
        %v3876 = vadd.f32 %v3739, %v3856
        %v3877 = vadd.f32 %v3740, %v3857
        %v3878 = vadd.f32 %v3741, %v3854
        %v3879 = vadd.f32 %v3742, %v3855
        %v3880 = vadd.f32 %v3743, %v3856
        %v3881 = vadd.f32 %v3744, %v3857
        %v3882 = vadd.f32 %v3745, %v3854
        %v3883 = vadd.f32 %v3746, %v3855
        %v3884 = vadd.f32 %v3747, %v3856
        %v3885 = vadd.f32 %v3748, %v3857
        %v3886 = vadd.f32 %v3749, %v3854
        %v3887 = vadd.f32 %v3750, %v3855
        %v3888 = vadd.f32 %v3751, %v3856
        %v3889 = vadd.f32 %v3752, %v3857
        %v3890 = vadd.f32 %v3753, %v3854
        %v3891 = vadd.f32 %v3754, %v3855
        %v3892 = vadd.f32 %v3755, %v3856
        %v3893 = vadd.f32 %v3756, %v3857
        %v3894 = vadd.f32 %v3757, %v3854
        %v3895 = vadd.f32 %v3758, %v3855
        %v3896 = vadd.f32 %v3759, %v3856
        %v3897 = vadd.f32 %v3760, %v3857
        %v3898 = vadd.f32 %v3761, %v3854
        %v3899 = vadd.f32 %v3762, %v3855
        %v3900 = vadd.f32 %v3763, %v3856
        %v3901 = vadd.f32 %v3764, %v3857
        %v3902 = vadd.f32 %v3765, %v3854
        %v3903 = vadd.f32 %v3766, %v3855
        %v3904 = vadd.f32 %v3767, %v3856
        %v3905 = vadd.f32 %v3768, %v3857
        %v3906 = vadd.f32 %v3769, %v3854
        %v3907 = vadd.f32 %v3770, %v3855
        %v3908 = vadd.f32 %v3771, %v3856
        %v3909 = vadd.f32 %v3772, %v3857
        %v3910 = vadd.f32 %v3773, %v3854
        %v3911 = vadd.f32 %v3774, %v3855
        %v3912 = vadd.f32 %v3775, %v3856
        %v3913 = vadd.f32 %v3776, %v3857
        %v3914 = vadd.f32 %v3777, %v3854
        %v3915 = vadd.f32 %v3778, %v3855
        %v3916 = vadd.f32 %v3779, %v3856
        %v3917 = vadd.f32 %v3780, %v3857
        %v3918 = vadd.f32 %v3781, %v3854
        %v3919 = vadd.f32 %v3782, %v3855
        %v3920 = vadd.f32 %v3783, %v3856
        %v3921 = vadd.f32 %v3784, %v3857
        %v3922 = vadd.f32 %v3785, %v3854
        %v3923 = vadd.f32 %v3786, %v3855
        %v3924 = vadd.f32 %v3787, %v3856
        %v3925 = vadd.f32 %v3788, %v3857
        %v3926 = vadd.f32 %v3789, %v3854
        %v3927 = vadd.f32 %v3790, %v3855
        %v3928 = vadd.f32 %v3791, %v3856
        %v3929 = vadd.f32 %v3792, %v3857
        %v3930 = vadd.f32 %v3793, %v3854
        %v3931 = vadd.f32 %v3794, %v3855
        %v3932 = vadd.f32 %v3795, %v3856
        %v3933 = vadd.f32 %v3796, %v3857
        %v3934 = vadd.f32 %v3797, %v3854
        %v3935 = vadd.f32 %v3798, %v3855
        %v3936 = vadd.f32 %v3799, %v3856
        %v3937 = vadd.f32 %v3800, %v3857
        %v3938 = vadd.f32 %v3801, %v3854
        %v3939 = vadd.f32 %v3802, %v3855
        %v3940 = vadd.f32 %v3803, %v3856
        %v3941 = vadd.f32 %v3804, %v3857
        %v3942 = vadd.f32 %v3805, %v3854
        %v3943 = vadd.f32 %v3806, %v3855
        %v3944 = vadd.f32 %v3807, %v3856
        %v3945 = vadd.f32 %v3808, %v3857
        %v3946 = vadd.f32 %v3809, %v3854
        %v3947 = vadd.f32 %v3810, %v3855
        %v3948 = vadd.f32 %v3811, %v3856
        %v3949 = vadd.f32 %v3812, %v3857
        %v3950 = vadd.f32 %v3813, %v3854
        %v3951 = vadd.f32 %v3814, %v3855
        %v3952 = vadd.f32 %v3815, %v3856
        %v3953 = vadd.f32 %v3816, %v3857
        %v3954 = vadd.f32 %v3817, %v3854
        %v3955 = vadd.f32 %v3818, %v3855
        %v3956 = vadd.f32 %v3819, %v3856
        %v3957 = vadd.f32 %v3820, %v3857
        %v3958 = vadd.f32 %v3821, %v3854
        %v3959 = vadd.f32 %v3822, %v3855
        %v3960 = vadd.f32 %v3823, %v3856
        %v3961 = vadd.f32 %v3824, %v3857
        %v3962 = vadd.f32 %v3825, %v3854
        %v3963 = vadd.f32 %v3826, %v3855
        %v3964 = vadd.f32 %v3827, %v3856
        %v3965 = vadd.f32 %v3828, %v3857
        %v3966 = vadd.f32 %v3829, %v3854
        %v3967 = vadd.f32 %v3830, %v3855
        %v3968 = vadd.f32 %v3831, %v3856
        %v3969 = vadd.f32 %v3832, %v3857
        %v3970 = vadd.f32 %v3833, %v3854
        %v3971 = vadd.f32 %v3834, %v3855
        %v3972 = vadd.f32 %v3835, %v3856
        %v3973 = vadd.f32 %v3836, %v3857
        %v3974 = vadd.f32 %v3837, %v3854
        %v3975 = vadd.f32 %v3838, %v3855
        %v3976 = vadd.f32 %v3839, %v3856
        %v3977 = vadd.f32 %v3840, %v3857
        %v3978 = vadd.f32 %v3841, %v3854
        %v3979 = vadd.f32 %v3842, %v3855
        %v3980 = vadd.f32 %v3843, %v3856
        %v3981 = vadd.f32 %v3844, %v3857
        %v3982 = vadd.f32 %v3845, %v3854
        %v3983 = vadd.f32 %v3846, %v3855
        %v3984 = vadd.f32 %v3847, %v3856
        %v3985 = vadd.f32 %v3848, %v3857
        %v3986 = vadd.f32 %v3849, %v3854
        %v3987 = vadd.f32 %v3850, %v3855
        %v3988 = vadd.f32 %v3851, %v3856
        %v3989 = vadd.f32 %v3852, %v3857
        %v3990 = vld [vmem:[#allocation13] sm:$0xff]
        %v3991 = vld [vmem:[#allocation13 + $0x8] sm:$0xff]
        %v3992 = vld [vmem:[#allocation13 + $0x10] sm:$0xff]
        %v3993 = vld [vmem:[#allocation13 + $0x18] sm:$0xff]
        %v3994 = vld [vmem:[#allocation13 + $0x20] sm:$0xff]
        %v3995 = vld [vmem:[#allocation13 + $0x28] sm:$0xff]
        %v3996 = vld [vmem:[#allocation13 + $0x30] sm:$0xff]
        %v3997 = vld [vmem:[#allocation13 + $0x38] sm:$0xff]
        %v3998 = vld [vmem:[#allocation13 + $0x40] sm:$0xff]
        %v3999 = vld [vmem:[#allocation13 + $0x48] sm:$0xff]
        %v4000 = vld [vmem:[#allocation13 + $0x50] sm:$0xff]
        %v4001 = vld [vmem:[#allocation13 + $0x58] sm:$0xff]
        %v4002 = vld [vmem:[#allocation13 + $0x60] sm:$0xff]
        %v4003 = vld [vmem:[#allocation13 + $0x68] sm:$0xff]
        %v4004 = vld [vmem:[#allocation13 + $0x70] sm:$0xff]
        %v4005 = vld [vmem:[#allocation13 + $0x78] sm:$0xff]
        %v4006 = vld [vmem:[#allocation13 + $0x80] sm:$0xff]
        %v4007 = vld [vmem:[#allocation13 + $0x88] sm:$0xff]
        %v4008 = vld [vmem:[#allocation13 + $0x90] sm:$0xff]
        %v4009 = vld [vmem:[#allocation13 + $0x98] sm:$0xff]
        %v4010 = vld [vmem:[#allocation13 + $0xa0] sm:$0xff]
        %v4011 = vld [vmem:[#allocation13 + $0xa8] sm:$0xff]
        %v4012 = vld [vmem:[#allocation13 + $0xb0] sm:$0xff]
        %v4013 = vld [vmem:[#allocation13 + $0xb8] sm:$0xff]
        %v4014 = vld [vmem:[#allocation13 + $0xc0] sm:$0xff]
        %v4015 = vld [vmem:[#allocation13 + $0xc8] sm:$0xff]
        %v4016 = vld [vmem:[#allocation13 + $0xd0] sm:$0xff]
        %v4017 = vld [vmem:[#allocation13 + $0xd8] sm:$0xff]
        %v4018 = vld [vmem:[#allocation13 + $0xe0] sm:$0xff]
        %v4019 = vld [vmem:[#allocation13 + $0xe8] sm:$0xff]
        %v4020 = vld [vmem:[#allocation13 + $0xf0] sm:$0xff]
        %v4021 = vld [vmem:[#allocation13 + $0xf8] sm:$0xff]
        %v4022 = vadd.f32 %v3862, %v3990
        %v4023 = vadd.f32 %v3863, %v3991
        %v4024 = vadd.f32 %v3864, %v3992
        %v4025 = vadd.f32 %v3865, %v3993
        %v4026 = vadd.f32 %v3866, %v3994
        %v4027 = vadd.f32 %v3867, %v3995
        %v4028 = vadd.f32 %v3868, %v3996
        %v4029 = vadd.f32 %v3869, %v3997
        %v4030 = vadd.f32 %v3870, %v3998
        %v4031 = vadd.f32 %v3871, %v3999
        %v4032 = vadd.f32 %v3872, %v4000
        %v4033 = vadd.f32 %v3873, %v4001
        %v4034 = vadd.f32 %v3874, %v4002
        %v4035 = vadd.f32 %v3875, %v4003
        %v4036 = vadd.f32 %v3876, %v4004
        %v4037 = vadd.f32 %v3877, %v4005
        %v4038 = vadd.f32 %v3878, %v4006
        %v4039 = vadd.f32 %v3879, %v4007
        %v4040 = vadd.f32 %v3880, %v4008
        %v4041 = vadd.f32 %v3881, %v4009
        %v4042 = vadd.f32 %v3882, %v4010
        %v4043 = vadd.f32 %v3883, %v4011
        %v4044 = vadd.f32 %v3884, %v4012
        %v4045 = vadd.f32 %v3885, %v4013
        %v4046 = vadd.f32 %v3886, %v4014
        %v4047 = vadd.f32 %v3887, %v4015
        %v4048 = vadd.f32 %v3888, %v4016
        %v4049 = vadd.f32 %v3889, %v4017
        %v4050 = vadd.f32 %v3890, %v4018
        %v4051 = vadd.f32 %v3891, %v4019
        %v4052 = vadd.f32 %v3892, %v4020
        %v4053 = vadd.f32 %v3893, %v4021
        %v4054 = vadd.f32 %v3894, %v3990
        %v4055 = vadd.f32 %v3895, %v3991
        %v4056 = vadd.f32 %v3896, %v3992
        %v4057 = vadd.f32 %v3897, %v3993
        %v4058 = vadd.f32 %v3898, %v3994
        %v4059 = vadd.f32 %v3899, %v3995
        %v4060 = vadd.f32 %v3900, %v3996
        %v4061 = vadd.f32 %v3901, %v3997
        %v4062 = vadd.f32 %v3902, %v3998
        %v4063 = vadd.f32 %v3903, %v3999
        %v4064 = vadd.f32 %v3904, %v4000
        %v4065 = vadd.f32 %v3905, %v4001
        %v4066 = vadd.f32 %v3906, %v4002
        %v4067 = vadd.f32 %v3907, %v4003
        %v4068 = vadd.f32 %v3908, %v4004
        %v4069 = vadd.f32 %v3909, %v4005
        %v4070 = vadd.f32 %v3910, %v4006
        %v4071 = vadd.f32 %v3911, %v4007
        %v4072 = vadd.f32 %v3912, %v4008
        %v4073 = vadd.f32 %v3913, %v4009
        %v4074 = vadd.f32 %v3914, %v4010
        %v4075 = vadd.f32 %v3915, %v4011
        %v4076 = vadd.f32 %v3916, %v4012
        %v4077 = vadd.f32 %v3917, %v4013
        %v4078 = vadd.f32 %v3918, %v4014
        %v4079 = vadd.f32 %v3919, %v4015
        %v4080 = vadd.f32 %v3920, %v4016
        %v4081 = vadd.f32 %v3921, %v4017
        %v4082 = vadd.f32 %v3922, %v4018
        %v4083 = vadd.f32 %v3923, %v4019
        %v4084 = vadd.f32 %v3924, %v4020
        %v4085 = vadd.f32 %v3925, %v4021
        %v4086 = vadd.f32 %v3926, %v3990
        %v4087 = vadd.f32 %v3927, %v3991
        %v4088 = vadd.f32 %v3928, %v3992
        %v4089 = vadd.f32 %v3929, %v3993
        %v4090 = vadd.f32 %v3930, %v3994
        %v4091 = vadd.f32 %v3931, %v3995
        %v4092 = vadd.f32 %v3932, %v3996
        %v4093 = vadd.f32 %v3933, %v3997
        %v4094 = vadd.f32 %v3934, %v3998
        %v4095 = vadd.f32 %v3935, %v3999
        %v4096 = vadd.f32 %v3936, %v4000
        %v4097 = vadd.f32 %v3937, %v4001
        %v4098 = vadd.f32 %v3938, %v4002
        %v4099 = vadd.f32 %v3939, %v4003
        %v4100 = vadd.f32 %v3940, %v4004
        %v4101 = vadd.f32 %v3941, %v4005
        %v4102 = vadd.f32 %v3942, %v4006
        %v4103 = vadd.f32 %v3943, %v4007
        %v4104 = vadd.f32 %v3944, %v4008
        %v4105 = vadd.f32 %v3945, %v4009
        %v4106 = vadd.f32 %v3946, %v4010
        %v4107 = vadd.f32 %v3947, %v4011
        %v4108 = vadd.f32 %v3948, %v4012
        %v4109 = vadd.f32 %v3949, %v4013
        %v4110 = vadd.f32 %v3950, %v4014
        %v4111 = vadd.f32 %v3951, %v4015
        %v4112 = vadd.f32 %v3952, %v4016
        %v4113 = vadd.f32 %v3953, %v4017
        %v4114 = vadd.f32 %v3954, %v4018
        %v4115 = vadd.f32 %v3955, %v4019
        %v4116 = vadd.f32 %v3956, %v4020
        %v4117 = vadd.f32 %v3957, %v4021
        %v4118 = vadd.f32 %v3958, %v3990
        %v4119 = vadd.f32 %v3959, %v3991
        %v4120 = vadd.f32 %v3960, %v3992
        %v4121 = vadd.f32 %v3961, %v3993
        %v4122 = vadd.f32 %v3962, %v3994
        %v4123 = vadd.f32 %v3963, %v3995
        %v4124 = vadd.f32 %v3964, %v3996
        %v4125 = vadd.f32 %v3965, %v3997
        %v4126 = vadd.f32 %v3966, %v3998
        %v4127 = vadd.f32 %v3967, %v3999
        %v4128 = vadd.f32 %v3968, %v4000
        %v4129 = vadd.f32 %v3969, %v4001
        %v4130 = vadd.f32 %v3970, %v4002
        %v4131 = vadd.f32 %v3971, %v4003
        %v4132 = vadd.f32 %v3972, %v4004
        %v4133 = vadd.f32 %v3973, %v4005
        %v4134 = vadd.f32 %v3974, %v4006
        %v4135 = vadd.f32 %v3975, %v4007
        %v4136 = vadd.f32 %v3976, %v4008
        %v4137 = vadd.f32 %v3977, %v4009
        %v4138 = vadd.f32 %v3978, %v4010
        %v4139 = vadd.f32 %v3979, %v4011
        %v4140 = vadd.f32 %v3980, %v4012
        %v4141 = vadd.f32 %v3981, %v4013
        %v4142 = vadd.f32 %v3982, %v4014
        %v4143 = vadd.f32 %v3983, %v4015
        %v4144 = vadd.f32 %v3984, %v4016
        %v4145 = vadd.f32 %v3985, %v4017
        %v4146 = vadd.f32 %v3986, %v4018
        %v4147 = vadd.f32 %v3987, %v4019
        %v4148 = vadd.f32 %v3988, %v4020
        %v4149 = vadd.f32 %v3989, %v4021
        %4150 = vst [vmem:[%s417] sm:$0xff] %v4022
        %4151 = vst [vmem:[%s417 + $0x8] sm:$0xff] %v4023
        %4152 = vst [vmem:[%s417 + $0x10] sm:$0xff] %v4024
        %4153 = vst [vmem:[%s417 + $0x18] sm:$0xff] %v4025
        %4154 = vst [vmem:[%s417 + $0x20] sm:$0xff] %v4026
        %4155 = vst [vmem:[%s417 + $0x28] sm:$0xff] %v4027
        %4156 = vst [vmem:[%s417 + $0x30] sm:$0xff] %v4028
        %4157 = vst [vmem:[%s417 + $0x38] sm:$0xff] %v4029
        %4158 = vst [vmem:[%s417 + $0x40] sm:$0xff] %v4030
        %4159 = vst [vmem:[%s417 + $0x48] sm:$0xff] %v4031
        %4160 = vst [vmem:[%s417 + $0x50] sm:$0xff] %v4032
        %4161 = vst [vmem:[%s417 + $0x58] sm:$0xff] %v4033
        %4162 = vst [vmem:[%s417 + $0x60] sm:$0xff] %v4034
        %4163 = vst [vmem:[%s417 + $0x68] sm:$0xff] %v4035
        %4164 = vst [vmem:[%s417 + $0x70] sm:$0xff] %v4036
        %4165 = vst [vmem:[%s417 + $0x78] sm:$0xff] %v4037
        %4166 = vst [vmem:[%s417 + $0x80] sm:$0xff] %v4038
        %4167 = vst [vmem:[%s417 + $0x88] sm:$0xff] %v4039
        %4168 = vst [vmem:[%s417 + $0x90] sm:$0xff] %v4040
        %4169 = vst [vmem:[%s417 + $0x98] sm:$0xff] %v4041
        %4170 = vst [vmem:[%s417 + $0xa0] sm:$0xff] %v4042
        %4171 = vst [vmem:[%s417 + $0xa8] sm:$0xff] %v4043
        %4172 = vst [vmem:[%s417 + $0xb0] sm:$0xff] %v4044
        %4173 = vst [vmem:[%s417 + $0xb8] sm:$0xff] %v4045
        %4174 = vst [vmem:[%s417 + $0xc0] sm:$0xff] %v4046
        %4175 = vst [vmem:[%s417 + $0xc8] sm:$0xff] %v4047
        %4176 = vst [vmem:[%s417 + $0xd0] sm:$0xff] %v4048
        %4177 = vst [vmem:[%s417 + $0xd8] sm:$0xff] %v4049
        %4178 = vst [vmem:[%s417 + $0xe0] sm:$0xff] %v4050
        %4179 = vst [vmem:[%s417 + $0xe8] sm:$0xff] %v4051
        %4180 = vst [vmem:[%s417 + $0xf0] sm:$0xff] %v4052
        %4181 = vst [vmem:[%s417 + $0xf8] sm:$0xff] %v4053
        %4182 = vst [vmem:[%s417 + $0x100] sm:$0xff] %v4054
        %4183 = vst [vmem:[%s417 + $0x108] sm:$0xff] %v4055
        %4184 = vst [vmem:[%s417 + $0x110] sm:$0xff] %v4056
        %4185 = vst [vmem:[%s417 + $0x118] sm:$0xff] %v4057
        %4186 = vst [vmem:[%s417 + $0x120] sm:$0xff] %v4058
        %4187 = vst [vmem:[%s417 + $0x128] sm:$0xff] %v4059
        %4188 = vst [vmem:[%s417 + $0x130] sm:$0xff] %v4060
        %4189 = vst [vmem:[%s417 + $0x138] sm:$0xff] %v4061
        %4190 = vst [vmem:[%s417 + $0x140] sm:$0xff] %v4062
        %4191 = vst [vmem:[%s417 + $0x148] sm:$0xff] %v4063
        %4192 = vst [vmem:[%s417 + $0x150] sm:$0xff] %v4064
        %4193 = vst [vmem:[%s417 + $0x158] sm:$0xff] %v4065
        %4194 = vst [vmem:[%s417 + $0x160] sm:$0xff] %v4066
        %4195 = vst [vmem:[%s417 + $0x168] sm:$0xff] %v4067
        %4196 = vst [vmem:[%s417 + $0x170] sm:$0xff] %v4068
        %4197 = vst [vmem:[%s417 + $0x178] sm:$0xff] %v4069
        %4198 = vst [vmem:[%s417 + $0x180] sm:$0xff] %v4070
        %4199 = vst [vmem:[%s417 + $0x188] sm:$0xff] %v4071
        %4200 = vst [vmem:[%s417 + $0x190] sm:$0xff] %v4072
        %4201 = vst [vmem:[%s417 + $0x198] sm:$0xff] %v4073
        %4202 = vst [vmem:[%s417 + $0x1a0] sm:$0xff] %v4074
        %4203 = vst [vmem:[%s417 + $0x1a8] sm:$0xff] %v4075
        %4204 = vst [vmem:[%s417 + $0x1b0] sm:$0xff] %v4076
        %4205 = vst [vmem:[%s417 + $0x1b8] sm:$0xff] %v4077
        %4206 = vst [vmem:[%s417 + $0x1c0] sm:$0xff] %v4078
        %4207 = vst [vmem:[%s417 + $0x1c8] sm:$0xff] %v4079
        %4208 = vst [vmem:[%s417 + $0x1d0] sm:$0xff] %v4080
        %4209 = vst [vmem:[%s417 + $0x1d8] sm:$0xff] %v4081
        %4210 = vst [vmem:[%s417 + $0x1e0] sm:$0xff] %v4082
        %4211 = vst [vmem:[%s417 + $0x1e8] sm:$0xff] %v4083
        %4212 = vst [vmem:[%s417 + $0x1f0] sm:$0xff] %v4084
        %4213 = vst [vmem:[%s417 + $0x1f8] sm:$0xff] %v4085
        %4214 = vst [vmem:[%s417 + $0x200] sm:$0xff] %v4086
        %4215 = vst [vmem:[%s417 + $0x208] sm:$0xff] %v4087
        %4216 = vst [vmem:[%s417 + $0x210] sm:$0xff] %v4088
        %4217 = vst [vmem:[%s417 + $0x218] sm:$0xff] %v4089
        %4218 = vst [vmem:[%s417 + $0x220] sm:$0xff] %v4090
        %4219 = vst [vmem:[%s417 + $0x228] sm:$0xff] %v4091
        %4220 = vst [vmem:[%s417 + $0x230] sm:$0xff] %v4092
        %4221 = vst [vmem:[%s417 + $0x238] sm:$0xff] %v4093
        %4222 = vst [vmem:[%s417 + $0x240] sm:$0xff] %v4094
        %4223 = vst [vmem:[%s417 + $0x248] sm:$0xff] %v4095
        %4224 = vst [vmem:[%s417 + $0x250] sm:$0xff] %v4096
        %4225 = vst [vmem:[%s417 + $0x258] sm:$0xff] %v4097
        %4226 = vst [vmem:[%s417 + $0x260] sm:$0xff] %v4098
        %4227 = vst [vmem:[%s417 + $0x268] sm:$0xff] %v4099
        %4228 = vst [vmem:[%s417 + $0x270] sm:$0xff] %v4100
        %4229 = vst [vmem:[%s417 + $0x278] sm:$0xff] %v4101
        %4230 = vst [vmem:[%s417 + $0x280] sm:$0xff] %v4102
        %4231 = vst [vmem:[%s417 + $0x288] sm:$0xff] %v4103
        %4232 = vst [vmem:[%s417 + $0x290] sm:$0xff] %v4104
        %4233 = vst [vmem:[%s417 + $0x298] sm:$0xff] %v4105
        %4234 = vst [vmem:[%s417 + $0x2a0] sm:$0xff] %v4106
        %4235 = vst [vmem:[%s417 + $0x2a8] sm:$0xff] %v4107
        %4236 = vst [vmem:[%s417 + $0x2b0] sm:$0xff] %v4108
        %4237 = vst [vmem:[%s417 + $0x2b8] sm:$0xff] %v4109
        %4238 = vst [vmem:[%s417 + $0x2c0] sm:$0xff] %v4110
        %4239 = vst [vmem:[%s417 + $0x2c8] sm:$0xff] %v4111
        %4240 = vst [vmem:[%s417 + $0x2d0] sm:$0xff] %v4112
        %4241 = vst [vmem:[%s417 + $0x2d8] sm:$0xff] %v4113
        %4242 = vst [vmem:[%s417 + $0x2e0] sm:$0xff] %v4114
        %4243 = vst [vmem:[%s417 + $0x2e8] sm:$0xff] %v4115
        %4244 = vst [vmem:[%s417 + $0x2f0] sm:$0xff] %v4116
        %4245 = vst [vmem:[%s417 + $0x2f8] sm:$0xff] %v4117
        %4246 = vst [vmem:[%s417 + $0x300] sm:$0xff] %v4118
        %4247 = vst [vmem:[%s417 + $0x308] sm:$0xff] %v4119
        %4248 = vst [vmem:[%s417 + $0x310] sm:$0xff] %v4120
        %4249 = vst [vmem:[%s417 + $0x318] sm:$0xff] %v4121
        %4250 = vst [vmem:[%s417 + $0x320] sm:$0xff] %v4122
        %4251 = vst [vmem:[%s417 + $0x328] sm:$0xff] %v4123
        %4252 = vst [vmem:[%s417 + $0x330] sm:$0xff] %v4124
        %4253 = vst [vmem:[%s417 + $0x338] sm:$0xff] %v4125
        %4254 = vst [vmem:[%s417 + $0x340] sm:$0xff] %v4126
        %4255 = vst [vmem:[%s417 + $0x348] sm:$0xff] %v4127
        %4256 = vst [vmem:[%s417 + $0x350] sm:$0xff] %v4128
        %4257 = vst [vmem:[%s417 + $0x358] sm:$0xff] %v4129
        %4258 = vst [vmem:[%s417 + $0x360] sm:$0xff] %v4130
        %4259 = vst [vmem:[%s417 + $0x368] sm:$0xff] %v4131
        %4260 = vst [vmem:[%s417 + $0x370] sm:$0xff] %v4132
        %4261 = vst [vmem:[%s417 + $0x378] sm:$0xff] %v4133
        %4262 = vst [vmem:[%s417 + $0x380] sm:$0xff] %v4134
        %4263 = vst [vmem:[%s417 + $0x388] sm:$0xff] %v4135
        %4264 = vst [vmem:[%s417 + $0x390] sm:$0xff] %v4136
        %4265 = vst [vmem:[%s417 + $0x398] sm:$0xff] %v4137
        %4266 = vst [vmem:[%s417 + $0x3a0] sm:$0xff] %v4138
        %4267 = vst [vmem:[%s417 + $0x3a8] sm:$0xff] %v4139
        %4268 = vst [vmem:[%s417 + $0x3b0] sm:$0xff] %v4140
        %4269 = vst [vmem:[%s417 + $0x3b8] sm:$0xff] %v4141
        %4270 = vst [vmem:[%s417 + $0x3c0] sm:$0xff] %v4142
        %4271 = vst [vmem:[%s417 + $0x3c8] sm:$0xff] %v4143
        %4272 = vst [vmem:[%s417 + $0x3d0] sm:$0xff] %v4144
        %4273 = vst [vmem:[%s417 + $0x3d8] sm:$0xff] %v4145
        %4274 = vst [vmem:[%s417 + $0x3e0] sm:$0xff] %v4146
        %4275 = vst [vmem:[%s417 + $0x3e8] sm:$0xff] %v4147
        %4276 = vst [vmem:[%s417 + $0x3f0] sm:$0xff] %v4148
        %4277 = vst [vmem:[%s417 + $0x3f8] sm:$0xff] %v4149
        %s4278 = sand.u32 %s209, 1
        %s4279 = scalar_lea.sflag [#allocation4], %s4278
        %s4280 = sand.u32 %s209, 1
        %s4281 = smul.addr %s4280, 1024
        %s4282 = scalar_lea.vmem [#allocation14], %s4281
        // Predicated region
        $region81: #{tpu_custom_call.1} parent=51 // pred_check
          %p4283 = pneg %p219
        $region82: #{tpu_custom_call.1} parent=51 // pred_check_branch
          %4285 = sbr.rel (%p4283) target = $region84
        $region83: #{tpu_custom_call.1} parent=51 // pred_region
          %s4286 = smul.u32 4, %s28
          %4288 = vsyncadd %s4279, 0
          %s4289 = smul.addr %s4286, 32
          %s4290 = smul.addr %s4289, 8
          %s4291 = scalar_lea.hbm %s8, %s4290
          %s4292 = sshll.u32 %s4282, 4
          %s4293 = int_to_ptr.vmem [resolvable:$true] %s4292
          %s4294 = sshll.u32 %s4291, 4
          %s4295 = int_to_ptr.hbm [resolvable:$true] %s4294
          %4300 = dma.vmem_to_hbm [thread:$0]  %s4293, 16384, %s4295, %s4279, 512, 512, 32
        $region84: #{tpu_custom_call.1} parent=51 // pred_fallthru
          _
      $region52: #{tpu_custom_call.1} parent=5 // pred_fallthru
        _
      %p4301 = scmp.le.s32.totalorder 2, %s23
      // Predicated region
      $region85: #{tpu_custom_call.1} parent=5 // pred_check
        %p4302 = pneg %p4301
      $region86: #{tpu_custom_call.1} parent=5 // pred_check_branch
        %4304 = sbr.rel (%p4302) target = $region88
      $region87: #{tpu_custom_call.1} parent=5 // pred_region
        %s4305 = ssub.s32 %s23, 2
        // Predicated region
        $region89: #{tpu_custom_call.1} parent=87 // pred_check
          %p4306 = pneg %p225
        $region90: #{tpu_custom_call.1} parent=87 // pred_check_branch
          %4308 = sbr.rel (%p4306) target = $region92
        $region91: #{tpu_custom_call.1} parent=87 // pred_region
          %s4309 = sand.u32 %s210, 1
          %s4310 = scalar_lea.sflag [#allocation4], %s4309
          %s4311 = sand.u32 %s210, 1
          %s4312 = smul.addr %s4311, 1024
          %s4313 = scalar_lea.vmem [#allocation14], %s4312
          %4315 = dma.done %s4310, 16384
        $region92: #{tpu_custom_call.1} parent=87 // pred_fallthru
          _
      $region88: #{tpu_custom_call.1} parent=5 // pred_fallthru
        _
    $region6: #{tpu_custom_call.1} parent=1 // loop_footer
      %s27 = sadd.s32 1, %s23
    $region7: #{tpu_custom_call.1} parent=1 // loop_footer_branch
      %22 = sbr.rel target = $region3
    $region8: #{tpu_custom_call.1} parent=1 // loop_exit
      _
    %4316 = vsyncpa [#allocation3], 1
    %s4317 = scalar_lea.sflag [#allocation3], 1
    %4318 = vsyncpa %s4317, 1
    %4319 = vsyncpa [#allocation6], 1
    %4320 = vsyncpa [#allocation9], 1
    %4321 = vsyncpa [#allocation12], 1
    %4322 = vsyncpa [#allocation4], 1
    %s4323 = scalar_lea.sflag [#allocation4], 1
    %4324 = vsyncpa %s4323, 1

</llo_original>
